<compile_context>
chip_gen: v7x
topology: tpu7x:2x2x1
jax: 0.10.0
libtpu: 0.0.40
codegen_flags: <defaults>
</compile_context>

<pallas_src>
import jax
import jax.numpy as jnp
from jax import lax
from jax.experimental import pallas as pl
from jax.experimental.pallas import tpu as pltpu

FEAT_IN = 84
H1, H2, H3 = 512, 512, 128


def _round_up(n, m):
    return -(-n // m) * m


def _default_bf16_epilogue():
    """bf16 bias+ReLU epilogue only on chips with a bf16 VALU (v6e / v7x)."""
    try:
        kind = jax.devices()[0].device_kind.lower()
    except Exception:
        return False
    return ("v6" in kind) or ("v7" in kind) or ("7x" in kind)


def _choose_tb(B, *, max_tb=1024, target_grid_steps=2):
    """Batch tile: multiple of 256 (clean MXU M passes on all generations),
    capped at max_tb (VMEM-safe on v7x's 64 MiB physical VMEM), and small enough
    that the grid keeps >= target_grid_steps steps when B allows (v7x megacore)."""
    b_ceil = max(256, _round_up(B, 256))
    tb = min(max_tb, b_ceil)
    if target_grid_steps > 1 and b_ceil >= 256 * target_grid_steps:
        tb = min(tb, max(256, _round_up(pl.cdiv(b_ceil, target_grid_steps), 256)))
    return tb


def _make_kernel(bf16_epilogue):
    def act(h_f32, b_ref):
        # Bias + ReLU epilogue; result feeds the next bf16 MXU matmul.
        if bf16_epilogue:                                   # v6e / v7x bf16 VALU
            return jnp.maximum(h_f32.astype(jnp.bfloat16) + b_ref[...], 0.0)
        h = jnp.maximum(h_f32 + b_ref[...], 0.0)            # v5e f32 VALU
        return h.astype(jnp.bfloat16)

    def kernel(x_ref,
               w1_ref, b1_ref,
               w2_ref, b2_ref,
               w3_ref, b3_ref,
               w4_ref, b4_ref,
               o_ref):
        x = x_ref[...]                                                    # (tb, 84) bf16
        h = jnp.dot(x, w1_ref[...], preferred_element_type=jnp.float32)  # (tb, 512) f32
        h = act(h, b1_ref)
        h = jnp.dot(h, w2_ref[...], preferred_element_type=jnp.float32)  # (tb, 512) f32
        h = act(h, b2_ref)
        h = jnp.dot(h, w3_ref[...], preferred_element_type=jnp.float32)  # (tb, 128) f32
        h = act(h, b3_ref)                                                # (tb, 128) bf16
        # Final 128 -> 1 layer, computed transposed (NT dot_general) so the
        # per-tile result is a lane-dense (1, tb) row: unmasked stores, no relayout.
        y = lax.dot_general(w4_ref[...], h, (((1,), (1,)), ((), ())),
                            preferred_element_type=jnp.float32)           # (1, tb) f32
        o_ref[...] = y + b4_ref[...]

    return kernel


def weather_net2_forward(x, params, length=None, *, max_tb=1024,
                         target_grid_steps=2, bf16_epilogue=None):
    """Pallas implementation of Weather_Net2.forward (inference).

    x:      (B, ...) array; flattened to (B, 84) like torch.flatten(start_dim=1)
    params: dict of (w1, b1, ..., w4, b4); w_l stored as (in, out)
    length: unused (signature parity with the PyTorch module)
    """
    del length
    if bf16_epilogue is None:
        bf16_epilogue = _default_bf16_epilogue()

    B = x.shape[0]
    x2 = x.reshape(B, -1)
    assert x2.shape[1] == FEAT_IN, f"expected {FEAT_IN} features, got {x2.shape[1]}"

    # Cast to bf16 FIRST, then pad only the batch dim (single bf16 pass; no
    # feature padding -> the kernel streams (tb, 84) blocks straight from HBM).
    x2 = x2.astype(jnp.bfloat16)
    tb = _choose_tb(B, max_tb=max_tb, target_grid_steps=target_grid_steps)
    B_pad = _round_up(B, tb)
    xp = x2 if B_pad == B else jnp.pad(x2, ((0, B_pad - B), (0, 0)))

    ep_dt = jnp.bfloat16 if bf16_epilogue else jnp.float32
    w1b = params["w1"].astype(jnp.bfloat16)                  # (84, 512)
    w2b = params["w2"].astype(jnp.bfloat16)                  # (512, 512)
    w3b = params["w3"].astype(jnp.bfloat16)                  # (512, 128)
    w4b = params["w4"].astype(jnp.bfloat16).reshape(1, H3)   # (1, 128)
    b1r = params["b1"].astype(ep_dt).reshape(1, H1)
    b2r = params["b2"].astype(ep_dt).reshape(1, H2)
    b3r = params["b3"].astype(ep_dt).reshape(1, H3)
    b4r = params["b4"].astype(jnp.float32).reshape(1, 1)

    grid = (B_pad // tb,)

    def full_spec(shape):
        # Full-array block, constant index_map -> stays VMEM-resident across grid.
        return pl.BlockSpec(shape, lambda i: (0,) * len(shape))

    flops = 2 * B_pad * (FEAT_IN * H1 + H1 * H2 + H2 * H3 + H3 * 1)
    weight_bytes = 2 * (FEAT_IN * H1 + H1 * H2 + H2 * H3 + H3)
    bias_bytes = (H1 + H2 + H3) * (2 if bf16_epilogue else 4) + 4
    bytes_accessed = B_pad * FEAT_IN * 2 + weight_bytes + bias_bytes + B_pad * 4

    out = pl.pallas_call(
        _make_kernel(bf16_epilogue),
        out_shape=jax.ShapeDtypeStruct((1, B_pad), jnp.float32),
        grid_spec=pltpu.PrefetchScalarGridSpec(
            num_scalar_prefetch=0,
            grid=grid,
            in_specs=[
                pl.BlockSpec((tb, FEAT_IN), lambda i: (i, 0)),    # x tile (bf16)
                full_spec(w1b.shape), full_spec(b1r.shape),
                full_spec(w2b.shape), full_spec(b2r.shape),
                full_spec(w3b.shape), full_spec(b3r.shape),
                full_spec(w4b.shape), full_spec(b4r.shape),
            ],
            out_specs=pl.BlockSpec((1, tb), lambda i: (0, i)),     # lane-dense slab
        ),
        compiler_params=pltpu.CompilerParams(
            dimension_semantics=("parallel",),
            vmem_limit_bytes=32 * 1024 * 1024,
        ),
        cost_estimate=pl.CostEstimate(
            flops=flops, transcendentals=0, bytes_accessed=bytes_accessed),
    )(xp, w1b, b1r, w2b, b2r, w3b, b3r, w4b, b4r)

    # Drop batch padding; torch's X.squeeze(): (B, 1) -> (B,)
    return out[0, :B]


def init_params(key):
    """Deterministic parameter init matching nn.Linear shapes (stored as (in, out))."""
    dims = [(FEAT_IN, H1), (H1, H2), (H2, H3), (H3, 1)]
    params = {}
    for idx, (fan_in, fan_out) in enumerate(dims, start=1):
        key, kw, kb = jax.random.split(key, 3)
        bound = 1.0 / jnp.sqrt(fan_in)
        params[f"w{idx}"] = jax.random.uniform(
            kw, (fan_in, fan_out), jnp.float32, minval=-bound, maxval=bound)
        params[f"b{idx}"] = jax.random.uniform(
            kb, (fan_out,), jnp.float32, minval=-bound, maxval=bound)
    return params


def _reference_forward(x, params, *, bf16_epilogue):
    """Plain-JAX reference mirroring the kernel's dtype path."""
    B = x.shape[0]
    h = x.reshape(B, -1).astype(jnp.bfloat16)

    def act(h_f32, b):
        if bf16_epilogue:
            return jnp.maximum(h_f32.astype(jnp.bfloat16) + b.astype(jnp.bfloat16), 0.0)
        return jnp.maximum(h_f32 + b.astype(jnp.float32), 0.0).astype(jnp.bfloat16)

    h = act(jnp.dot(h, params["w1"].astype(jnp.bfloat16),
                    preferred_element_type=jnp.float32), params["b1"])
    h = act(jnp.dot(h, params["w2"].astype(jnp.bfloat16),
                    preferred_element_type=jnp.float32), params["b2"])
    h = act(jnp.dot(h, params["w3"].astype(jnp.bfloat16),
                    preferred_element_type=jnp.float32), params["b3"])
    y = jnp.dot(h, params["w4"].astype(jnp.bfloat16),
                preferred_element_type=jnp.float32) + params["b4"].astype(jnp.float32)
    return y.reshape(B)


if __name__ == "__main__":
    key = jax.random.PRNGKey(0)
    key, kx = jax.random.split(key)

    # batch=300 exercises adaptive tiling (tb=256, 2-step grid -> megacore path)
    # and ragged-batch padding; features flatten to 84 (4 x 21).
    B = 300
    x = jax.random.normal(kx, (B, 4, 21), jnp.float32)
    length = jnp.full((B,), 4, jnp.int32)  # unused, signature parity only

    params = init_params(key)

    fwd = jax.jit(lambda xx, pp, ll: weather_net2_forward(xx, pp, ll))
    out = jax.block_until_ready(fwd(x, params, length))

    ref = _reference_forward(x, params, bf16_epilogue=_default_bf16_epilogue())
    assert out.shape == (B,)
    assert jnp.allclose(out, ref, atol=5e-3, rtol=5e-3), "mismatch vs reference"

    print("KERNEL_OK")
</pallas_src>

<mosaic_0001>
module attributes {stable_mosaic.version = 11 : i64} {
  func.func @kernel(%arg0: i32, %arg1: memref<256x84xbf16, #tpu.memory_space<vmem>>, %arg2: memref<84x512xbf16, #tpu.memory_space<vmem>>, %arg3: memref<1x512xf32, #tpu.memory_space<vmem>>, %arg4: memref<512x512xbf16, #tpu.memory_space<vmem>>, %arg5: memref<1x512xf32, #tpu.memory_space<vmem>>, %arg6: memref<512x128xbf16, #tpu.memory_space<vmem>>, %arg7: memref<1x128xf32, #tpu.memory_space<vmem>>, %arg8: memref<1x128xbf16, #tpu.memory_space<vmem>>, %arg9: memref<1x1xf32, #tpu.memory_space<vmem>>, %arg10: memref<1x256xf32, #tpu.memory_space<vmem>>) attributes {dimension_semantics = [#tpu.dimension_semantics<parallel>], iteration_bounds = array<i64: 2>, scalar_prefetch = 0 : i64, scratch_operands = 0 : i64, tpu.core_type = #tpu.core_type<tc>, window_params = [{transform_indices = @transform_0, window_bounds = array<i64: 256, 84>}, {pipeline_mode = #tpu.pipeline_mode<synchronous>, transform_indices = @transform_1, window_bounds = array<i64: 84, 512>}, {pipeline_mode = #tpu.pipeline_mode<synchronous>, transform_indices = @transform_2, window_bounds = array<i64: 1, 512>}, {pipeline_mode = #tpu.pipeline_mode<synchronous>, transform_indices = @transform_3, window_bounds = array<i64: 512, 512>}, {pipeline_mode = #tpu.pipeline_mode<synchronous>, transform_indices = @transform_4, window_bounds = array<i64: 1, 512>}, {pipeline_mode = #tpu.pipeline_mode<synchronous>, transform_indices = @transform_5, window_bounds = array<i64: 512, 128>}, {pipeline_mode = #tpu.pipeline_mode<synchronous>, transform_indices = @transform_6, window_bounds = array<i64: 1, 128>}, {pipeline_mode = #tpu.pipeline_mode<synchronous>, transform_indices = @transform_7, window_bounds = array<i64: 1, 128>}, {pipeline_mode = #tpu.pipeline_mode<synchronous>, transform_indices = @transform_8, window_bounds = array<i64: 1, 1>}, {transform_indices = @transform_9, window_bounds = array<i64: 1, 256>}]} {
    %c0 = arith.constant 0 : index
    %c0_0 = arith.constant 0 : index
    %0 = vector.load %arg1[%c0, %c0_0] : memref<256x84xbf16, #tpu.memory_space<vmem>>, vector<256x84xbf16>
    %c0_1 = arith.constant 0 : index
    %c0_2 = arith.constant 0 : index
    %1 = vector.load %arg2[%c0_1, %c0_2] : memref<84x512xbf16, #tpu.memory_space<vmem>>, vector<84x512xbf16>
    %cst = arith.constant dense<0.000000e+00> : vector<256x512xf32>
    %2 = tpu.matmul %0, %1, %cst {dimension_numbers = #tpu.dot_dimension_numbers<[1], [0], [0], [1], [0, 0, 1, 1], [], []>} : vector<256x84xbf16>, vector<84x512xbf16>, vector<256x512xf32> -> vector<256x512xf32>
    %c0_3 = arith.constant 0 : index
    %c0_4 = arith.constant 0 : index
    %3 = vector.load %arg3[%c0_3, %c0_4] : memref<1x512xf32, #tpu.memory_space<vmem>>, vector<1x512xf32>
    %4 = vector.broadcast %3 : vector<1x512xf32> to vector<256x512xf32>
    %5 = arith.addf %2, %4 : vector<256x512xf32>
    %cst_5 = arith.constant 0.000000e+00 : f32
    %6 = vector.broadcast %cst_5 : f32 to vector<256x512xf32>
    %7 = arith.maximumf %5, %6 : vector<256x512xf32>
    %8 = arith.truncf %7 : vector<256x512xf32> to vector<256x512xbf16>
    %c0_6 = arith.constant 0 : index
    %c0_7 = arith.constant 0 : index
    %9 = vector.load %arg4[%c0_6, %c0_7] : memref<512x512xbf16, #tpu.memory_space<vmem>>, vector<512x512xbf16>
    %cst_8 = arith.constant dense<0.000000e+00> : vector<256x512xf32>
    %10 = tpu.matmul %8, %9, %cst_8 {dimension_numbers = #tpu.dot_dimension_numbers<[1], [0], [0], [1], [0, 0, 1, 1], [], []>} : vector<256x512xbf16>, vector<512x512xbf16>, vector<256x512xf32> -> vector<256x512xf32>
    %c0_9 = arith.constant 0 : index
    %c0_10 = arith.constant 0 : index
    %11 = vector.load %arg5[%c0_9, %c0_10] : memref<1x512xf32, #tpu.memory_space<vmem>>, vector<1x512xf32>
    %12 = vector.broadcast %11 : vector<1x512xf32> to vector<256x512xf32>
    %13 = arith.addf %10, %12 : vector<256x512xf32>
    %cst_11 = arith.constant 0.000000e+00 : f32
    %14 = vector.broadcast %cst_11 : f32 to vector<256x512xf32>
    %15 = arith.maximumf %13, %14 : vector<256x512xf32>
    %16 = arith.truncf %15 : vector<256x512xf32> to vector<256x512xbf16>
    %c0_12 = arith.constant 0 : index
    %c0_13 = arith.constant 0 : index
    %17 = vector.load %arg6[%c0_12, %c0_13] : memref<512x128xbf16, #tpu.memory_space<vmem>>, vector<512x128xbf16>
    %cst_14 = arith.constant dense<0.000000e+00> : vector<256x128xf32>
    %18 = tpu.matmul %16, %17, %cst_14 {dimension_numbers = #tpu.dot_dimension_numbers<[1], [0], [0], [1], [0, 0, 1, 1], [], []>} : vector<256x512xbf16>, vector<512x128xbf16>, vector<256x128xf32> -> vector<256x128xf32>
    %c0_15 = arith.constant 0 : index
    %c0_16 = arith.constant 0 : index
    %19 = vector.load %arg7[%c0_15, %c0_16] : memref<1x128xf32, #tpu.memory_space<vmem>>, vector<1x128xf32>
    %20 = vector.broadcast %19 : vector<1x128xf32> to vector<256x128xf32>
    %21 = arith.addf %18, %20 : vector<256x128xf32>
    %cst_17 = arith.constant 0.000000e+00 : f32
    %22 = vector.broadcast %cst_17 : f32 to vector<256x128xf32>
    %23 = arith.maximumf %21, %22 : vector<256x128xf32>
    %24 = arith.truncf %23 : vector<256x128xf32> to vector<256x128xbf16>
    %c0_18 = arith.constant 0 : index
    %c0_19 = arith.constant 0 : index
    %25 = vector.load %arg8[%c0_18, %c0_19] : memref<1x128xbf16, #tpu.memory_space<vmem>>, vector<1x128xbf16>
    %cst_20 = arith.constant dense<0.000000e+00> : vector<1x256xf32>
    %26 = tpu.matmul %25, %24, %cst_20 {dimension_numbers = #tpu.dot_dimension_numbers<[1], [1], [0], [0], [0, 0, 1, 0], [], []>} : vector<1x128xbf16>, vector<256x128xbf16>, vector<1x256xf32> -> vector<1x256xf32>
    %c0_21 = arith.constant 0 : index
    %c0_22 = arith.constant 0 : index
    %27 = vector.load %arg9[%c0_21, %c0_22] : memref<1x1xf32, #tpu.memory_space<vmem>>, vector<1x1xf32>
    %28 = vector.broadcast %27 : vector<1x1xf32> to vector<1x256xf32>
    %29 = arith.addf %26, %28 : vector<1x256xf32>
    %c0_23 = arith.constant 0 : index
    %c0_24 = arith.constant 0 : index
    %30 = vector.load %arg10[%c0_23, %c0_24] : memref<1x256xf32, #tpu.memory_space<vmem>>, vector<1x256xf32>
    tpu.vector_store %arg10[%c0_23, %c0_24], %29 {strides = array<i32>} : memref<1x256xf32, #tpu.memory_space<vmem>>, vector<1x256xf32>,
    return
  }
  func.func @transform_0(%arg0: i32) -> (i32, i32) {
    %c0_i32 = arith.constant 0 : i32
    %c0_i32_0 = arith.constant 0 : i32
    return %arg0, %c0_i32 : i32, i32
  }
  func.func @transform_1(%arg0: i32) -> (i32, i32) {
    %c0_i32 = arith.constant 0 : i32
    %c0_i32_0 = arith.constant 0 : i32
    %c0_i32_1 = arith.constant 0 : i32
    return %c0_i32, %c0_i32_0 : i32, i32
  }
  func.func @transform_2(%arg0: i32) -> (i32, i32) {
    %c0_i32 = arith.constant 0 : i32
    %c0_i32_0 = arith.constant 0 : i32
    %c0_i32_1 = arith.constant 0 : i32
    return %c0_i32, %c0_i32_0 : i32, i32
  }
  func.func @transform_3(%arg0: i32) -> (i32, i32) {
    %c0_i32 = arith.constant 0 : i32
    %c0_i32_0 = arith.constant 0 : i32
    %c0_i32_1 = arith.constant 0 : i32
    return %c0_i32, %c0_i32_0 : i32, i32
  }
  func.func @transform_4(%arg0: i32) -> (i32, i32) {
    %c0_i32 = arith.constant 0 : i32
    %c0_i32_0 = arith.constant 0 : i32
    %c0_i32_1 = arith.constant 0 : i32
    return %c0_i32, %c0_i32_0 : i32, i32
  }
  func.func @transform_5(%arg0: i32) -> (i32, i32) {
    %c0_i32 = arith.constant 0 : i32
    %c0_i32_0 = arith.constant 0 : i32
    %c0_i32_1 = arith.constant 0 : i32
    return %c0_i32, %c0_i32_0 : i32, i32
  }
  func.func @transform_6(%arg0: i32) -> (i32, i32) {
    %c0_i32 = arith.constant 0 : i32
    %c0_i32_0 = arith.constant 0 : i32
    %c0_i32_1 = arith.constant 0 : i32
    return %c0_i32, %c0_i32_0 : i32, i32
  }
  func.func @transform_7(%arg0: i32) -> (i32, i32) {
    %c0_i32 = arith.constant 0 : i32
    %c0_i32_0 = arith.constant 0 : i32
    %c0_i32_1 = arith.constant 0 : i32
    return %c0_i32, %c0_i32_0 : i32, i32
  }
  func.func @transform_8(%arg0: i32) -> (i32, i32) {
    %c0_i32 = arith.constant 0 : i32
    %c0_i32_0 = arith.constant 0 : i32
    %c0_i32_1 = arith.constant 0 : i32
    return %c0_i32, %c0_i32_0 : i32, i32
  }
  func.func @transform_9(%arg0: i32) -> (i32, i32) {
    %c0_i32 = arith.constant 0 : i32
    %c0_i32_0 = arith.constant 0 : i32
    return %c0_i32, %arg0 : i32, i32
  }
}

</mosaic_0001>

<llo_original>
// kernel: _lambda_.1
$region0: #{_lambda_.1}
  #allocation0 [shape = 'u32[]', space=smem, size = 0x4, offset = 0x4, fixed_abs, tag = 'smem constant byte address 0x4 - core index']
  #allocation1 [shape = 'u32[144,128]{1,0:T(1,128)}', space=vmem, size = 0x12000, scoped, tag = 'internal scratch']
  #allocation2 [shape = 'f32[1,1]{1,0:T(1,128)S(1)}', space=vmem, size = 0x200, scoped, tag = 'scoped memory for _lambda_.1']
  %s0 = inlined_call_operand.vmem [shape: bf16[512,84], index: 0, kind: input, shape index: {}]
  %s1 = inlined_call_operand.vmem [shape: bf16[84,512], index: 1, kind: input, shape index: {}]
  %s2 = inlined_call_operand.vmem [shape: f32[1,512], index: 2, kind: input, shape index: {}]
  %s3 = inlined_call_operand.vmem [shape: bf16[512,512], index: 3, kind: input, shape index: {}]
  %s4 = inlined_call_operand.vmem [shape: f32[1,512], index: 4, kind: input, shape index: {}]
  %s5 = inlined_call_operand.vmem [shape: bf16[512,128], index: 5, kind: input, shape index: {}]
  %s6 = inlined_call_operand.vmem [shape: f32[1,128], index: 6, kind: input, shape index: {}]
  %s7 = inlined_call_operand.vmem [shape: bf16[1,128], index: 7, kind: input, shape index: {}]
  %s8 = inlined_call_operand.<no memory space> [shape: f32[1,1], index: 8, kind: input, shape index: {}]
  %s9 = inlined_call_operand.vmem [shape: f32[1,512], index: 9, kind: output, shape index: {}]
  %s10 = sld [smem:[#allocation0]]
  $region69: #{_lambda_.1} parent=0
    _
  %s12 = ssub.s32 1, %s10
  %s13 = scalar_select 0, %s12, %s10
  %v14 = vstv %s8
  %15 = vst [vmem:[#allocation2] sm:$0x1] %v14
  loop: start=0, step=1, limit=4
  $region2: #{_lambda_.1} parent=0 // loop_pre_header
    _
  $region3: #{_lambda_.1} parent=0 // loop_header
    %s17 = sphi 0, %s21
    %p18 = scmp.ge.s32.totalorder %s17, 4
    %s27 = sphi 0, %s29
    %s30 = sphi 0, %s27
    %s31 = sphi 0, %s30
    %s47 = sphi 0, %s31
    %s51 = sphi 0, %s51
    %s53 = sphi 0, %s51
    %s54 = sphi 0, %s53
    %s68 = sphi 0, %s54
    %s72 = sphi 0, %s72
    %s74 = sphi 0, %s72
    %s75 = sphi 0, %s74
    %s89 = sphi 0, %s75
    %s93 = sphi 0, %s93
    %s95 = sphi 0, %s93
    %s96 = sphi 0, %s95
    %s110 = sphi 0, %s96
    %s114 = sphi 0, %s114
    %s116 = sphi 0, %s114
    %s117 = sphi 0, %s116
    %s131 = sphi 0, %s117
    %s135 = sphi 0, %s135
    %s137 = sphi 0, %s135
    %s138 = sphi 0, %s137
    %s152 = sphi 0, %s138
    %s156 = sphi 0, %s156
    %s158 = sphi 0, %s156
    %s159 = sphi 0, %s158
    %s173 = sphi 0, %s159
    %s177 = sphi 0, %s177
    %s179 = sphi 0, %s177
    %s180 = sphi 0, %s179
    %s194 = sphi 0, %s180
    %s198 = sphi 0, %s198
    %s200 = sphi 0, %s198
    %s201 = sphi 0, %s200
    %s215 = sphi 0, %s201
    %s221 = sphi 0, %s223
    %s224 = sphi 0, %s221
    %s225 = sphi 0, %s224
    %s241 = sphi 0, %s225
  $region4: #{_lambda_.1} parent=0 // loop_header_branch
    %20 = sbr.rel (%p18) target = $region8
  $region5: #{_lambda_.1} parent=0 // loop_body
    %s22 = ssub.s32 %s17, 1
    %s23 = ssub.s32 %s17, 2
    %s24 = sadd.s32 %s17, 1
    %s25 = ssub.s32 %s17, %s24
    %p26 = scmp.eq.s32.totalorder %s25, 0
    %s28 = sadd.s32 %s27, 1
    %s29 = scalar_select %p26, %s27, %s28
    %p32 = pneg %p26
    %p33 = scmp.eq.s32.totalorder %s17, 1
    %p34 = por %p32, %p33
    %p35 = scmp.ne.s32.totalorder %s27, %s30
    %p36 = scmp.eq.s32.totalorder %s17, 0
    %p37 = por %p35, %p36
    %p38 = scmp.ne.s32.totalorder %s27, %s30
    %p39 = scmp.eq.s32.totalorder %s22, 1
    %p40 = por %p38, %p39
    %p41 = scmp.ne.s32.totalorder %s30, %s31
    %p42 = scmp.eq.s32.totalorder %s22, 0
    %p43 = por %p41, %p42
    %p44 = scmp.ne.s32.totalorder %s30, %s31
    %p45 = scmp.eq.s32.totalorder %s23, 1
    %p46 = por %p44, %p45
    %p48 = scmp.ne.s32.totalorder %s31, %s47
    %p49 = scmp.eq.s32.totalorder %s23, 0
    %p50 = por %p48, %p49
    %s52 = sadd.s32 %s51, 1
    %p55 = scmp.eq.s32.totalorder %s17, 1
    %p56 = scmp.ne.s32.totalorder %s51, %s53
    %p57 = scmp.eq.s32.totalorder %s17, 0
    %p58 = por %p56, %p57
    %p59 = scmp.ne.s32.totalorder %s51, %s53
    %p60 = scmp.eq.s32.totalorder %s22, 1
    %p61 = por %p59, %p60
    %p62 = scmp.ne.s32.totalorder %s53, %s54
    %p63 = scmp.eq.s32.totalorder %s22, 0
    %p64 = por %p62, %p63
    %p65 = scmp.ne.s32.totalorder %s53, %s54
    %p66 = scmp.eq.s32.totalorder %s23, 1
    %p67 = por %p65, %p66
    %p69 = scmp.ne.s32.totalorder %s54, %s68
    %p70 = scmp.eq.s32.totalorder %s23, 0
    %p71 = por %p69, %p70
    %s73 = sadd.s32 %s72, 1
    %p76 = scmp.eq.s32.totalorder %s17, 1
    %p77 = scmp.ne.s32.totalorder %s72, %s74
    %p78 = scmp.eq.s32.totalorder %s17, 0
    %p79 = por %p77, %p78
    %p80 = scmp.ne.s32.totalorder %s72, %s74
    %p81 = scmp.eq.s32.totalorder %s22, 1
    %p82 = por %p80, %p81
    %p83 = scmp.ne.s32.totalorder %s74, %s75
    %p84 = scmp.eq.s32.totalorder %s22, 0
    %p85 = por %p83, %p84
    %p86 = scmp.ne.s32.totalorder %s74, %s75
    %p87 = scmp.eq.s32.totalorder %s23, 1
    %p88 = por %p86, %p87
    %p90 = scmp.ne.s32.totalorder %s75, %s89
    %p91 = scmp.eq.s32.totalorder %s23, 0
    %p92 = por %p90, %p91
    %s94 = sadd.s32 %s93, 1
    %p97 = scmp.eq.s32.totalorder %s17, 1
    %p98 = scmp.ne.s32.totalorder %s93, %s95
    %p99 = scmp.eq.s32.totalorder %s17, 0
    %p100 = por %p98, %p99
    %p101 = scmp.ne.s32.totalorder %s93, %s95
    %p102 = scmp.eq.s32.totalorder %s22, 1
    %p103 = por %p101, %p102
    %p104 = scmp.ne.s32.totalorder %s95, %s96
    %p105 = scmp.eq.s32.totalorder %s22, 0
    %p106 = por %p104, %p105
    %p107 = scmp.ne.s32.totalorder %s95, %s96
    %p108 = scmp.eq.s32.totalorder %s23, 1
    %p109 = por %p107, %p108
    %p111 = scmp.ne.s32.totalorder %s96, %s110
    %p112 = scmp.eq.s32.totalorder %s23, 0
    %p113 = por %p111, %p112
    %s115 = sadd.s32 %s114, 1
    %p118 = scmp.eq.s32.totalorder %s17, 1
    %p119 = scmp.ne.s32.totalorder %s114, %s116
    %p120 = scmp.eq.s32.totalorder %s17, 0
    %p121 = por %p119, %p120
    %p122 = scmp.ne.s32.totalorder %s114, %s116
    %p123 = scmp.eq.s32.totalorder %s22, 1
    %p124 = por %p122, %p123
    %p125 = scmp.ne.s32.totalorder %s116, %s117
    %p126 = scmp.eq.s32.totalorder %s22, 0
    %p127 = por %p125, %p126
    %p128 = scmp.ne.s32.totalorder %s116, %s117
    %p129 = scmp.eq.s32.totalorder %s23, 1
    %p130 = por %p128, %p129
    %p132 = scmp.ne.s32.totalorder %s117, %s131
    %p133 = scmp.eq.s32.totalorder %s23, 0
    %p134 = por %p132, %p133
    %s136 = sadd.s32 %s135, 1
    %p139 = scmp.eq.s32.totalorder %s17, 1
    %p140 = scmp.ne.s32.totalorder %s135, %s137
    %p141 = scmp.eq.s32.totalorder %s17, 0
    %p142 = por %p140, %p141
    %p143 = scmp.ne.s32.totalorder %s135, %s137
    %p144 = scmp.eq.s32.totalorder %s22, 1
    %p145 = por %p143, %p144
    %p146 = scmp.ne.s32.totalorder %s137, %s138
    %p147 = scmp.eq.s32.totalorder %s22, 0
    %p148 = por %p146, %p147
    %p149 = scmp.ne.s32.totalorder %s137, %s138
    %p150 = scmp.eq.s32.totalorder %s23, 1
    %p151 = por %p149, %p150
    %p153 = scmp.ne.s32.totalorder %s138, %s152
    %p154 = scmp.eq.s32.totalorder %s23, 0
    %p155 = por %p153, %p154
    %s157 = sadd.s32 %s156, 1
    %p160 = scmp.eq.s32.totalorder %s17, 1
    %p161 = scmp.ne.s32.totalorder %s156, %s158
    %p162 = scmp.eq.s32.totalorder %s17, 0
    %p163 = por %p161, %p162
    %p164 = scmp.ne.s32.totalorder %s156, %s158
    %p165 = scmp.eq.s32.totalorder %s22, 1
    %p166 = por %p164, %p165
    %p167 = scmp.ne.s32.totalorder %s158, %s159
    %p168 = scmp.eq.s32.totalorder %s22, 0
    %p169 = por %p167, %p168
    %p170 = scmp.ne.s32.totalorder %s158, %s159
    %p171 = scmp.eq.s32.totalorder %s23, 1
    %p172 = por %p170, %p171
    %p174 = scmp.ne.s32.totalorder %s159, %s173
    %p175 = scmp.eq.s32.totalorder %s23, 0
    %p176 = por %p174, %p175
    %s178 = sadd.s32 %s177, 1
    %p181 = scmp.eq.s32.totalorder %s17, 1
    %p182 = scmp.ne.s32.totalorder %s177, %s179
    %p183 = scmp.eq.s32.totalorder %s17, 0
    %p184 = por %p182, %p183
    %p185 = scmp.ne.s32.totalorder %s177, %s179
    %p186 = scmp.eq.s32.totalorder %s22, 1
    %p187 = por %p185, %p186
    %p188 = scmp.ne.s32.totalorder %s179, %s180
    %p189 = scmp.eq.s32.totalorder %s22, 0
    %p190 = por %p188, %p189
    %p191 = scmp.ne.s32.totalorder %s179, %s180
    %p192 = scmp.eq.s32.totalorder %s23, 1
    %p193 = por %p191, %p192
    %p195 = scmp.ne.s32.totalorder %s180, %s194
    %p196 = scmp.eq.s32.totalorder %s23, 0
    %p197 = por %p195, %p196
    %s199 = sadd.s32 %s198, 1
    %p202 = scmp.eq.s32.totalorder %s17, 1
    %p203 = scmp.ne.s32.totalorder %s198, %s200
    %p204 = scmp.eq.s32.totalorder %s17, 0
    %p205 = por %p203, %p204
    %p206 = scmp.ne.s32.totalorder %s198, %s200
    %p207 = scmp.eq.s32.totalorder %s22, 1
    %p208 = por %p206, %p207
    %p209 = scmp.ne.s32.totalorder %s200, %s201
    %p210 = scmp.eq.s32.totalorder %s22, 0
    %p211 = por %p209, %p210
    %p212 = scmp.ne.s32.totalorder %s200, %s201
    %p213 = scmp.eq.s32.totalorder %s23, 1
    %p214 = por %p212, %p213
    %p216 = scmp.ne.s32.totalorder %s201, %s215
    %p217 = scmp.eq.s32.totalorder %s23, 0
    %p218 = por %p216, %p217
    %s219 = ssub.s32 %s17, %s24
    %p220 = scmp.eq.s32.totalorder %s219, 0
    %s222 = sadd.s32 %s221, 1
    %s223 = scalar_select %p220, %s221, %s222
    %p226 = pneg %p220
    %p227 = scmp.eq.s32.totalorder %s17, 1
    %p228 = por %p226, %p227
    %p229 = scmp.ne.s32.totalorder %s221, %s224
    %p230 = scmp.eq.s32.totalorder %s17, 0
    %p231 = por %p229, %p230
    %p232 = scmp.ne.s32.totalorder %s221, %s224
    %p233 = scmp.eq.s32.totalorder %s22, 1
    %p234 = por %p232, %p233
    %p235 = scmp.ne.s32.totalorder %s224, %s225
    %p236 = scmp.eq.s32.totalorder %s22, 0
    %p237 = por %p235, %p236
    %p238 = scmp.ne.s32.totalorder %s224, %s225
    %p239 = scmp.eq.s32.totalorder %s23, 1
    %p240 = por %p238, %p239
    %p242 = scmp.ne.s32.totalorder %s225, %s241
    %p243 = scmp.eq.s32.totalorder %s23, 0
    %p244 = por %p242, %p243
    %p245 = scmp.le.s32.totalorder 1, %s17
    %p246 = scmp.lt.s32.totalorder %s17, 3
    %p247 = pnand %p245, %p246
    %p248 = pneg %p247
    // Predicated region
    $region9: #{_lambda_.1} parent=5 // pred_check
      _
    $region10: #{_lambda_.1} parent=5 // pred_check_branch
      %250 = sbr.rel (%p247) target = $region12
    $region11: #{_lambda_.1} parent=5 // pred_region
      %s251 = ssub.s32 %s17, 1
      // Predicated region
      $region13: #{_lambda_.1} parent=11 // pred_check
        %p252 = pneg %p64
      $region14: #{_lambda_.1} parent=11 // pred_check_branch
        %254 = sbr.rel (%p252) target = $region16
      $region15: #{_lambda_.1} parent=11 // pred_region
        _
      $region16: #{_lambda_.1} parent=11 // pred_fallthru
        _
      // Predicated region
      $region17: #{_lambda_.1} parent=11 // pred_check
        %p255 = pneg %p85
      $region18: #{_lambda_.1} parent=11 // pred_check_branch
        %257 = sbr.rel (%p255) target = $region20
      $region19: #{_lambda_.1} parent=11 // pred_region
        _
      $region20: #{_lambda_.1} parent=11 // pred_fallthru
        _
      // Predicated region
      $region21: #{_lambda_.1} parent=11 // pred_check
        %p258 = pneg %p106
      $region22: #{_lambda_.1} parent=11 // pred_check_branch
        %260 = sbr.rel (%p258) target = $region24
      $region23: #{_lambda_.1} parent=11 // pred_region
        _
      $region24: #{_lambda_.1} parent=11 // pred_fallthru
        _
      // Predicated region
      $region25: #{_lambda_.1} parent=11 // pred_check
        %p261 = pneg %p127
      $region26: #{_lambda_.1} parent=11 // pred_check_branch
        %263 = sbr.rel (%p261) target = $region28
      $region27: #{_lambda_.1} parent=11 // pred_region
        _
      $region28: #{_lambda_.1} parent=11 // pred_fallthru
        _
      // Predicated region
      $region29: #{_lambda_.1} parent=11 // pred_check
        %p264 = pneg %p148
      $region30: #{_lambda_.1} parent=11 // pred_check_branch
        %266 = sbr.rel (%p264) target = $region32
      $region31: #{_lambda_.1} parent=11 // pred_region
        _
      $region32: #{_lambda_.1} parent=11 // pred_fallthru
        _
      // Predicated region
      $region33: #{_lambda_.1} parent=11 // pred_check
        %p267 = pneg %p169
      $region34: #{_lambda_.1} parent=11 // pred_check_branch
        %269 = sbr.rel (%p267) target = $region36
      $region35: #{_lambda_.1} parent=11 // pred_region
        _
      $region36: #{_lambda_.1} parent=11 // pred_fallthru
        _
      // Predicated region
      $region37: #{_lambda_.1} parent=11 // pred_check
        %p270 = pneg %p190
      $region38: #{_lambda_.1} parent=11 // pred_check_branch
        %272 = sbr.rel (%p270) target = $region40
      $region39: #{_lambda_.1} parent=11 // pred_region
        _
      $region40: #{_lambda_.1} parent=11 // pred_fallthru
        _
      // Predicated region
      $region41: #{_lambda_.1} parent=11 // pred_check
        %p273 = pneg %p211
      $region42: #{_lambda_.1} parent=11 // pred_check_branch
        %275 = sbr.rel (%p273) target = $region44
      $region43: #{_lambda_.1} parent=11 // pred_region
        _
      $region44: #{_lambda_.1} parent=11 // pred_fallthru
        _
    $region12: #{_lambda_.1} parent=5 // pred_fallthru
      _
    %p276 = scmp.lt.s32.totalorder %s17, 2
    // Predicated region
    $region45: #{_lambda_.1} parent=5 // pred_check
      %p277 = pneg %p276
    $region46: #{_lambda_.1} parent=5 // pred_check_branch
      %279 = sbr.rel (%p277) target = $region48
    $region47: #{_lambda_.1} parent=5 // pred_region
      // Predicated region
      $region49: #{_lambda_.1} parent=47 // pred_check
        %p280 = pneg %p37
      $region50: #{_lambda_.1} parent=47 // pred_check_branch
        %282 = sbr.rel (%p280) target = $region52
      $region51: #{_lambda_.1} parent=47 // pred_region
        %s283 = smul.u32 32, %s17
        %p284 = scmp.lt.s32.totalorder %s283, 63
        %s285 = scalar_select %p284, %s283, 63
        %s286 = smul.addr %s285, 4
        %s287 = scalar_lea.vmem %s0, %s286
        %s288 = smul.u32 32, %s17
      $region52: #{_lambda_.1} parent=47 // pred_fallthru
        _
    $region48: #{_lambda_.1} parent=5 // pred_fallthru
      _
    %p289 = scmp.le.s32.totalorder 1, %s17
    %p290 = scmp.lt.s32.totalorder %s17, 3
    %p291 = pnand %p289, %p290
    %p292 = pneg %p291
    // Predicated region
    $region53: #{_lambda_.1} parent=5 // pred_check
      _
    $region54: #{_lambda_.1} parent=5 // pred_check_branch
      %294 = sbr.rel (%p291) target = $region56
    $region55: #{_lambda_.1} parent=5 // pred_region
      %s295 = ssub.s32 %s17, 1
      %s296 = smul.u32 32, %s22
      %p297 = scmp.lt.s32.totalorder %s296, 63
      %s298 = scalar_select %p297, %s296, 63
      %s299 = smul.addr %s298, 4
      %s300 = scalar_lea.vmem %s0, %s299
      %p301 = pneg %p43
      %p302 = pneg %p40
      %p303 = pneg %p64
      %p304 = pneg %p61
      %p305 = pneg %p85
      %p306 = pneg %p82
      %p307 = pneg %p106
      %p308 = pneg %p103
      %p309 = pneg %p127
      %p310 = pneg %p124
      %p311 = pneg %p148
      %p312 = pneg %p145
      %p313 = pneg %p169
      %p314 = pneg %p166
      %p315 = pneg %p190
      %p316 = pneg %p187
      %p317 = pneg %p211
      %p318 = pneg %p208
      %p319 = pneg %p237
      %p320 = pneg %p234
      %s321 = smul.u32 2, %s22
      %p322 = scmp.lt.s32.totalorder %s321, 3
      %s323 = scalar_select %p322, %s321, 3
      %s324 = scalar_lea.vmem %s9, %s323
      %s325 = smul.u32 32, %s22
      %p326 = scmp.lt.s32.totalorder %s325, 63
      %s327 = scalar_select %p326, %s325, 63
      %s328 = smul.addr %s327, 4
      %s329 = scalar_lea.vmem %s0, %s328
      %s330 = smul.u32 32, %s22
      %s331 = smul.u32 2, %s22
      %p332 = scmp.lt.s32.totalorder %s331, 3
      %s333 = scalar_select %p332, %s331, 3
      %s334 = scalar_lea.vmem %s9, %s333
      %s335 = smul.u32 2, %s22
      %v337 = vld [vmem:[%s329] sm:$0xf]
      %v338 = vld [vmem:[%s329 + $0x4] sm:$0xf]
      %v339 = vld [vmem:[%s329 + $0x8] sm:$0xf]
      %v340 = vld [vmem:[%s329 + $0xc] sm:$0xf]
      %v341 = vld [vmem:[%s329 + $0x10] sm:$0xf]
      %v342 = vld [vmem:[%s329 + $0x14] sm:$0xf]
      %v343 = vld [vmem:[%s329 + $0x18] sm:$0xf]
      %v344 = vld [vmem:[%s329 + $0x1c] sm:$0xf]
      %v345 = vld [vmem:[%s329 + $0x20] sm:$0xf]
      %v346 = vld [vmem:[%s329 + $0x24] sm:$0xf]
      %v347 = vld [vmem:[%s329 + $0x28] sm:$0xf]
      %v348 = vld [vmem:[%s329 + $0x2c] sm:$0xf]
      %v349 = vld [vmem:[%s329 + $0x30] sm:$0xf]
      %v350 = vld [vmem:[%s329 + $0x34] sm:$0xf]
      %v351 = vld [vmem:[%s329 + $0x38] sm:$0xf]
      %v352 = vld [vmem:[%s329 + $0x3c] sm:$0xf]
      %v353 = vld [vmem:[%s329 + $0x40] sm:$0xf]
      %v354 = vld [vmem:[%s329 + $0x44] sm:$0xf]
      %v355 = vld [vmem:[%s329 + $0x48] sm:$0xf]
      %v356 = vld [vmem:[%s329 + $0x4c] sm:$0xf]
      %v357 = vld [vmem:[%s329 + $0x50] sm:$0xf]
      %v358 = vld [vmem:[%s329 + $0x54] sm:$0xf]
      %v359 = vld [vmem:[%s329 + $0x58] sm:$0xf]
      %v360 = vld [vmem:[%s329 + $0x5c] sm:$0xf]
      %v361 = vld [vmem:[%s329 + $0x60] sm:$0xf]
      %v362 = vld [vmem:[%s329 + $0x64] sm:$0xf]
      %v363 = vld [vmem:[%s329 + $0x68] sm:$0xf]
      %v364 = vld [vmem:[%s329 + $0x6c] sm:$0xf]
      %v365 = vld [vmem:[%s329 + $0x70] sm:$0xf]
      %v366 = vld [vmem:[%s329 + $0x74] sm:$0xf]
      %v367 = vld [vmem:[%s329 + $0x78] sm:$0xf]
      %v368 = vld [vmem:[%s329 + $0x7c] sm:$0xf]
      %v369 = vld [vmem:[%s1] sm:$0xff]
      %v370 = vld [vmem:[%s1 + $0x8] sm:$0xff]
      %v371 = vld [vmem:[%s1 + $0x10] sm:$0xff]
      %v372 = vld [vmem:[%s1 + $0x18] sm:$0xff]
      %v373 = vld [vmem:[%s1 + $0x20] sm:$0xff]
      %v374 = vld [vmem:[%s1 + $0x28] sm:$0xff]
      %v375 = vld [vmem:[%s1 + $0x30] sm:$0xff]
      %v376 = vld [vmem:[%s1 + $0x38] sm:$0xff]
      %v377 = vld [vmem:[%s1 + $0x40] sm:$0xff]
      %v378 = vld [vmem:[%s1 + $0x48] sm:$0xff]
      %v379 = vld [vmem:[%s1 + $0x50] sm:$0xff]
      %v380 = vld [vmem:[%s1 + $0x58] sm:$0xff]
      %v381 = vld [vmem:[%s1 + $0x60] sm:$0xff]
      %v382 = vld [vmem:[%s1 + $0x68] sm:$0xff]
      %v383 = vld [vmem:[%s1 + $0x70] sm:$0xff]
      %v384 = vld [vmem:[%s1 + $0x78] sm:$0xff]
      %v385 = vld [vmem:[%s1 + $0x80] sm:$0xff]
      %v386 = vld [vmem:[%s1 + $0x88] sm:$0xff]
      %v387 = vld [vmem:[%s1 + $0x90] sm:$0xff]
      %v388 = vld [vmem:[%s1 + $0x98] sm:$0xff]
      %v389 = vld [vmem:[%s1 + $0xa0] sm:$0x33]
      %v390 = vld [vmem:[%s1 + $0xa8] sm:$0x33]
      %v391 = vld [vmem:[%s2] sm:$0xf]
      %v393 = vlaneseq
      %v394 = vshrl.u32 %v393, 7
      %v395 = vsub.s32 0, %v394
      %v396 = vrot.slane %v391, %v395
      %v397 = vlaneseq
      %v398 = vshrl.u32 %v397, 7
      %v399 = vsub.s32 1, %v398
      %v400 = vrot.slane %v391, %v399
      %v401 = vlaneseq
      %v402 = vshrl.u32 %v401, 7
      %v403 = vsub.s32 2, %v402
      %v404 = vrot.slane %v391, %v403
      %v405 = vlaneseq
      %v406 = vshrl.u32 %v405, 7
      %v407 = vsub.s32 3, %v406
      %v408 = vrot.slane %v391, %v407
      %v445 = vunpack.c.l.b16 %v337
      %v446 = vunpack.c.l.b16 %v338
      %v447 = vunpack.c.l.b16 %v339
      %v448 = vunpack.c.l.b16 %v340
      %v449 = vunpack.c.l.b16 %v341
      %v450 = vunpack.c.l.b16 %v342
      %v451 = vunpack.c.l.b16 %v343
      %v452 = vunpack.c.l.b16 %v344
      %v453 = vunpack.c.l.b16 %v345
      %v454 = vunpack.c.l.b16 %v346
      %v455 = vunpack.c.l.b16 %v347
      %v456 = vunpack.c.l.b16 %v348
      %v457 = vunpack.c.l.b16 %v349
      %v458 = vunpack.c.l.b16 %v350
      %v459 = vunpack.c.l.b16 %v351
      %v460 = vunpack.c.l.b16 %v352
      %v461 = vunpack.c.l.b16 %v353
      %v462 = vunpack.c.l.b16 %v354
      %v463 = vunpack.c.l.b16 %v355
      %v464 = vunpack.c.l.b16 %v356
      %v465 = vunpack.c.l.b16 %v357
      %v466 = vunpack.c.l.b16 %v358
      %v467 = vunpack.c.l.b16 %v359
      %v468 = vunpack.c.l.b16 %v360
      %v469 = vunpack.c.l.b16 %v361
      %v470 = vunpack.c.l.b16 %v362
      %v471 = vunpack.c.l.b16 %v363
      %v472 = vunpack.c.l.b16 %v364
      %v473 = vunpack.c.l.b16 %v365
      %v474 = vunpack.c.l.b16 %v366
      %v475 = vunpack.c.l.b16 %v367
      %v476 = vunpack.c.l.b16 %v368
      %v477 = vpack.c.b16 %v446, %v445
      %v478 = vpack.c.b16 %v448, %v447
      %v479 = vpack.c.b16 %v450, %v449
      %v480 = vpack.c.b16 %v452, %v451
      %v481 = vpack.c.b16 %v454, %v453
      %v482 = vpack.c.b16 %v456, %v455
      %v483 = vpack.c.b16 %v458, %v457
      %v484 = vpack.c.b16 %v460, %v459
      %v485 = vpack.c.b16 %v462, %v461
      %v486 = vpack.c.b16 %v464, %v463
      %v487 = vpack.c.b16 %v466, %v465
      %v488 = vpack.c.b16 %v468, %v467
      %v489 = vpack.c.b16 %v470, %v469
      %v490 = vpack.c.b16 %v472, %v471
      %v491 = vpack.c.b16 %v474, %v473
      %v492 = vpack.c.b16 %v476, %v475
      %v515 = vunpack.c.l.b16 %v369
      %v516 = vunpack.c.h.b16 %v369
      %v517 = vunpack.c.l.b16 %v370
      %v518 = vunpack.c.h.b16 %v370
      %v519 = vunpack.c.l.b16 %v371
      %v520 = vunpack.c.h.b16 %v371
      %v521 = vunpack.c.l.b16 %v372
      %v522 = vunpack.c.h.b16 %v372
      %v523 = vunpack.c.l.b16 %v373
      %v524 = vunpack.c.h.b16 %v373
      %v525 = vunpack.c.l.b16 %v374
      %v526 = vunpack.c.h.b16 %v374
      %v527 = vunpack.c.l.b16 %v375
      %v528 = vunpack.c.h.b16 %v375
      %v529 = vunpack.c.l.b16 %v376
      %v530 = vunpack.c.h.b16 %v376
      %v531 = vunpack.c.l.b16 %v377
      %v532 = vunpack.c.h.b16 %v377
      %v533 = vunpack.c.l.b16 %v378
      %v534 = vunpack.c.h.b16 %v378
      %v535 = vunpack.c.l.b16 %v379
      %v536 = vunpack.c.h.b16 %v379
      %v537 = vunpack.c.l.b16 %v380
      %v538 = vunpack.c.h.b16 %v380
      %v539 = vunpack.c.l.b16 %v381
      %v540 = vunpack.c.h.b16 %v381
      %v541 = vunpack.c.l.b16 %v382
      %v542 = vunpack.c.h.b16 %v382
      %v543 = vunpack.c.l.b16 %v383
      %v544 = vunpack.c.h.b16 %v383
      %v545 = vunpack.c.l.b16 %v384
      %v546 = vunpack.c.h.b16 %v384
      %v547 = vunpack.c.l.b16 %v385
      %v548 = vunpack.c.h.b16 %v385
      %v549 = vunpack.c.l.b16 %v386
      %v550 = vunpack.c.h.b16 %v386
      %v551 = vunpack.c.l.b16 %v387
      %v552 = vunpack.c.h.b16 %v387
      %v553 = vunpack.c.l.b16 %v388
      %v554 = vunpack.c.h.b16 %v388
      %v555 = vunpack.c.l.b16 %v389
      %v556 = vunpack.c.h.b16 %v389
      %v557 = vunpack.c.l.b16 %v390
      %v558 = vunpack.c.h.b16 %v390
      %v559 = vpack.c.b16 %v519, %v515
      %v560 = vpack.c.b16 %v520, %v516
      %v561 = vpack.c.b16 %v521, %v517
      %v562 = vpack.c.b16 %v522, %v518
      %v563 = vpack.c.b16 %v527, %v523
      %v564 = vpack.c.b16 %v528, %v524
      %v565 = vpack.c.b16 %v529, %v525
      %v566 = vpack.c.b16 %v530, %v526
      %v567 = vpack.c.b16 %v535, %v531
      %v568 = vpack.c.b16 %v536, %v532
      %v569 = vpack.c.b16 %v537, %v533
      %v570 = vpack.c.b16 %v538, %v534
      %v571 = vpack.c.b16 %v543, %v539
      %v572 = vpack.c.b16 %v544, %v540
      %v573 = vpack.c.b16 %v545, %v541
      %v574 = vpack.c.b16 %v546, %v542
      %v575 = vpack.c.b16 %v551, %v547
      %v576 = vpack.c.b16 %v552, %v548
      %v577 = vpack.c.b16 %v553, %v549
      %v578 = vpack.c.b16 %v554, %v550
      %v579 = vpack.c.b16 %v555, %v555
      %v580 = vpack.c.b16 %v556, %v556
      %v581 = vpack.c.b16 %v557, %v557
      %v582 = vpack.c.b16 %v558, %v558
      %vm603 = vcmask 687104
      %v605 = vsel %vm603, %v477, 0
      %v608 = vsel %vm603, %v478, 0
      %v611 = vsel %vm603, %v479, 0
      %v614 = vsel %vm603, %v480, 0
      %v617 = vsel %vm603, %v481, 0
      %v620 = vsel %vm603, %v482, 0
      %v623 = vsel %vm603, %v483, 0
      %v626 = vsel %vm603, %v484, 0
      %v629 = vsel %vm603, %v485, 0
      %v632 = vsel %vm603, %v486, 0
      %v635 = vsel %vm603, %v487, 0
      %v638 = vsel %vm603, %v488, 0
      %v641 = vsel %vm603, %v489, 0
      %v644 = vsel %vm603, %v490, 0
      %v647 = vsel %vm603, %v491, 0
      %v650 = vsel %vm603, %v492, 0
      %vm652 = vcmask 1041408
      %v654 = vsel %vm652, %v579, 0
      %v657 = vsel %vm652, %v580, 0
      %v660 = vsel %vm652, %v581, 0
      %v663 = vsel %vm652, %v582, 0
      %665 = vmatprep.subr.bf16.mxu0 %v560
      %666 = vmatpush1.bf16.msra.mxu0 %v559
      %667 = vmatprep.subr.bf16.mxu0 %v564
      %668 = vmatpush1.bf16.msra.mxu0 %v563
      %669 = vmatprep.subr.bf16.mxu0 %v568
      %670 = vmatpush1.bf16.msra.mxu0 %v567
      %671 = vmatprep.subr.bf16.mxu0 %v572
      %672 = vmatpush1.bf16.msra.mxu0 %v571
      %673 = vmatprep.subr.bf16.mxu0 %v576
      %674 = vmatpush1.bf16.msra.mxu0 %v575
      %675 = vmatprep.subr.bf16.mxu0 %v657
      %676 = vmatpush1.bf16.msra.mxu0 %v654
      %677 = vmatprep.subr.bf16.mxu0 0
      %678 = vmatpush1.bf16.msra.mxu0 0
      %679 = vmatprep.subr.bf16.mxu0 0
      %680 = vmatpush1.bf16.msra.mxu0 0
      %681 = vmatprep.subr.bf16.mxu0 0
      %682 = vmatpush1.bf16.msra.mxu0 0
      %683 = vmatprep.subr.bf16.mxu0 0
      %684 = vmatpush1.bf16.msra.mxu0 0
      %685 = vmatprep.subr.bf16.mxu0 0
      %686 = vmatpush1.bf16.msra.mxu0 0
      %687 = vmatprep.subr.bf16.mxu0 0
      %688 = vmatpush1.bf16.msra.mxu0 0
      %689 = vmatprep.subr.bf16.mxu0 0
      %690 = vmatpush1.bf16.msra.mxu0 0
      %691 = vmatprep.subr.bf16.mxu0 0
      %692 = vmatpush1.bf16.msra.mxu0 0
      %693 = vmatprep.subr.bf16.mxu0 0
      %694 = vmatpush1.bf16.msra.mxu0 0
      %695 = vmatprep.subr.bf16.mxu0 0
      %696 = vmatpush1.bf16.msra.mxu0 0
      %697 = vmatprep.mubr.bf16.mxu0 0
      %698 = vmatmul.mubr.bf16.gmra.mrb[0].mxu0 %v605
      %v699 = vpop.f32.mrb[0].mxu0
      %v700 = vadd.f32 %v396, %v699
      %v701 = vpop.f32.mrb[0].mxu0
      %v702 = vadd.f32 %v400, %v701
      %v703 = vpop.f32.mrb[0].mxu0
      %v704 = vadd.f32 %v396, %v703
      %v705 = vpop.f32.mrb[0].mxu0
      %v706 = vadd.f32 %v400, %v705
      %707 = vmatprep.mubr.bf16.mxu0 0
      %708 = vmatmul.mubr.bf16.gmra.mrb[0].mxu0 %v608
      %v709 = vpop.f32.mrb[0].mxu0
      %v710 = vadd.f32 %v396, %v709
      %v711 = vpop.f32.mrb[0].mxu0
      %v712 = vadd.f32 %v400, %v711
      %v713 = vpop.f32.mrb[0].mxu0
      %v714 = vadd.f32 %v396, %v713
      %v715 = vpop.f32.mrb[0].mxu0
      %v716 = vadd.f32 %v400, %v715
      %717 = vmatprep.mubr.bf16.mxu0 0
      %718 = vmatmul.mubr.bf16.gmra.mrb[0].mxu0 %v611
      %v719 = vpop.f32.mrb[0].mxu0
      %v720 = vadd.f32 %v396, %v719
      %v721 = vpop.f32.mrb[0].mxu0
      %v722 = vadd.f32 %v400, %v721
      %v723 = vpop.f32.mrb[0].mxu0
      %v724 = vadd.f32 %v396, %v723
      %v725 = vpop.f32.mrb[0].mxu0
      %v726 = vadd.f32 %v400, %v725
      %727 = vmatprep.mubr.bf16.mxu0 0
      %728 = vmatmul.mubr.bf16.gmra.mrb[0].mxu0 %v614
      %v729 = vpop.f32.mrb[0].mxu0
      %v730 = vadd.f32 %v396, %v729
      %v731 = vpop.f32.mrb[0].mxu0
      %v732 = vadd.f32 %v400, %v731
      %v733 = vpop.f32.mrb[0].mxu0
      %v734 = vadd.f32 %v396, %v733
      %v735 = vpop.f32.mrb[0].mxu0
      %v736 = vadd.f32 %v400, %v735
      %737 = vmatprep.mubr.bf16.mxu0 0
      %738 = vmatmul.mubr.bf16.gmra.mrb[0].mxu0 %v617
      %v739 = vpop.f32.mrb[0].mxu0
      %v740 = vadd.f32 %v396, %v739
      %v741 = vpop.f32.mrb[0].mxu0
      %v742 = vadd.f32 %v400, %v741
      %v743 = vpop.f32.mrb[0].mxu0
      %v744 = vadd.f32 %v396, %v743
      %v745 = vpop.f32.mrb[0].mxu0
      %v746 = vadd.f32 %v400, %v745
      %747 = vmatprep.mubr.bf16.mxu0 0
      %748 = vmatmul.mubr.bf16.gmra.mrb[0].mxu0 %v620
      %v749 = vpop.f32.mrb[0].mxu0
      %v750 = vadd.f32 %v396, %v749
      %v751 = vpop.f32.mrb[0].mxu0
      %v752 = vadd.f32 %v400, %v751
      %v753 = vpop.f32.mrb[0].mxu0
      %v754 = vadd.f32 %v396, %v753
      %v755 = vpop.f32.mrb[0].mxu0
      %v756 = vadd.f32 %v400, %v755
      %757 = vmatprep.mubr.bf16.mxu0 0
      %758 = vmatmul.mubr.bf16.gmra.mrb[0].mxu0 %v623
      %v759 = vpop.f32.mrb[0].mxu0
      %v760 = vadd.f32 %v396, %v759
      %v761 = vpop.f32.mrb[0].mxu0
      %v762 = vadd.f32 %v400, %v761
      %v763 = vpop.f32.mrb[0].mxu0
      %v764 = vadd.f32 %v396, %v763
      %v765 = vpop.f32.mrb[0].mxu0
      %v766 = vadd.f32 %v400, %v765
      %767 = vmatprep.mubr.bf16.mxu0 0
      %768 = vmatmul.mubr.bf16.gmra.mrb[0].mxu0 %v626
      %v769 = vpop.f32.mrb[0].mxu0
      %v770 = vadd.f32 %v396, %v769
      %v771 = vpop.f32.mrb[0].mxu0
      %v772 = vadd.f32 %v400, %v771
      %v773 = vpop.f32.mrb[0].mxu0
      %v774 = vadd.f32 %v396, %v773
      %v775 = vpop.f32.mrb[0].mxu0
      %v776 = vadd.f32 %v400, %v775
      %777 = vmatprep.mubr.bf16.mxu0 0
      %778 = vmatmul.mubr.bf16.gmra.mrb[0].mxu0 %v629
      %v779 = vpop.f32.mrb[0].mxu0
      %v780 = vadd.f32 %v396, %v779
      %v781 = vpop.f32.mrb[0].mxu0
      %v782 = vadd.f32 %v400, %v781
      %v783 = vpop.f32.mrb[0].mxu0
      %v784 = vadd.f32 %v396, %v783
      %v785 = vpop.f32.mrb[0].mxu0
      %v786 = vadd.f32 %v400, %v785
      %787 = vmatprep.mubr.bf16.mxu0 0
      %788 = vmatmul.mubr.bf16.gmra.mrb[0].mxu0 %v632
      %v789 = vpop.f32.mrb[0].mxu0
      %v790 = vadd.f32 %v396, %v789
      %v791 = vpop.f32.mrb[0].mxu0
      %v792 = vadd.f32 %v400, %v791
      %v793 = vpop.f32.mrb[0].mxu0
      %v794 = vadd.f32 %v396, %v793
      %v795 = vpop.f32.mrb[0].mxu0
      %v796 = vadd.f32 %v400, %v795
      %797 = vmatprep.mubr.bf16.mxu0 0
      %798 = vmatmul.mubr.bf16.gmra.mrb[0].mxu0 %v635
      %v799 = vpop.f32.mrb[0].mxu0
      %v800 = vadd.f32 %v396, %v799
      %v801 = vpop.f32.mrb[0].mxu0
      %v802 = vadd.f32 %v400, %v801
      %v803 = vpop.f32.mrb[0].mxu0
      %v804 = vadd.f32 %v396, %v803
      %v805 = vpop.f32.mrb[0].mxu0
      %v806 = vadd.f32 %v400, %v805
      %807 = vmatprep.mubr.bf16.mxu0 0
      %808 = vmatmul.mubr.bf16.gmra.mrb[0].mxu0 %v638
      %v809 = vpop.f32.mrb[0].mxu0
      %v810 = vadd.f32 %v396, %v809
      %v811 = vpop.f32.mrb[0].mxu0
      %v812 = vadd.f32 %v400, %v811
      %v813 = vpop.f32.mrb[0].mxu0
      %v814 = vadd.f32 %v396, %v813
      %v815 = vpop.f32.mrb[0].mxu0
      %v816 = vadd.f32 %v400, %v815
      %817 = vmatprep.mubr.bf16.mxu0 0
      %818 = vmatmul.mubr.bf16.gmra.mrb[0].mxu0 %v641
      %v819 = vpop.f32.mrb[0].mxu0
      %v820 = vadd.f32 %v396, %v819
      %v821 = vpop.f32.mrb[0].mxu0
      %v822 = vadd.f32 %v400, %v821
      %v823 = vpop.f32.mrb[0].mxu0
      %v824 = vadd.f32 %v396, %v823
      %v825 = vpop.f32.mrb[0].mxu0
      %v826 = vadd.f32 %v400, %v825
      %827 = vmatprep.mubr.bf16.mxu0 0
      %828 = vmatmul.mubr.bf16.gmra.mrb[0].mxu0 %v644
      %v829 = vpop.f32.mrb[0].mxu0
      %v830 = vadd.f32 %v396, %v829
      %v831 = vpop.f32.mrb[0].mxu0
      %v832 = vadd.f32 %v400, %v831
      %v833 = vpop.f32.mrb[0].mxu0
      %v834 = vadd.f32 %v396, %v833
      %v835 = vpop.f32.mrb[0].mxu0
      %v836 = vadd.f32 %v400, %v835
      %837 = vmatprep.mubr.bf16.mxu0 0
      %838 = vmatmul.mubr.bf16.gmra.mrb[0].mxu0 %v647
      %v839 = vpop.f32.mrb[0].mxu0
      %v840 = vadd.f32 %v396, %v839
      %v841 = vpop.f32.mrb[0].mxu0
      %v842 = vadd.f32 %v400, %v841
      %v843 = vpop.f32.mrb[0].mxu0
      %v844 = vadd.f32 %v396, %v843
      %v845 = vpop.f32.mrb[0].mxu0
      %v846 = vadd.f32 %v400, %v845
      %847 = vmatprep.mubr.bf16.mxu0 0
      %848 = vmatmul.mubr.bf16.gmra.mrb[0].mxu0 %v650
      %v849 = vpop.f32.mrb[0].mxu0
      %v850 = vadd.f32 %v396, %v849
      %v851 = vpop.f32.mrb[0].mxu0
      %v852 = vadd.f32 %v400, %v851
      %v853 = vpop.f32.mrb[0].mxu0
      %v854 = vadd.f32 %v396, %v853
      %v855 = vpop.f32.mrb[0].mxu0
      %v856 = vadd.f32 %v400, %v855
      %857 = vdwg.mxu0
      %858 = vmatprep.subr.bf16.mxu0 %v562
      %859 = vmatpush1.bf16.msra.mxu0 %v561
      %860 = vmatprep.subr.bf16.mxu0 %v566
      %861 = vmatpush1.bf16.msra.mxu0 %v565
      %862 = vmatprep.subr.bf16.mxu0 %v570
      %863 = vmatpush1.bf16.msra.mxu0 %v569
      %864 = vmatprep.subr.bf16.mxu0 %v574
      %865 = vmatpush1.bf16.msra.mxu0 %v573
      %866 = vmatprep.subr.bf16.mxu0 %v578
      %867 = vmatpush1.bf16.msra.mxu0 %v577
      %868 = vmatprep.subr.bf16.mxu0 %v663
      %869 = vmatpush1.bf16.msra.mxu0 %v660
      %870 = vmatprep.subr.bf16.mxu0 0
      %871 = vmatpush1.bf16.msra.mxu0 0
      %872 = vmatprep.subr.bf16.mxu0 0
      %873 = vmatpush1.bf16.msra.mxu0 0
      %874 = vmatprep.subr.bf16.mxu0 0
      %875 = vmatpush1.bf16.msra.mxu0 0
      %876 = vmatprep.subr.bf16.mxu0 0
      %877 = vmatpush1.bf16.msra.mxu0 0
      %878 = vmatprep.subr.bf16.mxu0 0
      %879 = vmatpush1.bf16.msra.mxu0 0
      %880 = vmatprep.subr.bf16.mxu0 0
      %881 = vmatpush1.bf16.msra.mxu0 0
      %882 = vmatprep.subr.bf16.mxu0 0
      %883 = vmatpush1.bf16.msra.mxu0 0
      %884 = vmatprep.subr.bf16.mxu0 0
      %885 = vmatpush1.bf16.msra.mxu0 0
      %886 = vmatprep.subr.bf16.mxu0 0
      %887 = vmatpush1.bf16.msra.mxu0 0
      %888 = vmatprep.subr.bf16.mxu0 0
      %889 = vmatpush1.bf16.msra.mxu0 0
      %890 = vmatprep.mubr.bf16.mxu0 0
      %891 = vmatmul.mubr.bf16.gmra.mrb[0].mxu0 %v605
      %v892 = vpop.f32.mrb[0].mxu0
      %v893 = vadd.f32 %v404, %v892
      %v894 = vpop.f32.mrb[0].mxu0
      %v895 = vadd.f32 %v408, %v894
      %v896 = vpop.f32.mrb[0].mxu0
      %v897 = vadd.f32 %v404, %v896
      %v898 = vpop.f32.mrb[0].mxu0
      %v899 = vadd.f32 %v408, %v898
      %900 = vmatprep.mubr.bf16.mxu0 0
      %901 = vmatmul.mubr.bf16.gmra.mrb[0].mxu0 %v608
      %v902 = vpop.f32.mrb[0].mxu0
      %v903 = vadd.f32 %v404, %v902
      %v904 = vpop.f32.mrb[0].mxu0
      %v905 = vadd.f32 %v408, %v904
      %v906 = vpop.f32.mrb[0].mxu0
      %v907 = vadd.f32 %v404, %v906
      %v908 = vpop.f32.mrb[0].mxu0
      %v909 = vadd.f32 %v408, %v908
      %910 = vmatprep.mubr.bf16.mxu0 0
      %911 = vmatmul.mubr.bf16.gmra.mrb[0].mxu0 %v611
      %v912 = vpop.f32.mrb[0].mxu0
      %v913 = vadd.f32 %v404, %v912
      %v914 = vpop.f32.mrb[0].mxu0
      %v915 = vadd.f32 %v408, %v914
      %v916 = vpop.f32.mrb[0].mxu0
      %v917 = vadd.f32 %v404, %v916
      %v918 = vpop.f32.mrb[0].mxu0
      %v919 = vadd.f32 %v408, %v918
      %920 = vmatprep.mubr.bf16.mxu0 0
      %921 = vmatmul.mubr.bf16.gmra.mrb[0].mxu0 %v614
      %v922 = vpop.f32.mrb[0].mxu0
      %v923 = vadd.f32 %v404, %v922
      %v924 = vpop.f32.mrb[0].mxu0
      %v925 = vadd.f32 %v408, %v924
      %v926 = vpop.f32.mrb[0].mxu0
      %v927 = vadd.f32 %v404, %v926
      %v928 = vpop.f32.mrb[0].mxu0
      %v929 = vadd.f32 %v408, %v928
      %930 = vmatprep.mubr.bf16.mxu0 0
      %931 = vmatmul.mubr.bf16.gmra.mrb[0].mxu0 %v617
      %v932 = vpop.f32.mrb[0].mxu0
      %v933 = vadd.f32 %v404, %v932
      %v934 = vpop.f32.mrb[0].mxu0
      %v935 = vadd.f32 %v408, %v934
      %v936 = vpop.f32.mrb[0].mxu0
      %v937 = vadd.f32 %v404, %v936
      %v938 = vpop.f32.mrb[0].mxu0
      %v939 = vadd.f32 %v408, %v938
      %940 = vmatprep.mubr.bf16.mxu0 0
      %941 = vmatmul.mubr.bf16.gmra.mrb[0].mxu0 %v620
      %v942 = vpop.f32.mrb[0].mxu0
      %v943 = vadd.f32 %v404, %v942
      %v944 = vpop.f32.mrb[0].mxu0
      %v945 = vadd.f32 %v408, %v944
      %v946 = vpop.f32.mrb[0].mxu0
      %v947 = vadd.f32 %v404, %v946
      %v948 = vpop.f32.mrb[0].mxu0
      %v949 = vadd.f32 %v408, %v948
      %950 = vmatprep.mubr.bf16.mxu0 0
      %951 = vmatmul.mubr.bf16.gmra.mrb[0].mxu0 %v623
      %v952 = vpop.f32.mrb[0].mxu0
      %v953 = vadd.f32 %v404, %v952
      %v954 = vpop.f32.mrb[0].mxu0
      %v955 = vadd.f32 %v408, %v954
      %v956 = vpop.f32.mrb[0].mxu0
      %v957 = vadd.f32 %v404, %v956
      %v958 = vpop.f32.mrb[0].mxu0
      %v959 = vadd.f32 %v408, %v958
      %960 = vmatprep.mubr.bf16.mxu0 0
      %961 = vmatmul.mubr.bf16.gmra.mrb[0].mxu0 %v626
      %v962 = vpop.f32.mrb[0].mxu0
      %v963 = vadd.f32 %v404, %v962
      %v964 = vpop.f32.mrb[0].mxu0
      %v965 = vadd.f32 %v408, %v964
      %v966 = vpop.f32.mrb[0].mxu0
      %v967 = vadd.f32 %v404, %v966
      %v968 = vpop.f32.mrb[0].mxu0
      %v969 = vadd.f32 %v408, %v968
      %970 = vmatprep.mubr.bf16.mxu0 0
      %971 = vmatmul.mubr.bf16.gmra.mrb[0].mxu0 %v629
      %v972 = vpop.f32.mrb[0].mxu0
      %v973 = vadd.f32 %v404, %v972
      %v974 = vpop.f32.mrb[0].mxu0
      %v975 = vadd.f32 %v408, %v974
      %v976 = vpop.f32.mrb[0].mxu0
      %v977 = vadd.f32 %v404, %v976
      %v978 = vpop.f32.mrb[0].mxu0
      %v979 = vadd.f32 %v408, %v978
      %980 = vmatprep.mubr.bf16.mxu0 0
      %981 = vmatmul.mubr.bf16.gmra.mrb[0].mxu0 %v632
      %v982 = vpop.f32.mrb[0].mxu0
      %v983 = vadd.f32 %v404, %v982
      %v984 = vpop.f32.mrb[0].mxu0
      %v985 = vadd.f32 %v408, %v984
      %v986 = vpop.f32.mrb[0].mxu0
      %v987 = vadd.f32 %v404, %v986
      %v988 = vpop.f32.mrb[0].mxu0
      %v989 = vadd.f32 %v408, %v988
      %990 = vmatprep.mubr.bf16.mxu0 0
      %991 = vmatmul.mubr.bf16.gmra.mrb[0].mxu0 %v635
      %v992 = vpop.f32.mrb[0].mxu0
      %v993 = vadd.f32 %v404, %v992
      %v994 = vpop.f32.mrb[0].mxu0
      %v995 = vadd.f32 %v408, %v994
      %v996 = vpop.f32.mrb[0].mxu0
      %v997 = vadd.f32 %v404, %v996
      %v998 = vpop.f32.mrb[0].mxu0
      %v999 = vadd.f32 %v408, %v998
      %1000 = vmatprep.mubr.bf16.mxu0 0
      %1001 = vmatmul.mubr.bf16.gmra.mrb[0].mxu0 %v638
      %v1002 = vpop.f32.mrb[0].mxu0
      %v1003 = vadd.f32 %v404, %v1002
      %v1004 = vpop.f32.mrb[0].mxu0
      %v1005 = vadd.f32 %v408, %v1004
      %v1006 = vpop.f32.mrb[0].mxu0
      %v1007 = vadd.f32 %v404, %v1006
      %v1008 = vpop.f32.mrb[0].mxu0
      %v1009 = vadd.f32 %v408, %v1008
      %1010 = vmatprep.mubr.bf16.mxu0 0
      %1011 = vmatmul.mubr.bf16.gmra.mrb[0].mxu0 %v641
      %v1012 = vpop.f32.mrb[0].mxu0
      %v1013 = vadd.f32 %v404, %v1012
      %v1014 = vpop.f32.mrb[0].mxu0
      %v1015 = vadd.f32 %v408, %v1014
      %v1016 = vpop.f32.mrb[0].mxu0
      %v1017 = vadd.f32 %v404, %v1016
      %v1018 = vpop.f32.mrb[0].mxu0
      %v1019 = vadd.f32 %v408, %v1018
      %1020 = vmatprep.mubr.bf16.mxu0 0
      %1021 = vmatmul.mubr.bf16.gmra.mrb[0].mxu0 %v644
      %v1022 = vpop.f32.mrb[0].mxu0
      %v1023 = vadd.f32 %v404, %v1022
      %v1024 = vpop.f32.mrb[0].mxu0
      %v1025 = vadd.f32 %v408, %v1024
      %v1026 = vpop.f32.mrb[0].mxu0
      %v1027 = vadd.f32 %v404, %v1026
      %v1028 = vpop.f32.mrb[0].mxu0
      %v1029 = vadd.f32 %v408, %v1028
      %1030 = vmatprep.mubr.bf16.mxu0 0
      %1031 = vmatmul.mubr.bf16.gmra.mrb[0].mxu0 %v647
      %v1032 = vpop.f32.mrb[0].mxu0
      %v1033 = vadd.f32 %v404, %v1032
      %v1034 = vpop.f32.mrb[0].mxu0
      %v1035 = vadd.f32 %v408, %v1034
      %v1036 = vpop.f32.mrb[0].mxu0
      %v1037 = vadd.f32 %v404, %v1036
      %v1038 = vpop.f32.mrb[0].mxu0
      %v1039 = vadd.f32 %v408, %v1038
      %1040 = vmatprep.mubr.bf16.mxu0 0
      %1041 = vmatmul.mubr.bf16.gmra.mrb[0].mxu0 %v650
      %v1042 = vpop.f32.mrb[0].mxu0
      %v1043 = vadd.f32 %v404, %v1042
      %v1044 = vpop.f32.mrb[0].mxu0
      %v1045 = vadd.f32 %v408, %v1044
      %v1046 = vpop.f32.mrb[0].mxu0
      %v1047 = vadd.f32 %v404, %v1046
      %v1048 = vpop.f32.mrb[0].mxu0
      %v1049 = vadd.f32 %v408, %v1048
      %1050 = vdwg.mxu0
      %v1051 = vmax.f32 %v700, 0.0
      %v1052 = vmax.f32 %v702, 0.0
      %v1053 = vmax.f32 %v893, 0.0
      %v1054 = vmax.f32 %v895, 0.0
      %v1055 = vmax.f32 %v704, 0.0
      %v1056 = vmax.f32 %v706, 0.0
      %v1057 = vmax.f32 %v897, 0.0
      %v1058 = vmax.f32 %v899, 0.0
      %v1059 = vmax.f32 %v710, 0.0
      %v1060 = vmax.f32 %v712, 0.0
      %v1061 = vmax.f32 %v903, 0.0
      %v1062 = vmax.f32 %v905, 0.0
      %v1063 = vmax.f32 %v714, 0.0
      %v1064 = vmax.f32 %v716, 0.0
      %v1065 = vmax.f32 %v907, 0.0
      %v1066 = vmax.f32 %v909, 0.0
      %v1067 = vmax.f32 %v720, 0.0
      %v1068 = vmax.f32 %v722, 0.0
      %v1069 = vmax.f32 %v913, 0.0
      %v1070 = vmax.f32 %v915, 0.0
      %v1071 = vmax.f32 %v724, 0.0
      %v1072 = vmax.f32 %v726, 0.0
      %v1073 = vmax.f32 %v917, 0.0
      %v1074 = vmax.f32 %v919, 0.0
      %v1075 = vmax.f32 %v730, 0.0
      %v1076 = vmax.f32 %v732, 0.0
      %v1077 = vmax.f32 %v923, 0.0
      %v1078 = vmax.f32 %v925, 0.0
      %v1079 = vmax.f32 %v734, 0.0
      %v1080 = vmax.f32 %v736, 0.0
      %v1081 = vmax.f32 %v927, 0.0
      %v1082 = vmax.f32 %v929, 0.0
      %v1083 = vmax.f32 %v740, 0.0
      %v1084 = vmax.f32 %v742, 0.0
      %v1085 = vmax.f32 %v933, 0.0
      %v1086 = vmax.f32 %v935, 0.0
      %v1087 = vmax.f32 %v744, 0.0
      %v1088 = vmax.f32 %v746, 0.0
      %v1089 = vmax.f32 %v937, 0.0
      %v1090 = vmax.f32 %v939, 0.0
      %v1091 = vmax.f32 %v750, 0.0
      %v1092 = vmax.f32 %v752, 0.0
      %v1093 = vmax.f32 %v943, 0.0
      %v1094 = vmax.f32 %v945, 0.0
      %v1095 = vmax.f32 %v754, 0.0
      %v1096 = vmax.f32 %v756, 0.0
      %v1097 = vmax.f32 %v947, 0.0
      %v1098 = vmax.f32 %v949, 0.0
      %v1099 = vmax.f32 %v760, 0.0
      %v1100 = vmax.f32 %v762, 0.0
      %v1101 = vmax.f32 %v953, 0.0
      %v1102 = vmax.f32 %v955, 0.0
      %v1103 = vmax.f32 %v764, 0.0
      %v1104 = vmax.f32 %v766, 0.0
      %v1105 = vmax.f32 %v957, 0.0
      %v1106 = vmax.f32 %v959, 0.0
      %v1107 = vmax.f32 %v770, 0.0
      %v1108 = vmax.f32 %v772, 0.0
      %v1109 = vmax.f32 %v963, 0.0
      %v1110 = vmax.f32 %v965, 0.0
      %v1111 = vmax.f32 %v774, 0.0
      %v1112 = vmax.f32 %v776, 0.0
      %v1113 = vmax.f32 %v967, 0.0
      %v1114 = vmax.f32 %v969, 0.0
      %v1115 = vmax.f32 %v780, 0.0
      %v1116 = vmax.f32 %v782, 0.0
      %v1117 = vmax.f32 %v973, 0.0
      %v1118 = vmax.f32 %v975, 0.0
      %v1119 = vmax.f32 %v784, 0.0
      %v1120 = vmax.f32 %v786, 0.0
      %v1121 = vmax.f32 %v977, 0.0
      %v1122 = vmax.f32 %v979, 0.0
      %v1123 = vmax.f32 %v790, 0.0
      %v1124 = vmax.f32 %v792, 0.0
      %v1125 = vmax.f32 %v983, 0.0
      %v1126 = vmax.f32 %v985, 0.0
      %v1127 = vmax.f32 %v794, 0.0
      %v1128 = vmax.f32 %v796, 0.0
      %v1129 = vmax.f32 %v987, 0.0
      %v1130 = vmax.f32 %v989, 0.0
      %v1131 = vmax.f32 %v800, 0.0
      %v1132 = vmax.f32 %v802, 0.0
      %v1133 = vmax.f32 %v993, 0.0
      %v1134 = vmax.f32 %v995, 0.0
      %v1135 = vmax.f32 %v804, 0.0
      %v1136 = vmax.f32 %v806, 0.0
      %v1137 = vmax.f32 %v997, 0.0
      %v1138 = vmax.f32 %v999, 0.0
      %v1139 = vmax.f32 %v810, 0.0
      %v1140 = vmax.f32 %v812, 0.0
      %v1141 = vmax.f32 %v1003, 0.0
      %v1142 = vmax.f32 %v1005, 0.0
      %v1143 = vmax.f32 %v814, 0.0
      %v1144 = vmax.f32 %v816, 0.0
      %v1145 = vmax.f32 %v1007, 0.0
      %v1146 = vmax.f32 %v1009, 0.0
      %v1147 = vmax.f32 %v820, 0.0
      %v1148 = vmax.f32 %v822, 0.0
      %v1149 = vmax.f32 %v1013, 0.0
      %v1150 = vmax.f32 %v1015, 0.0
      %v1151 = vmax.f32 %v824, 0.0
      %v1152 = vmax.f32 %v826, 0.0
      %v1153 = vmax.f32 %v1017, 0.0
      %v1154 = vmax.f32 %v1019, 0.0
      %v1155 = vmax.f32 %v830, 0.0
      %v1156 = vmax.f32 %v832, 0.0
      %v1157 = vmax.f32 %v1023, 0.0
      %v1158 = vmax.f32 %v1025, 0.0
      %v1159 = vmax.f32 %v834, 0.0
      %v1160 = vmax.f32 %v836, 0.0
      %v1161 = vmax.f32 %v1027, 0.0
      %v1162 = vmax.f32 %v1029, 0.0
      %v1163 = vmax.f32 %v840, 0.0
      %v1164 = vmax.f32 %v842, 0.0
      %v1165 = vmax.f32 %v1033, 0.0
      %v1166 = vmax.f32 %v1035, 0.0
      %v1167 = vmax.f32 %v844, 0.0
      %v1168 = vmax.f32 %v846, 0.0
      %v1169 = vmax.f32 %v1037, 0.0
      %v1170 = vmax.f32 %v1039, 0.0
      %v1171 = vmax.f32 %v850, 0.0
      %v1172 = vmax.f32 %v852, 0.0
      %v1173 = vmax.f32 %v1043, 0.0
      %v1174 = vmax.f32 %v1045, 0.0
      %v1175 = vmax.f32 %v854, 0.0
      %v1176 = vmax.f32 %v856, 0.0
      %v1177 = vmax.f32 %v1047, 0.0
      %v1178 = vmax.f32 %v1049, 0.0
      %v1179 = vpack.c.bf16 %v1055, %v1051
      %v1180 = vpack.c.bf16 %v1056, %v1052
      %v1181 = vpack.c.bf16 %v1057, %v1053
      %v1182 = vpack.c.bf16 %v1058, %v1054
      %v1183 = vpack.c.bf16 %v1063, %v1059
      %v1184 = vpack.c.bf16 %v1064, %v1060
      %v1185 = vpack.c.bf16 %v1065, %v1061
      %v1186 = vpack.c.bf16 %v1066, %v1062
      %v1187 = vpack.c.bf16 %v1071, %v1067
      %v1188 = vpack.c.bf16 %v1072, %v1068
      %v1189 = vpack.c.bf16 %v1073, %v1069
      %v1190 = vpack.c.bf16 %v1074, %v1070
      %v1191 = vpack.c.bf16 %v1079, %v1075
      %v1192 = vpack.c.bf16 %v1080, %v1076
      %v1193 = vpack.c.bf16 %v1081, %v1077
      %v1194 = vpack.c.bf16 %v1082, %v1078
      %v1195 = vpack.c.bf16 %v1087, %v1083
      %v1196 = vpack.c.bf16 %v1088, %v1084
      %v1197 = vpack.c.bf16 %v1089, %v1085
      %v1198 = vpack.c.bf16 %v1090, %v1086
      %v1199 = vpack.c.bf16 %v1095, %v1091
      %v1200 = vpack.c.bf16 %v1096, %v1092
      %v1201 = vpack.c.bf16 %v1097, %v1093
      %v1202 = vpack.c.bf16 %v1098, %v1094
      %v1203 = vpack.c.bf16 %v1103, %v1099
      %v1204 = vpack.c.bf16 %v1104, %v1100
      %v1205 = vpack.c.bf16 %v1105, %v1101
      %v1206 = vpack.c.bf16 %v1106, %v1102
      %v1207 = vpack.c.bf16 %v1111, %v1107
      %v1208 = vpack.c.bf16 %v1112, %v1108
      %v1209 = vpack.c.bf16 %v1113, %v1109
      %v1210 = vpack.c.bf16 %v1114, %v1110
      %v1211 = vpack.c.bf16 %v1119, %v1115
      %v1212 = vpack.c.bf16 %v1120, %v1116
      %v1213 = vpack.c.bf16 %v1121, %v1117
      %v1214 = vpack.c.bf16 %v1122, %v1118
      %v1215 = vpack.c.bf16 %v1127, %v1123
      %v1216 = vpack.c.bf16 %v1128, %v1124
      %v1217 = vpack.c.bf16 %v1129, %v1125
      %v1218 = vpack.c.bf16 %v1130, %v1126
      %v1219 = vpack.c.bf16 %v1135, %v1131
      %v1220 = vpack.c.bf16 %v1136, %v1132
      %v1221 = vpack.c.bf16 %v1137, %v1133
      %v1222 = vpack.c.bf16 %v1138, %v1134
      %v1223 = vpack.c.bf16 %v1143, %v1139
      %v1224 = vpack.c.bf16 %v1144, %v1140
      %v1225 = vpack.c.bf16 %v1145, %v1141
      %v1226 = vpack.c.bf16 %v1146, %v1142
      %v1227 = vpack.c.bf16 %v1151, %v1147
      %v1228 = vpack.c.bf16 %v1152, %v1148
      %v1229 = vpack.c.bf16 %v1153, %v1149
      %v1230 = vpack.c.bf16 %v1154, %v1150
      %v1231 = vpack.c.bf16 %v1159, %v1155
      %v1232 = vpack.c.bf16 %v1160, %v1156
      %v1233 = vpack.c.bf16 %v1161, %v1157
      %v1234 = vpack.c.bf16 %v1162, %v1158
      %v1235 = vpack.c.bf16 %v1167, %v1163
      %v1236 = vpack.c.bf16 %v1168, %v1164
      %v1237 = vpack.c.bf16 %v1169, %v1165
      %v1238 = vpack.c.bf16 %v1170, %v1166
      %v1239 = vpack.c.bf16 %v1175, %v1171
      %v1240 = vpack.c.bf16 %v1176, %v1172
      %v1241 = vpack.c.bf16 %v1177, %v1173
      %v1242 = vpack.c.bf16 %v1178, %v1174
      %v1243 = vld [vmem:[%s3] sm:$0xff]
      %v1244 = vld [vmem:[%s3 + $0x8] sm:$0xff]
      %v1245 = vld [vmem:[%s3 + $0x10] sm:$0xff]
      %v1246 = vld [vmem:[%s3 + $0x18] sm:$0xff]
      %v1247 = vld [vmem:[%s3 + $0x20] sm:$0xff]
      %v1248 = vld [vmem:[%s3 + $0x28] sm:$0xff]
      %v1249 = vld [vmem:[%s3 + $0x30] sm:$0xff]
      %v1250 = vld [vmem:[%s3 + $0x38] sm:$0xff]
      %v1251 = vld [vmem:[%s3 + $0x40] sm:$0xff]
      %v1252 = vld [vmem:[%s3 + $0x48] sm:$0xff]
      %v1253 = vld [vmem:[%s3 + $0x50] sm:$0xff]
      %v1254 = vld [vmem:[%s3 + $0x58] sm:$0xff]
      %v1255 = vld [vmem:[%s3 + $0x60] sm:$0xff]
      %v1256 = vld [vmem:[%s3 + $0x68] sm:$0xff]
      %v1257 = vld [vmem:[%s3 + $0x70] sm:$0xff]
      %v1258 = vld [vmem:[%s3 + $0x78] sm:$0xff]
      %v1259 = vld [vmem:[%s3 + $0x80] sm:$0xff]
      %v1260 = vld [vmem:[%s3 + $0x88] sm:$0xff]
      %v1261 = vld [vmem:[%s3 + $0x90] sm:$0xff]
      %v1262 = vld [vmem:[%s3 + $0x98] sm:$0xff]
      %v1263 = vld [vmem:[%s3 + $0xa0] sm:$0xff]
      %v1264 = vld [vmem:[%s3 + $0xa8] sm:$0xff]
      %v1265 = vld [vmem:[%s3 + $0xb0] sm:$0xff]
      %v1266 = vld [vmem:[%s3 + $0xb8] sm:$0xff]
      %v1267 = vld [vmem:[%s3 + $0xc0] sm:$0xff]
      %v1268 = vld [vmem:[%s3 + $0xc8] sm:$0xff]
      %v1269 = vld [vmem:[%s3 + $0xd0] sm:$0xff]
      %v1270 = vld [vmem:[%s3 + $0xd8] sm:$0xff]
      %v1271 = vld [vmem:[%s3 + $0xe0] sm:$0xff]
      %v1272 = vld [vmem:[%s3 + $0xe8] sm:$0xff]
      %v1273 = vld [vmem:[%s3 + $0xf0] sm:$0xff]
      %v1274 = vld [vmem:[%s3 + $0xf8] sm:$0xff]
      %v1275 = vld [vmem:[%s3 + $0x100] sm:$0xff]
      %v1276 = vld [vmem:[%s3 + $0x108] sm:$0xff]
      %v1277 = vld [vmem:[%s3 + $0x110] sm:$0xff]
      %v1278 = vld [vmem:[%s3 + $0x118] sm:$0xff]
      %v1279 = vld [vmem:[%s3 + $0x120] sm:$0xff]
      %v1280 = vld [vmem:[%s3 + $0x128] sm:$0xff]
      %v1281 = vld [vmem:[%s3 + $0x130] sm:$0xff]
      %v1282 = vld [vmem:[%s3 + $0x138] sm:$0xff]
      %v1283 = vld [vmem:[%s3 + $0x140] sm:$0xff]
      %v1284 = vld [vmem:[%s3 + $0x148] sm:$0xff]
      %v1285 = vld [vmem:[%s3 + $0x150] sm:$0xff]
      %v1286 = vld [vmem:[%s3 + $0x158] sm:$0xff]
      %v1287 = vld [vmem:[%s3 + $0x160] sm:$0xff]
      %v1288 = vld [vmem:[%s3 + $0x168] sm:$0xff]
      %v1289 = vld [vmem:[%s3 + $0x170] sm:$0xff]
      %v1290 = vld [vmem:[%s3 + $0x178] sm:$0xff]
      %v1291 = vld [vmem:[%s3 + $0x180] sm:$0xff]
      %v1292 = vld [vmem:[%s3 + $0x188] sm:$0xff]
      %v1293 = vld [vmem:[%s3 + $0x190] sm:$0xff]
      %v1294 = vld [vmem:[%s3 + $0x198] sm:$0xff]
      %v1295 = vld [vmem:[%s3 + $0x1a0] sm:$0xff]
      %v1296 = vld [vmem:[%s3 + $0x1a8] sm:$0xff]
      %v1297 = vld [vmem:[%s3 + $0x1b0] sm:$0xff]
      %v1298 = vld [vmem:[%s3 + $0x1b8] sm:$0xff]
      %v1299 = vld [vmem:[%s3 + $0x1c0] sm:$0xff]
      %v1300 = vld [vmem:[%s3 + $0x1c8] sm:$0xff]
      %v1301 = vld [vmem:[%s3 + $0x1d0] sm:$0xff]
      %v1302 = vld [vmem:[%s3 + $0x1d8] sm:$0xff]
      %v1303 = vld [vmem:[%s3 + $0x1e0] sm:$0xff]
      %v1304 = vld [vmem:[%s3 + $0x1e8] sm:$0xff]
      %v1305 = vld [vmem:[%s3 + $0x1f0] sm:$0xff]
      %v1306 = vld [vmem:[%s3 + $0x1f8] sm:$0xff]
      %v1307 = vld [vmem:[%s3 + $0x200] sm:$0xff]
      %v1308 = vld [vmem:[%s3 + $0x208] sm:$0xff]
      %v1309 = vld [vmem:[%s3 + $0x210] sm:$0xff]
      %v1310 = vld [vmem:[%s3 + $0x218] sm:$0xff]
      %v1311 = vld [vmem:[%s3 + $0x220] sm:$0xff]
      %v1312 = vld [vmem:[%s3 + $0x228] sm:$0xff]
      %v1313 = vld [vmem:[%s3 + $0x230] sm:$0xff]
      %v1314 = vld [vmem:[%s3 + $0x238] sm:$0xff]
      %v1315 = vld [vmem:[%s3 + $0x240] sm:$0xff]
      %v1316 = vld [vmem:[%s3 + $0x248] sm:$0xff]
      %v1317 = vld [vmem:[%s3 + $0x250] sm:$0xff]
      %v1318 = vld [vmem:[%s3 + $0x258] sm:$0xff]
      %v1319 = vld [vmem:[%s3 + $0x260] sm:$0xff]
      %v1320 = vld [vmem:[%s3 + $0x268] sm:$0xff]
      %v1321 = vld [vmem:[%s3 + $0x270] sm:$0xff]
      %v1322 = vld [vmem:[%s3 + $0x278] sm:$0xff]
      %v1323 = vld [vmem:[%s3 + $0x280] sm:$0xff]
      %v1324 = vld [vmem:[%s3 + $0x288] sm:$0xff]
      %v1325 = vld [vmem:[%s3 + $0x290] sm:$0xff]
      %v1326 = vld [vmem:[%s3 + $0x298] sm:$0xff]
      %v1327 = vld [vmem:[%s3 + $0x2a0] sm:$0xff]
      %v1328 = vld [vmem:[%s3 + $0x2a8] sm:$0xff]
      %v1329 = vld [vmem:[%s3 + $0x2b0] sm:$0xff]
      %v1330 = vld [vmem:[%s3 + $0x2b8] sm:$0xff]
      %v1331 = vld [vmem:[%s3 + $0x2c0] sm:$0xff]
      %v1332 = vld [vmem:[%s3 + $0x2c8] sm:$0xff]
      %v1333 = vld [vmem:[%s3 + $0x2d0] sm:$0xff]
      %v1334 = vld [vmem:[%s3 + $0x2d8] sm:$0xff]
      %v1335 = vld [vmem:[%s3 + $0x2e0] sm:$0xff]
      %v1336 = vld [vmem:[%s3 + $0x2e8] sm:$0xff]
      %v1337 = vld [vmem:[%s3 + $0x2f0] sm:$0xff]
      %v1338 = vld [vmem:[%s3 + $0x2f8] sm:$0xff]
      %v1339 = vld [vmem:[%s3 + $0x300] sm:$0xff]
      %v1340 = vld [vmem:[%s3 + $0x308] sm:$0xff]
      %v1341 = vld [vmem:[%s3 + $0x310] sm:$0xff]
      %v1342 = vld [vmem:[%s3 + $0x318] sm:$0xff]
      %v1343 = vld [vmem:[%s3 + $0x320] sm:$0xff]
      %v1344 = vld [vmem:[%s3 + $0x328] sm:$0xff]
      %v1345 = vld [vmem:[%s3 + $0x330] sm:$0xff]
      %v1346 = vld [vmem:[%s3 + $0x338] sm:$0xff]
      %v1347 = vld [vmem:[%s3 + $0x340] sm:$0xff]
      %v1348 = vld [vmem:[%s3 + $0x348] sm:$0xff]
      %v1349 = vld [vmem:[%s3 + $0x350] sm:$0xff]
      %v1350 = vld [vmem:[%s3 + $0x358] sm:$0xff]
      %v1351 = vld [vmem:[%s3 + $0x360] sm:$0xff]
      %v1352 = vld [vmem:[%s3 + $0x368] sm:$0xff]
      %v1353 = vld [vmem:[%s3 + $0x370] sm:$0xff]
      %v1354 = vld [vmem:[%s3 + $0x378] sm:$0xff]
      %v1355 = vld [vmem:[%s3 + $0x380] sm:$0xff]
      %v1356 = vld [vmem:[%s3 + $0x388] sm:$0xff]
      %v1357 = vld [vmem:[%s3 + $0x390] sm:$0xff]
      %v1358 = vld [vmem:[%s3 + $0x398] sm:$0xff]
      %v1359 = vld [vmem:[%s3 + $0x3a0] sm:$0xff]
      %v1360 = vld [vmem:[%s3 + $0x3a8] sm:$0xff]
      %v1361 = vld [vmem:[%s3 + $0x3b0] sm:$0xff]
      %v1362 = vld [vmem:[%s3 + $0x3b8] sm:$0xff]
      %v1363 = vld [vmem:[%s3 + $0x3c0] sm:$0xff]
      %v1364 = vld [vmem:[%s3 + $0x3c8] sm:$0xff]
      %v1365 = vld [vmem:[%s3 + $0x3d0] sm:$0xff]
      %v1366 = vld [vmem:[%s3 + $0x3d8] sm:$0xff]
      %v1367 = vld [vmem:[%s3 + $0x3e0] sm:$0xff]
      %v1368 = vld [vmem:[%s3 + $0x3e8] sm:$0xff]
      %v1369 = vld [vmem:[%s3 + $0x3f0] sm:$0xff]
      %v1370 = vld [vmem:[%s3 + $0x3f8] sm:$0xff]
      %v1371 = vld [vmem:[%s4] sm:$0xf]
      %v1373 = vlaneseq
      %v1374 = vshrl.u32 %v1373, 7
      %v1375 = vsub.s32 0, %v1374
      %v1376 = vrot.slane %v1371, %v1375
      %v1377 = vlaneseq
      %v1378 = vshrl.u32 %v1377, 7
      %v1379 = vsub.s32 1, %v1378
      %v1380 = vrot.slane %v1371, %v1379
      %v1381 = vlaneseq
      %v1382 = vshrl.u32 %v1381, 7
      %v1383 = vsub.s32 2, %v1382
      %v1384 = vrot.slane %v1371, %v1383
      %v1385 = vlaneseq
      %v1386 = vshrl.u32 %v1385, 7
      %v1387 = vsub.s32 3, %v1386
      %v1388 = vrot.slane %v1371, %v1387
      %v1521 = vunpack.c.l.b16 %v1243
      %v1522 = vunpack.c.h.b16 %v1243
      %v1523 = vunpack.c.l.b16 %v1244
      %v1524 = vunpack.c.h.b16 %v1244
      %v1525 = vunpack.c.l.b16 %v1245
      %v1526 = vunpack.c.h.b16 %v1245
      %v1527 = vunpack.c.l.b16 %v1246
      %v1528 = vunpack.c.h.b16 %v1246
      %v1529 = vunpack.c.l.b16 %v1247
      %v1530 = vunpack.c.h.b16 %v1247
      %v1531 = vunpack.c.l.b16 %v1248
      %v1532 = vunpack.c.h.b16 %v1248
      %v1533 = vunpack.c.l.b16 %v1249
      %v1534 = vunpack.c.h.b16 %v1249
      %v1535 = vunpack.c.l.b16 %v1250
      %v1536 = vunpack.c.h.b16 %v1250
      %v1537 = vunpack.c.l.b16 %v1251
      %v1538 = vunpack.c.h.b16 %v1251
      %v1539 = vunpack.c.l.b16 %v1252
      %v1540 = vunpack.c.h.b16 %v1252
      %v1541 = vunpack.c.l.b16 %v1253
      %v1542 = vunpack.c.h.b16 %v1253
      %v1543 = vunpack.c.l.b16 %v1254
      %v1544 = vunpack.c.h.b16 %v1254
      %v1545 = vunpack.c.l.b16 %v1255
      %v1546 = vunpack.c.h.b16 %v1255
      %v1547 = vunpack.c.l.b16 %v1256
      %v1548 = vunpack.c.h.b16 %v1256
      %v1549 = vunpack.c.l.b16 %v1257
      %v1550 = vunpack.c.h.b16 %v1257
      %v1551 = vunpack.c.l.b16 %v1258
      %v1552 = vunpack.c.h.b16 %v1258
      %v1553 = vunpack.c.l.b16 %v1259
      %v1554 = vunpack.c.h.b16 %v1259
      %v1555 = vunpack.c.l.b16 %v1260
      %v1556 = vunpack.c.h.b16 %v1260
      %v1557 = vunpack.c.l.b16 %v1261
      %v1558 = vunpack.c.h.b16 %v1261
      %v1559 = vunpack.c.l.b16 %v1262
      %v1560 = vunpack.c.h.b16 %v1262
      %v1561 = vunpack.c.l.b16 %v1263
      %v1562 = vunpack.c.h.b16 %v1263
      %v1563 = vunpack.c.l.b16 %v1264
      %v1564 = vunpack.c.h.b16 %v1264
      %v1565 = vunpack.c.l.b16 %v1265
      %v1566 = vunpack.c.h.b16 %v1265
      %v1567 = vunpack.c.l.b16 %v1266
      %v1568 = vunpack.c.h.b16 %v1266
      %v1569 = vunpack.c.l.b16 %v1267
      %v1570 = vunpack.c.h.b16 %v1267
      %v1571 = vunpack.c.l.b16 %v1268
      %v1572 = vunpack.c.h.b16 %v1268
      %v1573 = vunpack.c.l.b16 %v1269
      %v1574 = vunpack.c.h.b16 %v1269
      %v1575 = vunpack.c.l.b16 %v1270
      %v1576 = vunpack.c.h.b16 %v1270
      %v1577 = vunpack.c.l.b16 %v1271
      %v1578 = vunpack.c.h.b16 %v1271
      %v1579 = vunpack.c.l.b16 %v1272
      %v1580 = vunpack.c.h.b16 %v1272
      %v1581 = vunpack.c.l.b16 %v1273
      %v1582 = vunpack.c.h.b16 %v1273
      %v1583 = vunpack.c.l.b16 %v1274
      %v1584 = vunpack.c.h.b16 %v1274
      %v1585 = vunpack.c.l.b16 %v1275
      %v1586 = vunpack.c.h.b16 %v1275
      %v1587 = vunpack.c.l.b16 %v1276
      %v1588 = vunpack.c.h.b16 %v1276
      %v1589 = vunpack.c.l.b16 %v1277
      %v1590 = vunpack.c.h.b16 %v1277
      %v1591 = vunpack.c.l.b16 %v1278
      %v1592 = vunpack.c.h.b16 %v1278
      %v1593 = vunpack.c.l.b16 %v1279
      %v1594 = vunpack.c.h.b16 %v1279
      %v1595 = vunpack.c.l.b16 %v1280
      %v1596 = vunpack.c.h.b16 %v1280
      %v1597 = vunpack.c.l.b16 %v1281
      %v1598 = vunpack.c.h.b16 %v1281
      %v1599 = vunpack.c.l.b16 %v1282
      %v1600 = vunpack.c.h.b16 %v1282
      %v1601 = vunpack.c.l.b16 %v1283
      %v1602 = vunpack.c.h.b16 %v1283
      %v1603 = vunpack.c.l.b16 %v1284
      %v1604 = vunpack.c.h.b16 %v1284
      %v1605 = vunpack.c.l.b16 %v1285
      %v1606 = vunpack.c.h.b16 %v1285
      %v1607 = vunpack.c.l.b16 %v1286
      %v1608 = vunpack.c.h.b16 %v1286
      %v1609 = vunpack.c.l.b16 %v1287
      %v1610 = vunpack.c.h.b16 %v1287
      %v1611 = vunpack.c.l.b16 %v1288
      %v1612 = vunpack.c.h.b16 %v1288
      %v1613 = vunpack.c.l.b16 %v1289
      %v1614 = vunpack.c.h.b16 %v1289
      %v1615 = vunpack.c.l.b16 %v1290
      %v1616 = vunpack.c.h.b16 %v1290
      %v1617 = vunpack.c.l.b16 %v1291
      %v1618 = vunpack.c.h.b16 %v1291
      %v1619 = vunpack.c.l.b16 %v1292
      %v1620 = vunpack.c.h.b16 %v1292
      %v1621 = vunpack.c.l.b16 %v1293
      %v1622 = vunpack.c.h.b16 %v1293
      %v1623 = vunpack.c.l.b16 %v1294
      %v1624 = vunpack.c.h.b16 %v1294
      %v1625 = vunpack.c.l.b16 %v1295
      %v1626 = vunpack.c.h.b16 %v1295
      %v1627 = vunpack.c.l.b16 %v1296
      %v1628 = vunpack.c.h.b16 %v1296
      %v1629 = vunpack.c.l.b16 %v1297
      %v1630 = vunpack.c.h.b16 %v1297
      %v1631 = vunpack.c.l.b16 %v1298
      %v1632 = vunpack.c.h.b16 %v1298
      %v1633 = vunpack.c.l.b16 %v1299
      %v1634 = vunpack.c.h.b16 %v1299
      %v1635 = vunpack.c.l.b16 %v1300
      %v1636 = vunpack.c.h.b16 %v1300
      %v1637 = vunpack.c.l.b16 %v1301
      %v1638 = vunpack.c.h.b16 %v1301
      %v1639 = vunpack.c.l.b16 %v1302
      %v1640 = vunpack.c.h.b16 %v1302
      %v1641 = vunpack.c.l.b16 %v1303
      %v1642 = vunpack.c.h.b16 %v1303
      %v1643 = vunpack.c.l.b16 %v1304
      %v1644 = vunpack.c.h.b16 %v1304
      %v1645 = vunpack.c.l.b16 %v1305
      %v1646 = vunpack.c.h.b16 %v1305
      %v1647 = vunpack.c.l.b16 %v1306
      %v1648 = vunpack.c.h.b16 %v1306
      %v1649 = vunpack.c.l.b16 %v1307
      %v1650 = vunpack.c.h.b16 %v1307
      %v1651 = vunpack.c.l.b16 %v1308
      %v1652 = vunpack.c.h.b16 %v1308
      %v1653 = vunpack.c.l.b16 %v1309
      %v1654 = vunpack.c.h.b16 %v1309
      %v1655 = vunpack.c.l.b16 %v1310
      %v1656 = vunpack.c.h.b16 %v1310
      %v1657 = vunpack.c.l.b16 %v1311
      %v1658 = vunpack.c.h.b16 %v1311
      %v1659 = vunpack.c.l.b16 %v1312
      %v1660 = vunpack.c.h.b16 %v1312
      %v1661 = vunpack.c.l.b16 %v1313
      %v1662 = vunpack.c.h.b16 %v1313
      %v1663 = vunpack.c.l.b16 %v1314
      %v1664 = vunpack.c.h.b16 %v1314
      %v1665 = vunpack.c.l.b16 %v1315
      %v1666 = vunpack.c.h.b16 %v1315
      %v1667 = vunpack.c.l.b16 %v1316
      %v1668 = vunpack.c.h.b16 %v1316
      %v1669 = vunpack.c.l.b16 %v1317
      %v1670 = vunpack.c.h.b16 %v1317
      %v1671 = vunpack.c.l.b16 %v1318
      %v1672 = vunpack.c.h.b16 %v1318
      %v1673 = vunpack.c.l.b16 %v1319
      %v1674 = vunpack.c.h.b16 %v1319
      %v1675 = vunpack.c.l.b16 %v1320
      %v1676 = vunpack.c.h.b16 %v1320
      %v1677 = vunpack.c.l.b16 %v1321
      %v1678 = vunpack.c.h.b16 %v1321
      %v1679 = vunpack.c.l.b16 %v1322
      %v1680 = vunpack.c.h.b16 %v1322
      %v1681 = vunpack.c.l.b16 %v1323
      %v1682 = vunpack.c.h.b16 %v1323
      %v1683 = vunpack.c.l.b16 %v1324
      %v1684 = vunpack.c.h.b16 %v1324
      %v1685 = vunpack.c.l.b16 %v1325
      %v1686 = vunpack.c.h.b16 %v1325
      %v1687 = vunpack.c.l.b16 %v1326
      %v1688 = vunpack.c.h.b16 %v1326
      %v1689 = vunpack.c.l.b16 %v1327
      %v1690 = vunpack.c.h.b16 %v1327
      %v1691 = vunpack.c.l.b16 %v1328
      %v1692 = vunpack.c.h.b16 %v1328
      %v1693 = vunpack.c.l.b16 %v1329
      %v1694 = vunpack.c.h.b16 %v1329
      %v1695 = vunpack.c.l.b16 %v1330
      %v1696 = vunpack.c.h.b16 %v1330
      %v1697 = vunpack.c.l.b16 %v1331
      %v1698 = vunpack.c.h.b16 %v1331
      %v1699 = vunpack.c.l.b16 %v1332
      %v1700 = vunpack.c.h.b16 %v1332
      %v1701 = vunpack.c.l.b16 %v1333
      %v1702 = vunpack.c.h.b16 %v1333
      %v1703 = vunpack.c.l.b16 %v1334
      %v1704 = vunpack.c.h.b16 %v1334
      %v1705 = vunpack.c.l.b16 %v1335
      %v1706 = vunpack.c.h.b16 %v1335
      %v1707 = vunpack.c.l.b16 %v1336
      %v1708 = vunpack.c.h.b16 %v1336
      %v1709 = vunpack.c.l.b16 %v1337
      %v1710 = vunpack.c.h.b16 %v1337
      %v1711 = vunpack.c.l.b16 %v1338
      %v1712 = vunpack.c.h.b16 %v1338
      %v1713 = vunpack.c.l.b16 %v1339
      %v1714 = vunpack.c.h.b16 %v1339
      %v1715 = vunpack.c.l.b16 %v1340
      %v1716 = vunpack.c.h.b16 %v1340
      %v1717 = vunpack.c.l.b16 %v1341
      %v1718 = vunpack.c.h.b16 %v1341
      %v1719 = vunpack.c.l.b16 %v1342
      %v1720 = vunpack.c.h.b16 %v1342
      %v1721 = vunpack.c.l.b16 %v1343
      %v1722 = vunpack.c.h.b16 %v1343
      %v1723 = vunpack.c.l.b16 %v1344
      %v1724 = vunpack.c.h.b16 %v1344
      %v1725 = vunpack.c.l.b16 %v1345
      %v1726 = vunpack.c.h.b16 %v1345
      %v1727 = vunpack.c.l.b16 %v1346
      %v1728 = vunpack.c.h.b16 %v1346
      %v1729 = vunpack.c.l.b16 %v1347
      %v1730 = vunpack.c.h.b16 %v1347
      %v1731 = vunpack.c.l.b16 %v1348
      %v1732 = vunpack.c.h.b16 %v1348
      %v1733 = vunpack.c.l.b16 %v1349
      %v1734 = vunpack.c.h.b16 %v1349
      %v1735 = vunpack.c.l.b16 %v1350
      %v1736 = vunpack.c.h.b16 %v1350
      %v1737 = vunpack.c.l.b16 %v1351
      %v1738 = vunpack.c.h.b16 %v1351
      %v1739 = vunpack.c.l.b16 %v1352
      %v1740 = vunpack.c.h.b16 %v1352
      %v1741 = vunpack.c.l.b16 %v1353
      %v1742 = vunpack.c.h.b16 %v1353
      %v1743 = vunpack.c.l.b16 %v1354
      %v1744 = vunpack.c.h.b16 %v1354
      %v1745 = vunpack.c.l.b16 %v1355
      %v1746 = vunpack.c.h.b16 %v1355
      %v1747 = vunpack.c.l.b16 %v1356
      %v1748 = vunpack.c.h.b16 %v1356
      %v1749 = vunpack.c.l.b16 %v1357
      %v1750 = vunpack.c.h.b16 %v1357
      %v1751 = vunpack.c.l.b16 %v1358
      %v1752 = vunpack.c.h.b16 %v1358
      %v1753 = vunpack.c.l.b16 %v1359
      %v1754 = vunpack.c.h.b16 %v1359
      %v1755 = vunpack.c.l.b16 %v1360
      %v1756 = vunpack.c.h.b16 %v1360
      %v1757 = vunpack.c.l.b16 %v1361
      %v1758 = vunpack.c.h.b16 %v1361
      %v1759 = vunpack.c.l.b16 %v1362
      %v1760 = vunpack.c.h.b16 %v1362
      %v1761 = vunpack.c.l.b16 %v1363
      %v1762 = vunpack.c.h.b16 %v1363
      %v1763 = vunpack.c.l.b16 %v1364
      %v1764 = vunpack.c.h.b16 %v1364
      %v1765 = vunpack.c.l.b16 %v1365
      %v1766 = vunpack.c.h.b16 %v1365
      %v1767 = vunpack.c.l.b16 %v1366
      %v1768 = vunpack.c.h.b16 %v1366
      %v1769 = vunpack.c.l.b16 %v1367
      %v1770 = vunpack.c.h.b16 %v1367
      %v1771 = vunpack.c.l.b16 %v1368
      %v1772 = vunpack.c.h.b16 %v1368
      %v1773 = vunpack.c.l.b16 %v1369
      %v1774 = vunpack.c.h.b16 %v1369
      %v1775 = vunpack.c.l.b16 %v1370
      %v1776 = vunpack.c.h.b16 %v1370
      %v1777 = vpack.c.b16 %v1525, %v1521
      %v1778 = vpack.c.b16 %v1526, %v1522
      %v1779 = vpack.c.b16 %v1527, %v1523
      %v1780 = vpack.c.b16 %v1528, %v1524
      %v1781 = vpack.c.b16 %v1533, %v1529
      %v1782 = vpack.c.b16 %v1534, %v1530
      %v1783 = vpack.c.b16 %v1535, %v1531
      %v1784 = vpack.c.b16 %v1536, %v1532
      %v1785 = vpack.c.b16 %v1541, %v1537
      %v1786 = vpack.c.b16 %v1542, %v1538
      %v1787 = vpack.c.b16 %v1543, %v1539
      %v1788 = vpack.c.b16 %v1544, %v1540
      %v1789 = vpack.c.b16 %v1549, %v1545
      %v1790 = vpack.c.b16 %v1550, %v1546
      %v1791 = vpack.c.b16 %v1551, %v1547
      %v1792 = vpack.c.b16 %v1552, %v1548
      %v1793 = vpack.c.b16 %v1557, %v1553
      %v1794 = vpack.c.b16 %v1558, %v1554
      %v1795 = vpack.c.b16 %v1559, %v1555
      %v1796 = vpack.c.b16 %v1560, %v1556
      %v1797 = vpack.c.b16 %v1565, %v1561
      %v1798 = vpack.c.b16 %v1566, %v1562
      %v1799 = vpack.c.b16 %v1567, %v1563
      %v1800 = vpack.c.b16 %v1568, %v1564
      %v1801 = vpack.c.b16 %v1573, %v1569
      %v1802 = vpack.c.b16 %v1574, %v1570
      %v1803 = vpack.c.b16 %v1575, %v1571
      %v1804 = vpack.c.b16 %v1576, %v1572
      %v1805 = vpack.c.b16 %v1581, %v1577
      %v1806 = vpack.c.b16 %v1582, %v1578
      %v1807 = vpack.c.b16 %v1583, %v1579
      %v1808 = vpack.c.b16 %v1584, %v1580
      %v1809 = vpack.c.b16 %v1589, %v1585
      %v1810 = vpack.c.b16 %v1590, %v1586
      %v1811 = vpack.c.b16 %v1591, %v1587
      %v1812 = vpack.c.b16 %v1592, %v1588
      %v1813 = vpack.c.b16 %v1597, %v1593
      %v1814 = vpack.c.b16 %v1598, %v1594
      %v1815 = vpack.c.b16 %v1599, %v1595
      %v1816 = vpack.c.b16 %v1600, %v1596
      %v1817 = vpack.c.b16 %v1605, %v1601
      %v1818 = vpack.c.b16 %v1606, %v1602
      %v1819 = vpack.c.b16 %v1607, %v1603
      %v1820 = vpack.c.b16 %v1608, %v1604
      %v1821 = vpack.c.b16 %v1613, %v1609
      %v1822 = vpack.c.b16 %v1614, %v1610
      %v1823 = vpack.c.b16 %v1615, %v1611
      %v1824 = vpack.c.b16 %v1616, %v1612
      %v1825 = vpack.c.b16 %v1621, %v1617
      %v1826 = vpack.c.b16 %v1622, %v1618
      %v1827 = vpack.c.b16 %v1623, %v1619
      %v1828 = vpack.c.b16 %v1624, %v1620
      %v1829 = vpack.c.b16 %v1629, %v1625
      %v1830 = vpack.c.b16 %v1630, %v1626
      %v1831 = vpack.c.b16 %v1631, %v1627
      %v1832 = vpack.c.b16 %v1632, %v1628
      %v1833 = vpack.c.b16 %v1637, %v1633
      %v1834 = vpack.c.b16 %v1638, %v1634
      %v1835 = vpack.c.b16 %v1639, %v1635
      %v1836 = vpack.c.b16 %v1640, %v1636
      %v1837 = vpack.c.b16 %v1645, %v1641
      %v1838 = vpack.c.b16 %v1646, %v1642
      %v1839 = vpack.c.b16 %v1647, %v1643
      %v1840 = vpack.c.b16 %v1648, %v1644
      %v1841 = vpack.c.b16 %v1653, %v1649
      %v1842 = vpack.c.b16 %v1654, %v1650
      %v1843 = vpack.c.b16 %v1655, %v1651
      %v1844 = vpack.c.b16 %v1656, %v1652
      %v1845 = vpack.c.b16 %v1661, %v1657
      %v1846 = vpack.c.b16 %v1662, %v1658
      %v1847 = vpack.c.b16 %v1663, %v1659
      %v1848 = vpack.c.b16 %v1664, %v1660
      %v1849 = vpack.c.b16 %v1669, %v1665
      %v1850 = vpack.c.b16 %v1670, %v1666
      %v1851 = vpack.c.b16 %v1671, %v1667
      %v1852 = vpack.c.b16 %v1672, %v1668
      %v1853 = vpack.c.b16 %v1677, %v1673
      %v1854 = vpack.c.b16 %v1678, %v1674
      %v1855 = vpack.c.b16 %v1679, %v1675
      %v1856 = vpack.c.b16 %v1680, %v1676
      %v1857 = vpack.c.b16 %v1685, %v1681
      %v1858 = vpack.c.b16 %v1686, %v1682
      %v1859 = vpack.c.b16 %v1687, %v1683
      %v1860 = vpack.c.b16 %v1688, %v1684
      %v1861 = vpack.c.b16 %v1693, %v1689
      %v1862 = vpack.c.b16 %v1694, %v1690
      %v1863 = vpack.c.b16 %v1695, %v1691
      %v1864 = vpack.c.b16 %v1696, %v1692
      %v1865 = vpack.c.b16 %v1701, %v1697
      %v1866 = vpack.c.b16 %v1702, %v1698
      %v1867 = vpack.c.b16 %v1703, %v1699
      %v1868 = vpack.c.b16 %v1704, %v1700
      %v1869 = vpack.c.b16 %v1709, %v1705
      %v1870 = vpack.c.b16 %v1710, %v1706
      %v1871 = vpack.c.b16 %v1711, %v1707
      %v1872 = vpack.c.b16 %v1712, %v1708
      %v1873 = vpack.c.b16 %v1717, %v1713
      %v1874 = vpack.c.b16 %v1718, %v1714
      %v1875 = vpack.c.b16 %v1719, %v1715
      %v1876 = vpack.c.b16 %v1720, %v1716
      %v1877 = vpack.c.b16 %v1725, %v1721
      %v1878 = vpack.c.b16 %v1726, %v1722
      %v1879 = vpack.c.b16 %v1727, %v1723
      %v1880 = vpack.c.b16 %v1728, %v1724
      %v1881 = vpack.c.b16 %v1733, %v1729
      %v1882 = vpack.c.b16 %v1734, %v1730
      %v1883 = vpack.c.b16 %v1735, %v1731
      %v1884 = vpack.c.b16 %v1736, %v1732
      %v1885 = vpack.c.b16 %v1741, %v1737
      %v1886 = vpack.c.b16 %v1742, %v1738
      %v1887 = vpack.c.b16 %v1743, %v1739
      %v1888 = vpack.c.b16 %v1744, %v1740
      %v1889 = vpack.c.b16 %v1749, %v1745
      %v1890 = vpack.c.b16 %v1750, %v1746
      %v1891 = vpack.c.b16 %v1751, %v1747
      %v1892 = vpack.c.b16 %v1752, %v1748
      %v1893 = vpack.c.b16 %v1757, %v1753
      %v1894 = vpack.c.b16 %v1758, %v1754
      %v1895 = vpack.c.b16 %v1759, %v1755
      %v1896 = vpack.c.b16 %v1760, %v1756
      %v1897 = vpack.c.b16 %v1765, %v1761
      %v1898 = vpack.c.b16 %v1766, %v1762
      %v1899 = vpack.c.b16 %v1767, %v1763
      %v1900 = vpack.c.b16 %v1768, %v1764
      %v1901 = vpack.c.b16 %v1773, %v1769
      %v1902 = vpack.c.b16 %v1774, %v1770
      %v1903 = vpack.c.b16 %v1775, %v1771
      %v1904 = vpack.c.b16 %v1776, %v1772
      %2033 = vmatprep.subr.bf16.mxu0 %v1778
      %2034 = vmatpush1.bf16.msra.mxu0 %v1777
      %2035 = vmatprep.subr.bf16.mxu0 %v1782
      %2036 = vmatpush1.bf16.msra.mxu0 %v1781
      %2037 = vmatprep.subr.bf16.mxu0 %v1786
      %2038 = vmatpush1.bf16.msra.mxu0 %v1785
      %2039 = vmatprep.subr.bf16.mxu0 %v1790
      %2040 = vmatpush1.bf16.msra.mxu0 %v1789
      %2041 = vmatprep.subr.bf16.mxu0 %v1794
      %2042 = vmatpush1.bf16.msra.mxu0 %v1793
      %2043 = vmatprep.subr.bf16.mxu0 %v1798
      %2044 = vmatpush1.bf16.msra.mxu0 %v1797
      %2045 = vmatprep.subr.bf16.mxu0 %v1802
      %2046 = vmatpush1.bf16.msra.mxu0 %v1801
      %2047 = vmatprep.subr.bf16.mxu0 %v1806
      %2048 = vmatpush1.bf16.msra.mxu0 %v1805
      %2049 = vmatprep.subr.bf16.mxu0 %v1810
      %2050 = vmatpush1.bf16.msra.mxu0 %v1809
      %2051 = vmatprep.subr.bf16.mxu0 %v1814
      %2052 = vmatpush1.bf16.msra.mxu0 %v1813
      %2053 = vmatprep.subr.bf16.mxu0 %v1818
      %2054 = vmatpush1.bf16.msra.mxu0 %v1817
      %2055 = vmatprep.subr.bf16.mxu0 %v1822
      %2056 = vmatpush1.bf16.msra.mxu0 %v1821
      %2057 = vmatprep.subr.bf16.mxu0 %v1826
      %2058 = vmatpush1.bf16.msra.mxu0 %v1825
      %2059 = vmatprep.subr.bf16.mxu0 %v1830
      %2060 = vmatpush1.bf16.msra.mxu0 %v1829
      %2061 = vmatprep.subr.bf16.mxu0 %v1834
      %2062 = vmatpush1.bf16.msra.mxu0 %v1833
      %2063 = vmatprep.subr.bf16.mxu0 %v1838
      %2064 = vmatpush1.bf16.msra.mxu0 %v1837
      %2065 = vmatprep.mubr.bf16.mxu0 %v1180
      %2066 = vmatmul.mubr.bf16.gmra.mrb[0].mxu0 %v1179
      %v2067 = vpop.f32.mrb[0].mxu0
      %v2068 = vadd.f32 %v1376, %v2067
      %v2069 = vpop.f32.mrb[0].mxu0
      %v2070 = vadd.f32 %v1380, %v2069
      %v2071 = vpop.f32.mrb[0].mxu0
      %v2072 = vadd.f32 %v1376, %v2071
      %v2073 = vpop.f32.mrb[0].mxu0
      %v2074 = vadd.f32 %v1380, %v2073
      %2075 = vmatprep.mubr.bf16.mxu0 %v1184
      %2076 = vmatmul.mubr.bf16.gmra.mrb[0].mxu0 %v1183
      %v2077 = vpop.f32.mrb[0].mxu0
      %v2078 = vadd.f32 %v1376, %v2077
      %v2079 = vpop.f32.mrb[0].mxu0
      %v2080 = vadd.f32 %v1380, %v2079
      %v2081 = vpop.f32.mrb[0].mxu0
      %v2082 = vadd.f32 %v1376, %v2081
      %v2083 = vpop.f32.mrb[0].mxu0
      %v2084 = vadd.f32 %v1380, %v2083
      %2085 = vmatprep.mubr.bf16.mxu0 %v1188
      %2086 = vmatmul.mubr.bf16.gmra.mrb[0].mxu0 %v1187
      %v2087 = vpop.f32.mrb[0].mxu0
      %v2088 = vadd.f32 %v1376, %v2087
      %v2089 = vpop.f32.mrb[0].mxu0
      %v2090 = vadd.f32 %v1380, %v2089
      %v2091 = vpop.f32.mrb[0].mxu0
      %v2092 = vadd.f32 %v1376, %v2091
      %v2093 = vpop.f32.mrb[0].mxu0
      %v2094 = vadd.f32 %v1380, %v2093
      %2095 = vmatprep.mubr.bf16.mxu0 %v1192
      %2096 = vmatmul.mubr.bf16.gmra.mrb[0].mxu0 %v1191
      %v2097 = vpop.f32.mrb[0].mxu0
      %v2098 = vadd.f32 %v1376, %v2097
      %v2099 = vpop.f32.mrb[0].mxu0
      %v2100 = vadd.f32 %v1380, %v2099
      %v2101 = vpop.f32.mrb[0].mxu0
      %v2102 = vadd.f32 %v1376, %v2101
      %v2103 = vpop.f32.mrb[0].mxu0
      %v2104 = vadd.f32 %v1380, %v2103
      %2105 = vmatprep.mubr.bf16.mxu0 %v1196
      %2106 = vmatmul.mubr.bf16.gmra.mrb[0].mxu0 %v1195
      %v2107 = vpop.f32.mrb[0].mxu0
      %v2108 = vadd.f32 %v1376, %v2107
      %v2109 = vpop.f32.mrb[0].mxu0
      %v2110 = vadd.f32 %v1380, %v2109
      %v2111 = vpop.f32.mrb[0].mxu0
      %v2112 = vadd.f32 %v1376, %v2111
      %v2113 = vpop.f32.mrb[0].mxu0
      %v2114 = vadd.f32 %v1380, %v2113
      %2115 = vmatprep.mubr.bf16.mxu0 %v1200
      %2116 = vmatmul.mubr.bf16.gmra.mrb[0].mxu0 %v1199
      %v2117 = vpop.f32.mrb[0].mxu0
      %v2118 = vadd.f32 %v1376, %v2117
      %v2119 = vpop.f32.mrb[0].mxu0
      %v2120 = vadd.f32 %v1380, %v2119
      %v2121 = vpop.f32.mrb[0].mxu0
      %v2122 = vadd.f32 %v1376, %v2121
      %v2123 = vpop.f32.mrb[0].mxu0
      %v2124 = vadd.f32 %v1380, %v2123
      %2125 = vmatprep.mubr.bf16.mxu0 %v1204
      %2126 = vmatmul.mubr.bf16.gmra.mrb[0].mxu0 %v1203
      %v2127 = vpop.f32.mrb[0].mxu0
      %v2128 = vadd.f32 %v1376, %v2127
      %v2129 = vpop.f32.mrb[0].mxu0
      %v2130 = vadd.f32 %v1380, %v2129
      %v2131 = vpop.f32.mrb[0].mxu0
      %v2132 = vadd.f32 %v1376, %v2131
      %v2133 = vpop.f32.mrb[0].mxu0
      %v2134 = vadd.f32 %v1380, %v2133
      %2135 = vmatprep.mubr.bf16.mxu0 %v1208
      %2136 = vmatmul.mubr.bf16.gmra.mrb[0].mxu0 %v1207
      %v2137 = vpop.f32.mrb[0].mxu0
      %v2138 = vadd.f32 %v1376, %v2137
      %v2139 = vpop.f32.mrb[0].mxu0
      %v2140 = vadd.f32 %v1380, %v2139
      %v2141 = vpop.f32.mrb[0].mxu0
      %v2142 = vadd.f32 %v1376, %v2141
      %v2143 = vpop.f32.mrb[0].mxu0
      %v2144 = vadd.f32 %v1380, %v2143
      %2145 = vmatprep.mubr.bf16.mxu0 %v1212
      %2146 = vmatmul.mubr.bf16.gmra.mrb[0].mxu0 %v1211
      %v2147 = vpop.f32.mrb[0].mxu0
      %v2148 = vadd.f32 %v1376, %v2147
      %v2149 = vpop.f32.mrb[0].mxu0
      %v2150 = vadd.f32 %v1380, %v2149
      %v2151 = vpop.f32.mrb[0].mxu0
      %v2152 = vadd.f32 %v1376, %v2151
      %v2153 = vpop.f32.mrb[0].mxu0
      %v2154 = vadd.f32 %v1380, %v2153
      %2155 = vmatprep.mubr.bf16.mxu0 %v1216
      %2156 = vmatmul.mubr.bf16.gmra.mrb[0].mxu0 %v1215
      %v2157 = vpop.f32.mrb[0].mxu0
      %v2158 = vadd.f32 %v1376, %v2157
      %v2159 = vpop.f32.mrb[0].mxu0
      %v2160 = vadd.f32 %v1380, %v2159
      %v2161 = vpop.f32.mrb[0].mxu0
      %v2162 = vadd.f32 %v1376, %v2161
      %v2163 = vpop.f32.mrb[0].mxu0
      %v2164 = vadd.f32 %v1380, %v2163
      %2165 = vmatprep.mubr.bf16.mxu0 %v1220
      %2166 = vmatmul.mubr.bf16.gmra.mrb[0].mxu0 %v1219
      %v2167 = vpop.f32.mrb[0].mxu0
      %v2168 = vadd.f32 %v1376, %v2167
      %v2169 = vpop.f32.mrb[0].mxu0
      %v2170 = vadd.f32 %v1380, %v2169
      %v2171 = vpop.f32.mrb[0].mxu0
      %v2172 = vadd.f32 %v1376, %v2171
      %v2173 = vpop.f32.mrb[0].mxu0
      %v2174 = vadd.f32 %v1380, %v2173
      %2175 = vmatprep.mubr.bf16.mxu0 %v1224
      %2176 = vmatmul.mubr.bf16.gmra.mrb[0].mxu0 %v1223
      %v2177 = vpop.f32.mrb[0].mxu0
      %v2178 = vadd.f32 %v1376, %v2177
      %v2179 = vpop.f32.mrb[0].mxu0
      %v2180 = vadd.f32 %v1380, %v2179
      %v2181 = vpop.f32.mrb[0].mxu0
      %v2182 = vadd.f32 %v1376, %v2181
      %v2183 = vpop.f32.mrb[0].mxu0
      %v2184 = vadd.f32 %v1380, %v2183
      %2185 = vmatprep.mubr.bf16.mxu0 %v1228
      %2186 = vmatmul.mubr.bf16.gmra.mrb[0].mxu0 %v1227
      %v2187 = vpop.f32.mrb[0].mxu0
      %v2188 = vadd.f32 %v1376, %v2187
      %v2189 = vpop.f32.mrb[0].mxu0
      %v2190 = vadd.f32 %v1380, %v2189
      %v2191 = vpop.f32.mrb[0].mxu0
      %v2192 = vadd.f32 %v1376, %v2191
      %v2193 = vpop.f32.mrb[0].mxu0
      %v2194 = vadd.f32 %v1380, %v2193
      %2195 = vmatprep.mubr.bf16.mxu0 %v1232
      %2196 = vmatmul.mubr.bf16.gmra.mrb[0].mxu0 %v1231
      %v2197 = vpop.f32.mrb[0].mxu0
      %v2198 = vadd.f32 %v1376, %v2197
      %v2199 = vpop.f32.mrb[0].mxu0
      %v2200 = vadd.f32 %v1380, %v2199
      %v2201 = vpop.f32.mrb[0].mxu0
      %v2202 = vadd.f32 %v1376, %v2201
      %v2203 = vpop.f32.mrb[0].mxu0
      %v2204 = vadd.f32 %v1380, %v2203
      %2205 = vmatprep.mubr.bf16.mxu0 %v1236
      %2206 = vmatmul.mubr.bf16.gmra.mrb[0].mxu0 %v1235
      %v2207 = vpop.f32.mrb[0].mxu0
      %v2208 = vadd.f32 %v1376, %v2207
      %v2209 = vpop.f32.mrb[0].mxu0
      %v2210 = vadd.f32 %v1380, %v2209
      %v2211 = vpop.f32.mrb[0].mxu0
      %v2212 = vadd.f32 %v1376, %v2211
      %v2213 = vpop.f32.mrb[0].mxu0
      %v2214 = vadd.f32 %v1380, %v2213
      %2215 = vmatprep.mubr.bf16.mxu0 %v1240
      %2216 = vmatmul.mubr.bf16.gmra.mrb[0].mxu0 %v1239
      %v2217 = vpop.f32.mrb[0].mxu0
      %v2218 = vadd.f32 %v1376, %v2217
      %v2219 = vpop.f32.mrb[0].mxu0
      %v2220 = vadd.f32 %v1380, %v2219
      %v2221 = vpop.f32.mrb[0].mxu0
      %v2222 = vadd.f32 %v1376, %v2221
      %v2223 = vpop.f32.mrb[0].mxu0
      %v2224 = vadd.f32 %v1380, %v2223
      %2225 = vdwg.mxu0
      %2226 = vmatprep.subr.bf16.mxu0 %v1842
      %2227 = vmatpush1.bf16.msra.mxu0 %v1841
      %2228 = vmatprep.subr.bf16.mxu0 %v1846
      %2229 = vmatpush1.bf16.msra.mxu0 %v1845
      %2230 = vmatprep.subr.bf16.mxu0 %v1850
      %2231 = vmatpush1.bf16.msra.mxu0 %v1849
      %2232 = vmatprep.subr.bf16.mxu0 %v1854
      %2233 = vmatpush1.bf16.msra.mxu0 %v1853
      %2234 = vmatprep.subr.bf16.mxu0 %v1858
      %2235 = vmatpush1.bf16.msra.mxu0 %v1857
      %2236 = vmatprep.subr.bf16.mxu0 %v1862
      %2237 = vmatpush1.bf16.msra.mxu0 %v1861
      %2238 = vmatprep.subr.bf16.mxu0 %v1866
      %2239 = vmatpush1.bf16.msra.mxu0 %v1865
      %2240 = vmatprep.subr.bf16.mxu0 %v1870
      %2241 = vmatpush1.bf16.msra.mxu0 %v1869
      %2242 = vmatprep.subr.bf16.mxu0 %v1874
      %2243 = vmatpush1.bf16.msra.mxu0 %v1873
      %2244 = vmatprep.subr.bf16.mxu0 %v1878
      %2245 = vmatpush1.bf16.msra.mxu0 %v1877
      %2246 = vmatprep.subr.bf16.mxu0 %v1882
      %2247 = vmatpush1.bf16.msra.mxu0 %v1881
      %2248 = vmatprep.subr.bf16.mxu0 %v1886
      %2249 = vmatpush1.bf16.msra.mxu0 %v1885
      %2250 = vmatprep.subr.bf16.mxu0 %v1890
      %2251 = vmatpush1.bf16.msra.mxu0 %v1889
      %2252 = vmatprep.subr.bf16.mxu0 %v1894
      %2253 = vmatpush1.bf16.msra.mxu0 %v1893
      %2254 = vmatprep.subr.bf16.mxu0 %v1898
      %2255 = vmatpush1.bf16.msra.mxu0 %v1897
      %2256 = vmatprep.subr.bf16.mxu0 %v1902
      %2257 = vmatpush1.bf16.msra.mxu0 %v1901
      %2258 = vmatprep.mubr.bf16.mxu0 %v1182
      %2259 = vmatmul.mubr.bf16.gmra.mrb[0].mxu0 %v1181
      %v2260 = vpop.f32.mrb[0].mxu0
      %v2261 = vadd.f32 %v2068, %v2260
      %v2262 = vpop.f32.mrb[0].mxu0
      %v2263 = vadd.f32 %v2070, %v2262
      %v2264 = vpop.f32.mrb[0].mxu0
      %v2265 = vadd.f32 %v2072, %v2264
      %v2266 = vpop.f32.mrb[0].mxu0
      %v2267 = vadd.f32 %v2074, %v2266
      %2268 = vmatprep.mubr.bf16.mxu0 %v1186
      %2269 = vmatmul.mubr.bf16.gmra.mrb[0].mxu0 %v1185
      %v2270 = vpop.f32.mrb[0].mxu0
      %v2271 = vadd.f32 %v2078, %v2270
      %v2272 = vpop.f32.mrb[0].mxu0
      %v2273 = vadd.f32 %v2080, %v2272
      %v2274 = vpop.f32.mrb[0].mxu0
      %v2275 = vadd.f32 %v2082, %v2274
      %v2276 = vpop.f32.mrb[0].mxu0
      %v2277 = vadd.f32 %v2084, %v2276
      %2278 = vmatprep.mubr.bf16.mxu0 %v1190
      %2279 = vmatmul.mubr.bf16.gmra.mrb[0].mxu0 %v1189
      %v2280 = vpop.f32.mrb[0].mxu0
      %v2281 = vadd.f32 %v2088, %v2280
      %v2282 = vpop.f32.mrb[0].mxu0
      %v2283 = vadd.f32 %v2090, %v2282
      %v2284 = vpop.f32.mrb[0].mxu0
      %v2285 = vadd.f32 %v2092, %v2284
      %v2286 = vpop.f32.mrb[0].mxu0
      %v2287 = vadd.f32 %v2094, %v2286
      %2288 = vmatprep.mubr.bf16.mxu0 %v1194
      %2289 = vmatmul.mubr.bf16.gmra.mrb[0].mxu0 %v1193
      %v2290 = vpop.f32.mrb[0].mxu0
      %v2291 = vadd.f32 %v2098, %v2290
      %v2292 = vpop.f32.mrb[0].mxu0
      %v2293 = vadd.f32 %v2100, %v2292
      %v2294 = vpop.f32.mrb[0].mxu0
      %v2295 = vadd.f32 %v2102, %v2294
      %v2296 = vpop.f32.mrb[0].mxu0
      %v2297 = vadd.f32 %v2104, %v2296
      %2298 = vmatprep.mubr.bf16.mxu0 %v1198
      %2299 = vmatmul.mubr.bf16.gmra.mrb[0].mxu0 %v1197
      %v2300 = vpop.f32.mrb[0].mxu0
      %v2301 = vadd.f32 %v2108, %v2300
      %v2302 = vpop.f32.mrb[0].mxu0
      %v2303 = vadd.f32 %v2110, %v2302
      %v2304 = vpop.f32.mrb[0].mxu0
      %v2305 = vadd.f32 %v2112, %v2304
      %v2306 = vpop.f32.mrb[0].mxu0
      %v2307 = vadd.f32 %v2114, %v2306
      %2308 = vmatprep.mubr.bf16.mxu0 %v1202
      %2309 = vmatmul.mubr.bf16.gmra.mrb[0].mxu0 %v1201
      %v2310 = vpop.f32.mrb[0].mxu0
      %v2311 = vadd.f32 %v2118, %v2310
      %v2312 = vpop.f32.mrb[0].mxu0
      %v2313 = vadd.f32 %v2120, %v2312
      %v2314 = vpop.f32.mrb[0].mxu0
      %v2315 = vadd.f32 %v2122, %v2314
      %v2316 = vpop.f32.mrb[0].mxu0
      %v2317 = vadd.f32 %v2124, %v2316
      %2318 = vmatprep.mubr.bf16.mxu0 %v1206
      %2319 = vmatmul.mubr.bf16.gmra.mrb[0].mxu0 %v1205
      %v2320 = vpop.f32.mrb[0].mxu0
      %v2321 = vadd.f32 %v2128, %v2320
      %v2322 = vpop.f32.mrb[0].mxu0
      %v2323 = vadd.f32 %v2130, %v2322
      %v2324 = vpop.f32.mrb[0].mxu0
      %v2325 = vadd.f32 %v2132, %v2324
      %v2326 = vpop.f32.mrb[0].mxu0
      %v2327 = vadd.f32 %v2134, %v2326
      %2328 = vmatprep.mubr.bf16.mxu0 %v1210
      %2329 = vmatmul.mubr.bf16.gmra.mrb[0].mxu0 %v1209
      %v2330 = vpop.f32.mrb[0].mxu0
      %v2331 = vadd.f32 %v2138, %v2330
      %v2332 = vpop.f32.mrb[0].mxu0
      %v2333 = vadd.f32 %v2140, %v2332
      %v2334 = vpop.f32.mrb[0].mxu0
      %v2335 = vadd.f32 %v2142, %v2334
      %v2336 = vpop.f32.mrb[0].mxu0
      %v2337 = vadd.f32 %v2144, %v2336
      %2338 = vmatprep.mubr.bf16.mxu0 %v1214
      %2339 = vmatmul.mubr.bf16.gmra.mrb[0].mxu0 %v1213
      %v2340 = vpop.f32.mrb[0].mxu0
      %v2341 = vadd.f32 %v2148, %v2340
      %v2342 = vpop.f32.mrb[0].mxu0
      %v2343 = vadd.f32 %v2150, %v2342
      %v2344 = vpop.f32.mrb[0].mxu0
      %v2345 = vadd.f32 %v2152, %v2344
      %v2346 = vpop.f32.mrb[0].mxu0
      %v2347 = vadd.f32 %v2154, %v2346
      %2348 = vmatprep.mubr.bf16.mxu0 %v1218
      %2349 = vmatmul.mubr.bf16.gmra.mrb[0].mxu0 %v1217
      %v2350 = vpop.f32.mrb[0].mxu0
      %v2351 = vadd.f32 %v2158, %v2350
      %v2352 = vpop.f32.mrb[0].mxu0
      %v2353 = vadd.f32 %v2160, %v2352
      %v2354 = vpop.f32.mrb[0].mxu0
      %v2355 = vadd.f32 %v2162, %v2354
      %v2356 = vpop.f32.mrb[0].mxu0
      %v2357 = vadd.f32 %v2164, %v2356
      %2358 = vmatprep.mubr.bf16.mxu0 %v1222
      %2359 = vmatmul.mubr.bf16.gmra.mrb[0].mxu0 %v1221
      %v2360 = vpop.f32.mrb[0].mxu0
      %v2361 = vadd.f32 %v2168, %v2360
      %v2362 = vpop.f32.mrb[0].mxu0
      %v2363 = vadd.f32 %v2170, %v2362
      %v2364 = vpop.f32.mrb[0].mxu0
      %v2365 = vadd.f32 %v2172, %v2364
      %v2366 = vpop.f32.mrb[0].mxu0
      %v2367 = vadd.f32 %v2174, %v2366
      %2368 = vmatprep.mubr.bf16.mxu0 %v1226
      %2369 = vmatmul.mubr.bf16.gmra.mrb[0].mxu0 %v1225
      %v2370 = vpop.f32.mrb[0].mxu0
      %v2371 = vadd.f32 %v2178, %v2370
      %v2372 = vpop.f32.mrb[0].mxu0
      %v2373 = vadd.f32 %v2180, %v2372
      %v2374 = vpop.f32.mrb[0].mxu0
      %v2375 = vadd.f32 %v2182, %v2374
      %v2376 = vpop.f32.mrb[0].mxu0
      %v2377 = vadd.f32 %v2184, %v2376
      %2378 = vmatprep.mubr.bf16.mxu0 %v1230
      %2379 = vmatmul.mubr.bf16.gmra.mrb[0].mxu0 %v1229
      %v2380 = vpop.f32.mrb[0].mxu0
      %v2381 = vadd.f32 %v2188, %v2380
      %v2382 = vpop.f32.mrb[0].mxu0
      %v2383 = vadd.f32 %v2190, %v2382
      %v2384 = vpop.f32.mrb[0].mxu0
      %v2385 = vadd.f32 %v2192, %v2384
      %v2386 = vpop.f32.mrb[0].mxu0
      %v2387 = vadd.f32 %v2194, %v2386
      %2388 = vmatprep.mubr.bf16.mxu0 %v1234
      %2389 = vmatmul.mubr.bf16.gmra.mrb[0].mxu0 %v1233
      %v2390 = vpop.f32.mrb[0].mxu0
      %v2391 = vadd.f32 %v2198, %v2390
      %v2392 = vpop.f32.mrb[0].mxu0
      %v2393 = vadd.f32 %v2200, %v2392
      %v2394 = vpop.f32.mrb[0].mxu0
      %v2395 = vadd.f32 %v2202, %v2394
      %v2396 = vpop.f32.mrb[0].mxu0
      %v2397 = vadd.f32 %v2204, %v2396
      %2398 = vmatprep.mubr.bf16.mxu0 %v1238
      %2399 = vmatmul.mubr.bf16.gmra.mrb[0].mxu0 %v1237
      %v2400 = vpop.f32.mrb[0].mxu0
      %v2401 = vadd.f32 %v2208, %v2400
      %v2402 = vpop.f32.mrb[0].mxu0
      %v2403 = vadd.f32 %v2210, %v2402
      %v2404 = vpop.f32.mrb[0].mxu0
      %v2405 = vadd.f32 %v2212, %v2404
      %v2406 = vpop.f32.mrb[0].mxu0
      %v2407 = vadd.f32 %v2214, %v2406
      %2408 = vmatprep.mubr.bf16.mxu0 %v1242
      %2409 = vmatmul.mubr.bf16.gmra.mrb[0].mxu0 %v1241
      %v2410 = vpop.f32.mrb[0].mxu0
      %v2411 = vadd.f32 %v2218, %v2410
      %v2412 = vpop.f32.mrb[0].mxu0
      %v2413 = vadd.f32 %v2220, %v2412
      %v2414 = vpop.f32.mrb[0].mxu0
      %v2415 = vadd.f32 %v2222, %v2414
      %v2416 = vpop.f32.mrb[0].mxu0
      %v2417 = vadd.f32 %v2224, %v2416
      %2418 = vdwg.mxu0
      %2419 = vmatprep.subr.bf16.mxu0 %v1780
      %2420 = vmatpush1.bf16.msra.mxu0 %v1779
      %2421 = vmatprep.subr.bf16.mxu0 %v1784
      %2422 = vmatpush1.bf16.msra.mxu0 %v1783
      %2423 = vmatprep.subr.bf16.mxu0 %v1788
      %2424 = vmatpush1.bf16.msra.mxu0 %v1787
      %2425 = vmatprep.subr.bf16.mxu0 %v1792
      %2426 = vmatpush1.bf16.msra.mxu0 %v1791
      %2427 = vmatprep.subr.bf16.mxu0 %v1796
      %2428 = vmatpush1.bf16.msra.mxu0 %v1795
      %2429 = vmatprep.subr.bf16.mxu0 %v1800
      %2430 = vmatpush1.bf16.msra.mxu0 %v1799
      %2431 = vmatprep.subr.bf16.mxu0 %v1804
      %2432 = vmatpush1.bf16.msra.mxu0 %v1803
      %2433 = vmatprep.subr.bf16.mxu0 %v1808
      %2434 = vmatpush1.bf16.msra.mxu0 %v1807
      %2435 = vmatprep.subr.bf16.mxu0 %v1812
      %2436 = vmatpush1.bf16.msra.mxu0 %v1811
      %2437 = vmatprep.subr.bf16.mxu0 %v1816
      %2438 = vmatpush1.bf16.msra.mxu0 %v1815
      %2439 = vmatprep.subr.bf16.mxu0 %v1820
      %2440 = vmatpush1.bf16.msra.mxu0 %v1819
      %2441 = vmatprep.subr.bf16.mxu0 %v1824
      %2442 = vmatpush1.bf16.msra.mxu0 %v1823
      %2443 = vmatprep.subr.bf16.mxu0 %v1828
      %2444 = vmatpush1.bf16.msra.mxu0 %v1827
      %2445 = vmatprep.subr.bf16.mxu0 %v1832
      %2446 = vmatpush1.bf16.msra.mxu0 %v1831
      %2447 = vmatprep.subr.bf16.mxu0 %v1836
      %2448 = vmatpush1.bf16.msra.mxu0 %v1835
      %2449 = vmatprep.subr.bf16.mxu0 %v1840
      %2450 = vmatpush1.bf16.msra.mxu0 %v1839
      %2451 = vmatprep.mubr.bf16.mxu0 %v1180
      %2452 = vmatmul.mubr.bf16.gmra.mrb[0].mxu0 %v1179
      %v2453 = vpop.f32.mrb[0].mxu0
      %v2454 = vadd.f32 %v1384, %v2453
      %v2455 = vpop.f32.mrb[0].mxu0
      %v2456 = vadd.f32 %v1388, %v2455
      %v2457 = vpop.f32.mrb[0].mxu0
      %v2458 = vadd.f32 %v1384, %v2457
      %v2459 = vpop.f32.mrb[0].mxu0
      %v2460 = vadd.f32 %v1388, %v2459
      %2461 = vmatprep.mubr.bf16.mxu0 %v1184
      %2462 = vmatmul.mubr.bf16.gmra.mrb[0].mxu0 %v1183
      %v2463 = vpop.f32.mrb[0].mxu0
      %v2464 = vadd.f32 %v1384, %v2463
      %v2465 = vpop.f32.mrb[0].mxu0
      %v2466 = vadd.f32 %v1388, %v2465
      %v2467 = vpop.f32.mrb[0].mxu0
      %v2468 = vadd.f32 %v1384, %v2467
      %v2469 = vpop.f32.mrb[0].mxu0
      %v2470 = vadd.f32 %v1388, %v2469
      %2471 = vmatprep.mubr.bf16.mxu0 %v1188
      %2472 = vmatmul.mubr.bf16.gmra.mrb[0].mxu0 %v1187
      %v2473 = vpop.f32.mrb[0].mxu0
      %v2474 = vadd.f32 %v1384, %v2473
      %v2475 = vpop.f32.mrb[0].mxu0
      %v2476 = vadd.f32 %v1388, %v2475
      %v2477 = vpop.f32.mrb[0].mxu0
      %v2478 = vadd.f32 %v1384, %v2477
      %v2479 = vpop.f32.mrb[0].mxu0
      %v2480 = vadd.f32 %v1388, %v2479
      %2481 = vmatprep.mubr.bf16.mxu0 %v1192
      %2482 = vmatmul.mubr.bf16.gmra.mrb[0].mxu0 %v1191
      %v2483 = vpop.f32.mrb[0].mxu0
      %v2484 = vadd.f32 %v1384, %v2483
      %v2485 = vpop.f32.mrb[0].mxu0
      %v2486 = vadd.f32 %v1388, %v2485
      %v2487 = vpop.f32.mrb[0].mxu0
      %v2488 = vadd.f32 %v1384, %v2487
      %v2489 = vpop.f32.mrb[0].mxu0
      %v2490 = vadd.f32 %v1388, %v2489
      %2491 = vmatprep.mubr.bf16.mxu0 %v1196
      %2492 = vmatmul.mubr.bf16.gmra.mrb[0].mxu0 %v1195
      %v2493 = vpop.f32.mrb[0].mxu0
      %v2494 = vadd.f32 %v1384, %v2493
      %v2495 = vpop.f32.mrb[0].mxu0
      %v2496 = vadd.f32 %v1388, %v2495
      %v2497 = vpop.f32.mrb[0].mxu0
      %v2498 = vadd.f32 %v1384, %v2497
      %v2499 = vpop.f32.mrb[0].mxu0
      %v2500 = vadd.f32 %v1388, %v2499
      %2501 = vmatprep.mubr.bf16.mxu0 %v1200
      %2502 = vmatmul.mubr.bf16.gmra.mrb[0].mxu0 %v1199
      %v2503 = vpop.f32.mrb[0].mxu0
      %v2504 = vadd.f32 %v1384, %v2503
      %v2505 = vpop.f32.mrb[0].mxu0
      %v2506 = vadd.f32 %v1388, %v2505
      %v2507 = vpop.f32.mrb[0].mxu0
      %v2508 = vadd.f32 %v1384, %v2507
      %v2509 = vpop.f32.mrb[0].mxu0
      %v2510 = vadd.f32 %v1388, %v2509
      %2511 = vmatprep.mubr.bf16.mxu0 %v1204
      %2512 = vmatmul.mubr.bf16.gmra.mrb[0].mxu0 %v1203
      %v2513 = vpop.f32.mrb[0].mxu0
      %v2514 = vadd.f32 %v1384, %v2513
      %v2515 = vpop.f32.mrb[0].mxu0
      %v2516 = vadd.f32 %v1388, %v2515
      %v2517 = vpop.f32.mrb[0].mxu0
      %v2518 = vadd.f32 %v1384, %v2517
      %v2519 = vpop.f32.mrb[0].mxu0
      %v2520 = vadd.f32 %v1388, %v2519
      %2521 = vmatprep.mubr.bf16.mxu0 %v1208
      %2522 = vmatmul.mubr.bf16.gmra.mrb[0].mxu0 %v1207
      %v2523 = vpop.f32.mrb[0].mxu0
      %v2524 = vadd.f32 %v1384, %v2523
      %v2525 = vpop.f32.mrb[0].mxu0
      %v2526 = vadd.f32 %v1388, %v2525
      %v2527 = vpop.f32.mrb[0].mxu0
      %v2528 = vadd.f32 %v1384, %v2527
      %v2529 = vpop.f32.mrb[0].mxu0
      %v2530 = vadd.f32 %v1388, %v2529
      %2531 = vmatprep.mubr.bf16.mxu0 %v1212
      %2532 = vmatmul.mubr.bf16.gmra.mrb[0].mxu0 %v1211
      %v2533 = vpop.f32.mrb[0].mxu0
      %v2534 = vadd.f32 %v1384, %v2533
      %v2535 = vpop.f32.mrb[0].mxu0
      %v2536 = vadd.f32 %v1388, %v2535
      %v2537 = vpop.f32.mrb[0].mxu0
      %v2538 = vadd.f32 %v1384, %v2537
      %v2539 = vpop.f32.mrb[0].mxu0
      %v2540 = vadd.f32 %v1388, %v2539
      %2541 = vmatprep.mubr.bf16.mxu0 %v1216
      %2542 = vmatmul.mubr.bf16.gmra.mrb[0].mxu0 %v1215
      %v2543 = vpop.f32.mrb[0].mxu0
      %v2544 = vadd.f32 %v1384, %v2543
      %v2545 = vpop.f32.mrb[0].mxu0
      %v2546 = vadd.f32 %v1388, %v2545
      %v2547 = vpop.f32.mrb[0].mxu0
      %v2548 = vadd.f32 %v1384, %v2547
      %v2549 = vpop.f32.mrb[0].mxu0
      %v2550 = vadd.f32 %v1388, %v2549
      %2551 = vmatprep.mubr.bf16.mxu0 %v1220
      %2552 = vmatmul.mubr.bf16.gmra.mrb[0].mxu0 %v1219
      %v2553 = vpop.f32.mrb[0].mxu0
      %v2554 = vadd.f32 %v1384, %v2553
      %v2555 = vpop.f32.mrb[0].mxu0
      %v2556 = vadd.f32 %v1388, %v2555
      %v2557 = vpop.f32.mrb[0].mxu0
      %v2558 = vadd.f32 %v1384, %v2557
      %v2559 = vpop.f32.mrb[0].mxu0
      %v2560 = vadd.f32 %v1388, %v2559
      %2561 = vmatprep.mubr.bf16.mxu0 %v1224
      %2562 = vmatmul.mubr.bf16.gmra.mrb[0].mxu0 %v1223
      %v2563 = vpop.f32.mrb[0].mxu0
      %v2564 = vadd.f32 %v1384, %v2563
      %v2565 = vpop.f32.mrb[0].mxu0
      %v2566 = vadd.f32 %v1388, %v2565
      %v2567 = vpop.f32.mrb[0].mxu0
      %v2568 = vadd.f32 %v1384, %v2567
      %v2569 = vpop.f32.mrb[0].mxu0
      %v2570 = vadd.f32 %v1388, %v2569
      %2571 = vmatprep.mubr.bf16.mxu0 %v1228
      %2572 = vmatmul.mubr.bf16.gmra.mrb[0].mxu0 %v1227
      %v2573 = vpop.f32.mrb[0].mxu0
      %v2574 = vadd.f32 %v1384, %v2573
      %v2575 = vpop.f32.mrb[0].mxu0
      %v2576 = vadd.f32 %v1388, %v2575
      %v2577 = vpop.f32.mrb[0].mxu0
      %v2578 = vadd.f32 %v1384, %v2577
      %v2579 = vpop.f32.mrb[0].mxu0
      %v2580 = vadd.f32 %v1388, %v2579
      %2581 = vmatprep.mubr.bf16.mxu0 %v1232
      %2582 = vmatmul.mubr.bf16.gmra.mrb[0].mxu0 %v1231
      %v2583 = vpop.f32.mrb[0].mxu0
      %v2584 = vadd.f32 %v1384, %v2583
      %v2585 = vpop.f32.mrb[0].mxu0
      %v2586 = vadd.f32 %v1388, %v2585
      %v2587 = vpop.f32.mrb[0].mxu0
      %v2588 = vadd.f32 %v1384, %v2587
      %v2589 = vpop.f32.mrb[0].mxu0
      %v2590 = vadd.f32 %v1388, %v2589
      %2591 = vmatprep.mubr.bf16.mxu0 %v1236
      %2592 = vmatmul.mubr.bf16.gmra.mrb[0].mxu0 %v1235
      %v2593 = vpop.f32.mrb[0].mxu0
      %v2594 = vadd.f32 %v1384, %v2593
      %v2595 = vpop.f32.mrb[0].mxu0
      %v2596 = vadd.f32 %v1388, %v2595
      %v2597 = vpop.f32.mrb[0].mxu0
      %v2598 = vadd.f32 %v1384, %v2597
      %v2599 = vpop.f32.mrb[0].mxu0
      %v2600 = vadd.f32 %v1388, %v2599
      %2601 = vmatprep.mubr.bf16.mxu0 %v1240
      %2602 = vmatmul.mubr.bf16.gmra.mrb[0].mxu0 %v1239
      %v2603 = vpop.f32.mrb[0].mxu0
      %v2604 = vadd.f32 %v1384, %v2603
      %v2605 = vpop.f32.mrb[0].mxu0
      %v2606 = vadd.f32 %v1388, %v2605
      %v2607 = vpop.f32.mrb[0].mxu0
      %v2608 = vadd.f32 %v1384, %v2607
      %v2609 = vpop.f32.mrb[0].mxu0
      %v2610 = vadd.f32 %v1388, %v2609
      %2611 = vdwg.mxu0
      %2612 = vmatprep.subr.bf16.mxu0 %v1844
      %2613 = vmatpush1.bf16.msra.mxu0 %v1843
      %2614 = vmatprep.subr.bf16.mxu0 %v1848
      %2615 = vmatpush1.bf16.msra.mxu0 %v1847
      %2616 = vmatprep.subr.bf16.mxu0 %v1852
      %2617 = vmatpush1.bf16.msra.mxu0 %v1851
      %2618 = vmatprep.subr.bf16.mxu0 %v1856
      %2619 = vmatpush1.bf16.msra.mxu0 %v1855
      %2620 = vmatprep.subr.bf16.mxu0 %v1860
      %2621 = vmatpush1.bf16.msra.mxu0 %v1859
      %2622 = vmatprep.subr.bf16.mxu0 %v1864
      %2623 = vmatpush1.bf16.msra.mxu0 %v1863
      %2624 = vmatprep.subr.bf16.mxu0 %v1868
      %2625 = vmatpush1.bf16.msra.mxu0 %v1867
      %2626 = vmatprep.subr.bf16.mxu0 %v1872
      %2627 = vmatpush1.bf16.msra.mxu0 %v1871
      %2628 = vmatprep.subr.bf16.mxu0 %v1876
      %2629 = vmatpush1.bf16.msra.mxu0 %v1875
      %2630 = vmatprep.subr.bf16.mxu0 %v1880
      %2631 = vmatpush1.bf16.msra.mxu0 %v1879
      %2632 = vmatprep.subr.bf16.mxu0 %v1884
      %2633 = vmatpush1.bf16.msra.mxu0 %v1883
      %2634 = vmatprep.subr.bf16.mxu0 %v1888
      %2635 = vmatpush1.bf16.msra.mxu0 %v1887
      %2636 = vmatprep.subr.bf16.mxu0 %v1892
      %2637 = vmatpush1.bf16.msra.mxu0 %v1891
      %2638 = vmatprep.subr.bf16.mxu0 %v1896
      %2639 = vmatpush1.bf16.msra.mxu0 %v1895
      %2640 = vmatprep.subr.bf16.mxu0 %v1900
      %2641 = vmatpush1.bf16.msra.mxu0 %v1899
      %2642 = vmatprep.subr.bf16.mxu0 %v1904
      %2643 = vmatpush1.bf16.msra.mxu0 %v1903
      %2644 = vmatprep.mubr.bf16.mxu0 %v1182
      %2645 = vmatmul.mubr.bf16.gmra.mrb[0].mxu0 %v1181
      %v2646 = vpop.f32.mrb[0].mxu0
      %v2647 = vadd.f32 %v2454, %v2646
      %v2648 = vpop.f32.mrb[0].mxu0
      %v2649 = vadd.f32 %v2456, %v2648
      %v2650 = vpop.f32.mrb[0].mxu0
      %v2651 = vadd.f32 %v2458, %v2650
      %v2652 = vpop.f32.mrb[0].mxu0
      %v2653 = vadd.f32 %v2460, %v2652
      %2654 = vmatprep.mubr.bf16.mxu0 %v1186
      %2655 = vmatmul.mubr.bf16.gmra.mrb[0].mxu0 %v1185
      %v2656 = vpop.f32.mrb[0].mxu0
      %v2657 = vadd.f32 %v2464, %v2656
      %v2658 = vpop.f32.mrb[0].mxu0
      %v2659 = vadd.f32 %v2466, %v2658
      %v2660 = vpop.f32.mrb[0].mxu0
      %v2661 = vadd.f32 %v2468, %v2660
      %v2662 = vpop.f32.mrb[0].mxu0
      %v2663 = vadd.f32 %v2470, %v2662
      %2664 = vmatprep.mubr.bf16.mxu0 %v1190
      %2665 = vmatmul.mubr.bf16.gmra.mrb[0].mxu0 %v1189
      %v2666 = vpop.f32.mrb[0].mxu0
      %v2667 = vadd.f32 %v2474, %v2666
      %v2668 = vpop.f32.mrb[0].mxu0
      %v2669 = vadd.f32 %v2476, %v2668
      %v2670 = vpop.f32.mrb[0].mxu0
      %v2671 = vadd.f32 %v2478, %v2670
      %v2672 = vpop.f32.mrb[0].mxu0
      %v2673 = vadd.f32 %v2480, %v2672
      %2674 = vmatprep.mubr.bf16.mxu0 %v1194
      %2675 = vmatmul.mubr.bf16.gmra.mrb[0].mxu0 %v1193
      %v2676 = vpop.f32.mrb[0].mxu0
      %v2677 = vadd.f32 %v2484, %v2676
      %v2678 = vpop.f32.mrb[0].mxu0
      %v2679 = vadd.f32 %v2486, %v2678
      %v2680 = vpop.f32.mrb[0].mxu0
      %v2681 = vadd.f32 %v2488, %v2680
      %v2682 = vpop.f32.mrb[0].mxu0
      %v2683 = vadd.f32 %v2490, %v2682
      %2684 = vmatprep.mubr.bf16.mxu0 %v1198
      %2685 = vmatmul.mubr.bf16.gmra.mrb[0].mxu0 %v1197
      %v2686 = vpop.f32.mrb[0].mxu0
      %v2687 = vadd.f32 %v2494, %v2686
      %v2688 = vpop.f32.mrb[0].mxu0
      %v2689 = vadd.f32 %v2496, %v2688
      %v2690 = vpop.f32.mrb[0].mxu0
      %v2691 = vadd.f32 %v2498, %v2690
      %v2692 = vpop.f32.mrb[0].mxu0
      %v2693 = vadd.f32 %v2500, %v2692
      %2694 = vmatprep.mubr.bf16.mxu0 %v1202
      %2695 = vmatmul.mubr.bf16.gmra.mrb[0].mxu0 %v1201
      %v2696 = vpop.f32.mrb[0].mxu0
      %v2697 = vadd.f32 %v2504, %v2696
      %v2698 = vpop.f32.mrb[0].mxu0
      %v2699 = vadd.f32 %v2506, %v2698
      %v2700 = vpop.f32.mrb[0].mxu0
      %v2701 = vadd.f32 %v2508, %v2700
      %v2702 = vpop.f32.mrb[0].mxu0
      %v2703 = vadd.f32 %v2510, %v2702
      %2704 = vmatprep.mubr.bf16.mxu0 %v1206
      %2705 = vmatmul.mubr.bf16.gmra.mrb[0].mxu0 %v1205
      %v2706 = vpop.f32.mrb[0].mxu0
      %v2707 = vadd.f32 %v2514, %v2706
      %v2708 = vpop.f32.mrb[0].mxu0
      %v2709 = vadd.f32 %v2516, %v2708
      %v2710 = vpop.f32.mrb[0].mxu0
      %v2711 = vadd.f32 %v2518, %v2710
      %v2712 = vpop.f32.mrb[0].mxu0
      %v2713 = vadd.f32 %v2520, %v2712
      %2714 = vmatprep.mubr.bf16.mxu0 %v1210
      %2715 = vmatmul.mubr.bf16.gmra.mrb[0].mxu0 %v1209
      %v2716 = vpop.f32.mrb[0].mxu0
      %v2717 = vadd.f32 %v2524, %v2716
      %v2718 = vpop.f32.mrb[0].mxu0
      %v2719 = vadd.f32 %v2526, %v2718
      %v2720 = vpop.f32.mrb[0].mxu0
      %v2721 = vadd.f32 %v2528, %v2720
      %v2722 = vpop.f32.mrb[0].mxu0
      %v2723 = vadd.f32 %v2530, %v2722
      %2724 = vmatprep.mubr.bf16.mxu0 %v1214
      %2725 = vmatmul.mubr.bf16.gmra.mrb[0].mxu0 %v1213
      %v2726 = vpop.f32.mrb[0].mxu0
      %v2727 = vadd.f32 %v2534, %v2726
      %v2728 = vpop.f32.mrb[0].mxu0
      %v2729 = vadd.f32 %v2536, %v2728
      %v2730 = vpop.f32.mrb[0].mxu0
      %v2731 = vadd.f32 %v2538, %v2730
      %v2732 = vpop.f32.mrb[0].mxu0
      %v2733 = vadd.f32 %v2540, %v2732
      %2734 = vmatprep.mubr.bf16.mxu0 %v1218
      %2735 = vmatmul.mubr.bf16.gmra.mrb[0].mxu0 %v1217
      %v2736 = vpop.f32.mrb[0].mxu0
      %v2737 = vadd.f32 %v2544, %v2736
      %v2738 = vpop.f32.mrb[0].mxu0
      %v2739 = vadd.f32 %v2546, %v2738
      %v2740 = vpop.f32.mrb[0].mxu0
      %v2741 = vadd.f32 %v2548, %v2740
      %v2742 = vpop.f32.mrb[0].mxu0
      %v2743 = vadd.f32 %v2550, %v2742
      %2744 = vmatprep.mubr.bf16.mxu0 %v1222
      %2745 = vmatmul.mubr.bf16.gmra.mrb[0].mxu0 %v1221
      %v2746 = vpop.f32.mrb[0].mxu0
      %v2747 = vadd.f32 %v2554, %v2746
      %v2748 = vpop.f32.mrb[0].mxu0
      %v2749 = vadd.f32 %v2556, %v2748
      %v2750 = vpop.f32.mrb[0].mxu0
      %v2751 = vadd.f32 %v2558, %v2750
      %v2752 = vpop.f32.mrb[0].mxu0
      %v2753 = vadd.f32 %v2560, %v2752
      %2754 = vmatprep.mubr.bf16.mxu0 %v1226
      %2755 = vmatmul.mubr.bf16.gmra.mrb[0].mxu0 %v1225
      %v2756 = vpop.f32.mrb[0].mxu0
      %v2757 = vadd.f32 %v2564, %v2756
      %v2758 = vpop.f32.mrb[0].mxu0
      %v2759 = vadd.f32 %v2566, %v2758
      %v2760 = vpop.f32.mrb[0].mxu0
      %v2761 = vadd.f32 %v2568, %v2760
      %v2762 = vpop.f32.mrb[0].mxu0
      %v2763 = vadd.f32 %v2570, %v2762
      %2764 = vmatprep.mubr.bf16.mxu0 %v1230
      %2765 = vmatmul.mubr.bf16.gmra.mrb[0].mxu0 %v1229
      %v2766 = vpop.f32.mrb[0].mxu0
      %v2767 = vadd.f32 %v2574, %v2766
      %v2768 = vpop.f32.mrb[0].mxu0
      %v2769 = vadd.f32 %v2576, %v2768
      %v2770 = vpop.f32.mrb[0].mxu0
      %v2771 = vadd.f32 %v2578, %v2770
      %v2772 = vpop.f32.mrb[0].mxu0
      %v2773 = vadd.f32 %v2580, %v2772
      %2774 = vmatprep.mubr.bf16.mxu0 %v1234
      %2775 = vmatmul.mubr.bf16.gmra.mrb[0].mxu0 %v1233
      %v2776 = vpop.f32.mrb[0].mxu0
      %v2777 = vadd.f32 %v2584, %v2776
      %v2778 = vpop.f32.mrb[0].mxu0
      %v2779 = vadd.f32 %v2586, %v2778
      %v2780 = vpop.f32.mrb[0].mxu0
      %v2781 = vadd.f32 %v2588, %v2780
      %v2782 = vpop.f32.mrb[0].mxu0
      %v2783 = vadd.f32 %v2590, %v2782
      %2784 = vmatprep.mubr.bf16.mxu0 %v1238
      %2785 = vmatmul.mubr.bf16.gmra.mrb[0].mxu0 %v1237
      %v2786 = vpop.f32.mrb[0].mxu0
      %v2787 = vadd.f32 %v2594, %v2786
      %v2788 = vpop.f32.mrb[0].mxu0
      %v2789 = vadd.f32 %v2596, %v2788
      %v2790 = vpop.f32.mrb[0].mxu0
      %v2791 = vadd.f32 %v2598, %v2790
      %v2792 = vpop.f32.mrb[0].mxu0
      %v2793 = vadd.f32 %v2600, %v2792
      %2794 = vmatprep.mubr.bf16.mxu0 %v1242
      %2795 = vmatmul.mubr.bf16.gmra.mrb[0].mxu0 %v1241
      %v2796 = vpop.f32.mrb[0].mxu0
      %v2797 = vadd.f32 %v2604, %v2796
      %v2798 = vpop.f32.mrb[0].mxu0
      %v2799 = vadd.f32 %v2606, %v2798
      %v2800 = vpop.f32.mrb[0].mxu0
      %v2801 = vadd.f32 %v2608, %v2800
      %v2802 = vpop.f32.mrb[0].mxu0
      %v2803 = vadd.f32 %v2610, %v2802
      %2804 = vdwg.mxu0
      %v2805 = vmax.f32 %v2261, 0.0
      %v2806 = vmax.f32 %v2263, 0.0
      %v2807 = vmax.f32 %v2647, 0.0
      %v2808 = vmax.f32 %v2649, 0.0
      %v2809 = vmax.f32 %v2265, 0.0
      %v2810 = vmax.f32 %v2267, 0.0
      %v2811 = vmax.f32 %v2651, 0.0
      %v2812 = vmax.f32 %v2653, 0.0
      %v2813 = vmax.f32 %v2271, 0.0
      %v2814 = vmax.f32 %v2273, 0.0
      %v2815 = vmax.f32 %v2657, 0.0
      %v2816 = vmax.f32 %v2659, 0.0
      %v2817 = vmax.f32 %v2275, 0.0
      %v2818 = vmax.f32 %v2277, 0.0
      %v2819 = vmax.f32 %v2661, 0.0
      %v2820 = vmax.f32 %v2663, 0.0
      %v2821 = vmax.f32 %v2281, 0.0
      %v2822 = vmax.f32 %v2283, 0.0
      %v2823 = vmax.f32 %v2667, 0.0
      %v2824 = vmax.f32 %v2669, 0.0
      %v2825 = vmax.f32 %v2285, 0.0
      %v2826 = vmax.f32 %v2287, 0.0
      %v2827 = vmax.f32 %v2671, 0.0
      %v2828 = vmax.f32 %v2673, 0.0
      %v2829 = vmax.f32 %v2291, 0.0
      %v2830 = vmax.f32 %v2293, 0.0
      %v2831 = vmax.f32 %v2677, 0.0
      %v2832 = vmax.f32 %v2679, 0.0
      %v2833 = vmax.f32 %v2295, 0.0
      %v2834 = vmax.f32 %v2297, 0.0
      %v2835 = vmax.f32 %v2681, 0.0
      %v2836 = vmax.f32 %v2683, 0.0
      %v2837 = vmax.f32 %v2301, 0.0
      %v2838 = vmax.f32 %v2303, 0.0
      %v2839 = vmax.f32 %v2687, 0.0
      %v2840 = vmax.f32 %v2689, 0.0
      %v2841 = vmax.f32 %v2305, 0.0
      %v2842 = vmax.f32 %v2307, 0.0
      %v2843 = vmax.f32 %v2691, 0.0
      %v2844 = vmax.f32 %v2693, 0.0
      %v2845 = vmax.f32 %v2311, 0.0
      %v2846 = vmax.f32 %v2313, 0.0
      %v2847 = vmax.f32 %v2697, 0.0
      %v2848 = vmax.f32 %v2699, 0.0
      %v2849 = vmax.f32 %v2315, 0.0
      %v2850 = vmax.f32 %v2317, 0.0
      %v2851 = vmax.f32 %v2701, 0.0
      %v2852 = vmax.f32 %v2703, 0.0
      %v2853 = vmax.f32 %v2321, 0.0
      %v2854 = vmax.f32 %v2323, 0.0
      %v2855 = vmax.f32 %v2707, 0.0
      %v2856 = vmax.f32 %v2709, 0.0
      %v2857 = vmax.f32 %v2325, 0.0
      %v2858 = vmax.f32 %v2327, 0.0
      %v2859 = vmax.f32 %v2711, 0.0
      %v2860 = vmax.f32 %v2713, 0.0
      %v2861 = vmax.f32 %v2331, 0.0
      %v2862 = vmax.f32 %v2333, 0.0
      %v2863 = vmax.f32 %v2717, 0.0
      %v2864 = vmax.f32 %v2719, 0.0
      %v2865 = vmax.f32 %v2335, 0.0
      %v2866 = vmax.f32 %v2337, 0.0
      %v2867 = vmax.f32 %v2721, 0.0
      %v2868 = vmax.f32 %v2723, 0.0
      %v2869 = vmax.f32 %v2341, 0.0
      %v2870 = vmax.f32 %v2343, 0.0
      %v2871 = vmax.f32 %v2727, 0.0
      %v2872 = vmax.f32 %v2729, 0.0
      %v2873 = vmax.f32 %v2345, 0.0
      %v2874 = vmax.f32 %v2347, 0.0
      %v2875 = vmax.f32 %v2731, 0.0
      %v2876 = vmax.f32 %v2733, 0.0
      %v2877 = vmax.f32 %v2351, 0.0
      %v2878 = vmax.f32 %v2353, 0.0
      %v2879 = vmax.f32 %v2737, 0.0
      %v2880 = vmax.f32 %v2739, 0.0
      %v2881 = vmax.f32 %v2355, 0.0
      %v2882 = vmax.f32 %v2357, 0.0
      %v2883 = vmax.f32 %v2741, 0.0
      %v2884 = vmax.f32 %v2743, 0.0
      %v2885 = vmax.f32 %v2361, 0.0
      %v2886 = vmax.f32 %v2363, 0.0
      %v2887 = vmax.f32 %v2747, 0.0
      %v2888 = vmax.f32 %v2749, 0.0
      %v2889 = vmax.f32 %v2365, 0.0
      %v2890 = vmax.f32 %v2367, 0.0
      %v2891 = vmax.f32 %v2751, 0.0
      %v2892 = vmax.f32 %v2753, 0.0
      %v2893 = vmax.f32 %v2371, 0.0
      %v2894 = vmax.f32 %v2373, 0.0
      %v2895 = vmax.f32 %v2757, 0.0
      %v2896 = vmax.f32 %v2759, 0.0
      %v2897 = vmax.f32 %v2375, 0.0
      %v2898 = vmax.f32 %v2377, 0.0
      %v2899 = vmax.f32 %v2761, 0.0
      %v2900 = vmax.f32 %v2763, 0.0
      %v2901 = vmax.f32 %v2381, 0.0
      %v2902 = vmax.f32 %v2383, 0.0
      %v2903 = vmax.f32 %v2767, 0.0
      %v2904 = vmax.f32 %v2769, 0.0
      %v2905 = vmax.f32 %v2385, 0.0
      %v2906 = vmax.f32 %v2387, 0.0
      %v2907 = vmax.f32 %v2771, 0.0
      %v2908 = vmax.f32 %v2773, 0.0
      %v2909 = vmax.f32 %v2391, 0.0
      %v2910 = vmax.f32 %v2393, 0.0
      %v2911 = vmax.f32 %v2777, 0.0
      %v2912 = vmax.f32 %v2779, 0.0
      %v2913 = vmax.f32 %v2395, 0.0
      %v2914 = vmax.f32 %v2397, 0.0
      %v2915 = vmax.f32 %v2781, 0.0
      %v2916 = vmax.f32 %v2783, 0.0
      %v2917 = vmax.f32 %v2401, 0.0
      %v2918 = vmax.f32 %v2403, 0.0
      %v2919 = vmax.f32 %v2787, 0.0
      %v2920 = vmax.f32 %v2789, 0.0
      %v2921 = vmax.f32 %v2405, 0.0
      %v2922 = vmax.f32 %v2407, 0.0
      %v2923 = vmax.f32 %v2791, 0.0
      %v2924 = vmax.f32 %v2793, 0.0
      %v2925 = vmax.f32 %v2411, 0.0
      %v2926 = vmax.f32 %v2413, 0.0
      %v2927 = vmax.f32 %v2797, 0.0
      %v2928 = vmax.f32 %v2799, 0.0
      %v2929 = vmax.f32 %v2415, 0.0
      %v2930 = vmax.f32 %v2417, 0.0
      %v2931 = vmax.f32 %v2801, 0.0
      %v2932 = vmax.f32 %v2803, 0.0
      %v2933 = vpack.c.bf16 %v2809, %v2805
      %v2934 = vpack.c.bf16 %v2810, %v2806
      %v2935 = vpack.c.bf16 %v2811, %v2807
      %v2936 = vpack.c.bf16 %v2812, %v2808
      %v2937 = vpack.c.bf16 %v2817, %v2813
      %v2938 = vpack.c.bf16 %v2818, %v2814
      %v2939 = vpack.c.bf16 %v2819, %v2815
      %v2940 = vpack.c.bf16 %v2820, %v2816
      %v2941 = vpack.c.bf16 %v2825, %v2821
      %v2942 = vpack.c.bf16 %v2826, %v2822
      %v2943 = vpack.c.bf16 %v2827, %v2823
      %v2944 = vpack.c.bf16 %v2828, %v2824
      %v2945 = vpack.c.bf16 %v2833, %v2829
      %v2946 = vpack.c.bf16 %v2834, %v2830
      %v2947 = vpack.c.bf16 %v2835, %v2831
      %v2948 = vpack.c.bf16 %v2836, %v2832
      %v2949 = vpack.c.bf16 %v2841, %v2837
      %v2950 = vpack.c.bf16 %v2842, %v2838
      %v2951 = vpack.c.bf16 %v2843, %v2839
      %v2952 = vpack.c.bf16 %v2844, %v2840
      %v2953 = vpack.c.bf16 %v2849, %v2845
      %v2954 = vpack.c.bf16 %v2850, %v2846
      %v2955 = vpack.c.bf16 %v2851, %v2847
      %v2956 = vpack.c.bf16 %v2852, %v2848
      %v2957 = vpack.c.bf16 %v2857, %v2853
      %v2958 = vpack.c.bf16 %v2858, %v2854
      %v2959 = vpack.c.bf16 %v2859, %v2855
      %v2960 = vpack.c.bf16 %v2860, %v2856
      %v2961 = vpack.c.bf16 %v2865, %v2861
      %v2962 = vpack.c.bf16 %v2866, %v2862
      %v2963 = vpack.c.bf16 %v2867, %v2863
      %v2964 = vpack.c.bf16 %v2868, %v2864
      %v2965 = vpack.c.bf16 %v2873, %v2869
      %v2966 = vpack.c.bf16 %v2874, %v2870
      %v2967 = vpack.c.bf16 %v2875, %v2871
      %v2968 = vpack.c.bf16 %v2876, %v2872
      %v2969 = vpack.c.bf16 %v2881, %v2877
      %v2970 = vpack.c.bf16 %v2882, %v2878
      %v2971 = vpack.c.bf16 %v2883, %v2879
      %v2972 = vpack.c.bf16 %v2884, %v2880
      %v2973 = vpack.c.bf16 %v2889, %v2885
      %v2974 = vpack.c.bf16 %v2890, %v2886
      %v2975 = vpack.c.bf16 %v2891, %v2887
      %v2976 = vpack.c.bf16 %v2892, %v2888
      %v2977 = vpack.c.bf16 %v2897, %v2893
      %v2978 = vpack.c.bf16 %v2898, %v2894
      %v2979 = vpack.c.bf16 %v2899, %v2895
      %v2980 = vpack.c.bf16 %v2900, %v2896
      %v2981 = vpack.c.bf16 %v2905, %v2901
      %v2982 = vpack.c.bf16 %v2906, %v2902
      %v2983 = vpack.c.bf16 %v2907, %v2903
      %v2984 = vpack.c.bf16 %v2908, %v2904
      %v2985 = vpack.c.bf16 %v2913, %v2909
      %v2986 = vpack.c.bf16 %v2914, %v2910
      %v2987 = vpack.c.bf16 %v2915, %v2911
      %v2988 = vpack.c.bf16 %v2916, %v2912
      %v2989 = vpack.c.bf16 %v2921, %v2917
      %v2990 = vpack.c.bf16 %v2922, %v2918
      %v2991 = vpack.c.bf16 %v2923, %v2919
      %v2992 = vpack.c.bf16 %v2924, %v2920
      %v2993 = vpack.c.bf16 %v2929, %v2925
      %v2994 = vpack.c.bf16 %v2930, %v2926
      %v2995 = vpack.c.bf16 %v2931, %v2927
      %v2996 = vpack.c.bf16 %v2932, %v2928
      %v2997 = vld [vmem:[%s5] sm:$0xf]
      %v2998 = vld [vmem:[%s5 + $0x4] sm:$0xf]
      %v2999 = vld [vmem:[%s5 + $0x8] sm:$0xf]
      %v3000 = vld [vmem:[%s5 + $0xc] sm:$0xf]
      %v3001 = vld [vmem:[%s5 + $0x10] sm:$0xf]
      %v3002 = vld [vmem:[%s5 + $0x14] sm:$0xf]
      %v3003 = vld [vmem:[%s5 + $0x18] sm:$0xf]
      %v3004 = vld [vmem:[%s5 + $0x1c] sm:$0xf]
      %v3005 = vld [vmem:[%s5 + $0x20] sm:$0xf]
      %v3006 = vld [vmem:[%s5 + $0x24] sm:$0xf]
      %v3007 = vld [vmem:[%s5 + $0x28] sm:$0xf]
      %v3008 = vld [vmem:[%s5 + $0x2c] sm:$0xf]
      %v3009 = vld [vmem:[%s5 + $0x30] sm:$0xf]
      %v3010 = vld [vmem:[%s5 + $0x34] sm:$0xf]
      %v3011 = vld [vmem:[%s5 + $0x38] sm:$0xf]
      %v3012 = vld [vmem:[%s5 + $0x3c] sm:$0xf]
      %v3013 = vld [vmem:[%s5 + $0x40] sm:$0xf]
      %v3014 = vld [vmem:[%s5 + $0x44] sm:$0xf]
      %v3015 = vld [vmem:[%s5 + $0x48] sm:$0xf]
      %v3016 = vld [vmem:[%s5 + $0x4c] sm:$0xf]
      %v3017 = vld [vmem:[%s5 + $0x50] sm:$0xf]
      %v3018 = vld [vmem:[%s5 + $0x54] sm:$0xf]
      %v3019 = vld [vmem:[%s5 + $0x58] sm:$0xf]
      %v3020 = vld [vmem:[%s5 + $0x5c] sm:$0xf]
      %v3021 = vld [vmem:[%s5 + $0x60] sm:$0xf]
      %v3022 = vld [vmem:[%s5 + $0x64] sm:$0xf]
      %v3023 = vld [vmem:[%s5 + $0x68] sm:$0xf]
      %v3024 = vld [vmem:[%s5 + $0x6c] sm:$0xf]
      %v3025 = vld [vmem:[%s5 + $0x70] sm:$0xf]
      %v3026 = vld [vmem:[%s5 + $0x74] sm:$0xf]
      %v3027 = vld [vmem:[%s5 + $0x78] sm:$0xf]
      %v3028 = vld [vmem:[%s5 + $0x7c] sm:$0xf]
      %v3029 = vld [vmem:[%s5 + $0x80] sm:$0xf]
      %v3030 = vld [vmem:[%s5 + $0x84] sm:$0xf]
      %v3031 = vld [vmem:[%s5 + $0x88] sm:$0xf]
      %v3032 = vld [vmem:[%s5 + $0x8c] sm:$0xf]
      %v3033 = vld [vmem:[%s5 + $0x90] sm:$0xf]
      %v3034 = vld [vmem:[%s5 + $0x94] sm:$0xf]
      %v3035 = vld [vmem:[%s5 + $0x98] sm:$0xf]
      %v3036 = vld [vmem:[%s5 + $0x9c] sm:$0xf]
      %v3037 = vld [vmem:[%s5 + $0xa0] sm:$0xf]
      %v3038 = vld [vmem:[%s5 + $0xa4] sm:$0xf]
      %v3039 = vld [vmem:[%s5 + $0xa8] sm:$0xf]
      %v3040 = vld [vmem:[%s5 + $0xac] sm:$0xf]
      %v3041 = vld [vmem:[%s5 + $0xb0] sm:$0xf]
      %v3042 = vld [vmem:[%s5 + $0xb4] sm:$0xf]
      %v3043 = vld [vmem:[%s5 + $0xb8] sm:$0xf]
      %v3044 = vld [vmem:[%s5 + $0xbc] sm:$0xf]
      %v3045 = vld [vmem:[%s5 + $0xc0] sm:$0xf]
      %v3046 = vld [vmem:[%s5 + $0xc4] sm:$0xf]
      %v3047 = vld [vmem:[%s5 + $0xc8] sm:$0xf]
      %v3048 = vld [vmem:[%s5 + $0xcc] sm:$0xf]
      %v3049 = vld [vmem:[%s5 + $0xd0] sm:$0xf]
      %v3050 = vld [vmem:[%s5 + $0xd4] sm:$0xf]
      %v3051 = vld [vmem:[%s5 + $0xd8] sm:$0xf]
      %v3052 = vld [vmem:[%s5 + $0xdc] sm:$0xf]
      %v3053 = vld [vmem:[%s5 + $0xe0] sm:$0xf]
      %v3054 = vld [vmem:[%s5 + $0xe4] sm:$0xf]
      %v3055 = vld [vmem:[%s5 + $0xe8] sm:$0xf]
      %v3056 = vld [vmem:[%s5 + $0xec] sm:$0xf]
      %v3057 = vld [vmem:[%s5 + $0xf0] sm:$0xf]
      %v3058 = vld [vmem:[%s5 + $0xf4] sm:$0xf]
      %v3059 = vld [vmem:[%s5 + $0xf8] sm:$0xf]
      %v3060 = vld [vmem:[%s5 + $0xfc] sm:$0xf]
      %v3061 = vld [vmem:[%s6] sm:$0x1]
      %v3063 = vlaneseq
      %v3064 = vshrl.u32 %v3063, 7
      %v3065 = vsub.s32 0, %v3064
      %v3066 = vrot.slane %v3061, %v3065
      %v3132 = vunpack.c.l.b16 %v2997
      %v3133 = vunpack.c.l.b16 %v2998
      %v3134 = vunpack.c.l.b16 %v2999
      %v3135 = vunpack.c.l.b16 %v3000
      %v3136 = vunpack.c.l.b16 %v3001
      %v3137 = vunpack.c.l.b16 %v3002
      %v3138 = vunpack.c.l.b16 %v3003
      %v3139 = vunpack.c.l.b16 %v3004
      %v3140 = vunpack.c.l.b16 %v3005
      %v3141 = vunpack.c.l.b16 %v3006
      %v3142 = vunpack.c.l.b16 %v3007
      %v3143 = vunpack.c.l.b16 %v3008
      %v3144 = vunpack.c.l.b16 %v3009
      %v3145 = vunpack.c.l.b16 %v3010
      %v3146 = vunpack.c.l.b16 %v3011
      %v3147 = vunpack.c.l.b16 %v3012
      %v3148 = vunpack.c.l.b16 %v3013
      %v3149 = vunpack.c.l.b16 %v3014
      %v3150 = vunpack.c.l.b16 %v3015
      %v3151 = vunpack.c.l.b16 %v3016
      %v3152 = vunpack.c.l.b16 %v3017
      %v3153 = vunpack.c.l.b16 %v3018
      %v3154 = vunpack.c.l.b16 %v3019
      %v3155 = vunpack.c.l.b16 %v3020
      %v3156 = vunpack.c.l.b16 %v3021
      %v3157 = vunpack.c.l.b16 %v3022
      %v3158 = vunpack.c.l.b16 %v3023
      %v3159 = vunpack.c.l.b16 %v3024
      %v3160 = vunpack.c.l.b16 %v3025
      %v3161 = vunpack.c.l.b16 %v3026
      %v3162 = vunpack.c.l.b16 %v3027
      %v3163 = vunpack.c.l.b16 %v3028
      %v3164 = vunpack.c.l.b16 %v3029
      %v3165 = vunpack.c.l.b16 %v3030
      %v3166 = vunpack.c.l.b16 %v3031
      %v3167 = vunpack.c.l.b16 %v3032
      %v3168 = vunpack.c.l.b16 %v3033
      %v3169 = vunpack.c.l.b16 %v3034
      %v3170 = vunpack.c.l.b16 %v3035
      %v3171 = vunpack.c.l.b16 %v3036
      %v3172 = vunpack.c.l.b16 %v3037
      %v3173 = vunpack.c.l.b16 %v3038
      %v3174 = vunpack.c.l.b16 %v3039
      %v3175 = vunpack.c.l.b16 %v3040
      %v3176 = vunpack.c.l.b16 %v3041
      %v3177 = vunpack.c.l.b16 %v3042
      %v3178 = vunpack.c.l.b16 %v3043
      %v3179 = vunpack.c.l.b16 %v3044
      %v3180 = vunpack.c.l.b16 %v3045
      %v3181 = vunpack.c.l.b16 %v3046
      %v3182 = vunpack.c.l.b16 %v3047
      %v3183 = vunpack.c.l.b16 %v3048
      %v3184 = vunpack.c.l.b16 %v3049
      %v3185 = vunpack.c.l.b16 %v3050
      %v3186 = vunpack.c.l.b16 %v3051
      %v3187 = vunpack.c.l.b16 %v3052
      %v3188 = vunpack.c.l.b16 %v3053
      %v3189 = vunpack.c.l.b16 %v3054
      %v3190 = vunpack.c.l.b16 %v3055
      %v3191 = vunpack.c.l.b16 %v3056
      %v3192 = vunpack.c.l.b16 %v3057
      %v3193 = vunpack.c.l.b16 %v3058
      %v3194 = vunpack.c.l.b16 %v3059
      %v3195 = vunpack.c.l.b16 %v3060
      %v3196 = vpack.c.b16 %v3133, %v3132
      %v3197 = vpack.c.b16 %v3135, %v3134
      %v3198 = vpack.c.b16 %v3137, %v3136
      %v3199 = vpack.c.b16 %v3139, %v3138
      %v3200 = vpack.c.b16 %v3141, %v3140
      %v3201 = vpack.c.b16 %v3143, %v3142
      %v3202 = vpack.c.b16 %v3145, %v3144
      %v3203 = vpack.c.b16 %v3147, %v3146
      %v3204 = vpack.c.b16 %v3149, %v3148
      %v3205 = vpack.c.b16 %v3151, %v3150
      %v3206 = vpack.c.b16 %v3153, %v3152
      %v3207 = vpack.c.b16 %v3155, %v3154
      %v3208 = vpack.c.b16 %v3157, %v3156
      %v3209 = vpack.c.b16 %v3159, %v3158
      %v3210 = vpack.c.b16 %v3161, %v3160
      %v3211 = vpack.c.b16 %v3163, %v3162
      %v3212 = vpack.c.b16 %v3165, %v3164
      %v3213 = vpack.c.b16 %v3167, %v3166
      %v3214 = vpack.c.b16 %v3169, %v3168
      %v3215 = vpack.c.b16 %v3171, %v3170
      %v3216 = vpack.c.b16 %v3173, %v3172
      %v3217 = vpack.c.b16 %v3175, %v3174
      %v3218 = vpack.c.b16 %v3177, %v3176
      %v3219 = vpack.c.b16 %v3179, %v3178
      %v3220 = vpack.c.b16 %v3181, %v3180
      %v3221 = vpack.c.b16 %v3183, %v3182
      %v3222 = vpack.c.b16 %v3185, %v3184
      %v3223 = vpack.c.b16 %v3187, %v3186
      %v3224 = vpack.c.b16 %v3189, %v3188
      %v3225 = vpack.c.b16 %v3191, %v3190
      %v3226 = vpack.c.b16 %v3193, %v3192
      %v3227 = vpack.c.b16 %v3195, %v3194
      %3260 = vmatprep.subr.bf16.mxu0 0
      %3261 = vmatpush1.bf16.msra.mxu0 %v3196
      %3262 = vmatprep.subr.bf16.mxu0 0
      %3263 = vmatpush1.bf16.msra.mxu0 %v3197
      %3264 = vmatprep.subr.bf16.mxu0 0
      %3265 = vmatpush1.bf16.msra.mxu0 %v3198
      %3266 = vmatprep.subr.bf16.mxu0 0
      %3267 = vmatpush1.bf16.msra.mxu0 %v3199
      %3268 = vmatprep.subr.bf16.mxu0 0
      %3269 = vmatpush1.bf16.msra.mxu0 %v3200
      %3270 = vmatprep.subr.bf16.mxu0 0
      %3271 = vmatpush1.bf16.msra.mxu0 %v3201
      %3272 = vmatprep.subr.bf16.mxu0 0
      %3273 = vmatpush1.bf16.msra.mxu0 %v3202
      %3274 = vmatprep.subr.bf16.mxu0 0
      %3275 = vmatpush1.bf16.msra.mxu0 %v3203
      %3276 = vmatprep.subr.bf16.mxu0 0
      %3277 = vmatpush1.bf16.msra.mxu0 %v3204
      %3278 = vmatprep.subr.bf16.mxu0 0
      %3279 = vmatpush1.bf16.msra.mxu0 %v3205
      %3280 = vmatprep.subr.bf16.mxu0 0
      %3281 = vmatpush1.bf16.msra.mxu0 %v3206
      %3282 = vmatprep.subr.bf16.mxu0 0
      %3283 = vmatpush1.bf16.msra.mxu0 %v3207
      %3284 = vmatprep.subr.bf16.mxu0 0
      %3285 = vmatpush1.bf16.msra.mxu0 %v3208
      %3286 = vmatprep.subr.bf16.mxu0 0
      %3287 = vmatpush1.bf16.msra.mxu0 %v3209
      %3288 = vmatprep.subr.bf16.mxu0 0
      %3289 = vmatpush1.bf16.msra.mxu0 %v3210
      %3290 = vmatprep.subr.bf16.mxu0 0
      %3291 = vmatpush1.bf16.msra.mxu0 %v3211
      %3292 = vmatprep.mubr.bf16.mxu0 %v2934
      %3293 = vmatmul.mubr.bf16.gmra.mrb[0].mxu0 %v2933
      %v3294 = vpop.f32.mrb[0].mxu0
      %v3295 = vadd.f32 %v3066, %v3294
      %v3296 = vpop.f32.mrb[0].mxu0
      %v3297 = vpop.f32.mrb[0].mxu0
      %v3298 = vadd.f32 %v3066, %v3297
      %v3299 = vpop.f32.mrb[0].mxu0
      %3300 = vmatprep.mubr.bf16.mxu0 %v2938
      %3301 = vmatmul.mubr.bf16.gmra.mrb[0].mxu0 %v2937
      %v3302 = vpop.f32.mrb[0].mxu0
      %v3303 = vadd.f32 %v3066, %v3302
      %v3304 = vpop.f32.mrb[0].mxu0
      %v3305 = vpop.f32.mrb[0].mxu0
      %v3306 = vadd.f32 %v3066, %v3305
      %v3307 = vpop.f32.mrb[0].mxu0
      %3308 = vmatprep.mubr.bf16.mxu0 %v2942
      %3309 = vmatmul.mubr.bf16.gmra.mrb[0].mxu0 %v2941
      %v3310 = vpop.f32.mrb[0].mxu0
      %v3311 = vadd.f32 %v3066, %v3310
      %v3312 = vpop.f32.mrb[0].mxu0
      %v3313 = vpop.f32.mrb[0].mxu0
      %v3314 = vadd.f32 %v3066, %v3313
      %v3315 = vpop.f32.mrb[0].mxu0
      %3316 = vmatprep.mubr.bf16.mxu0 %v2946
      %3317 = vmatmul.mubr.bf16.gmra.mrb[0].mxu0 %v2945
      %v3318 = vpop.f32.mrb[0].mxu0
      %v3319 = vadd.f32 %v3066, %v3318
      %v3320 = vpop.f32.mrb[0].mxu0
      %v3321 = vpop.f32.mrb[0].mxu0
      %v3322 = vadd.f32 %v3066, %v3321
      %v3323 = vpop.f32.mrb[0].mxu0
      %3324 = vmatprep.mubr.bf16.mxu0 %v2950
      %3325 = vmatmul.mubr.bf16.gmra.mrb[0].mxu0 %v2949
      %v3326 = vpop.f32.mrb[0].mxu0
      %v3327 = vadd.f32 %v3066, %v3326
      %v3328 = vpop.f32.mrb[0].mxu0
      %v3329 = vpop.f32.mrb[0].mxu0
      %v3330 = vadd.f32 %v3066, %v3329
      %v3331 = vpop.f32.mrb[0].mxu0
      %3332 = vmatprep.mubr.bf16.mxu0 %v2954
      %3333 = vmatmul.mubr.bf16.gmra.mrb[0].mxu0 %v2953
      %v3334 = vpop.f32.mrb[0].mxu0
      %v3335 = vadd.f32 %v3066, %v3334
      %v3336 = vpop.f32.mrb[0].mxu0
      %v3337 = vpop.f32.mrb[0].mxu0
      %v3338 = vadd.f32 %v3066, %v3337
      %v3339 = vpop.f32.mrb[0].mxu0
      %3340 = vmatprep.mubr.bf16.mxu0 %v2958
      %3341 = vmatmul.mubr.bf16.gmra.mrb[0].mxu0 %v2957
      %v3342 = vpop.f32.mrb[0].mxu0
      %v3343 = vadd.f32 %v3066, %v3342
      %v3344 = vpop.f32.mrb[0].mxu0
      %v3345 = vpop.f32.mrb[0].mxu0
      %v3346 = vadd.f32 %v3066, %v3345
      %v3347 = vpop.f32.mrb[0].mxu0
      %3348 = vmatprep.mubr.bf16.mxu0 %v2962
      %3349 = vmatmul.mubr.bf16.gmra.mrb[0].mxu0 %v2961
      %v3350 = vpop.f32.mrb[0].mxu0
      %v3351 = vadd.f32 %v3066, %v3350
      %v3352 = vpop.f32.mrb[0].mxu0
      %v3353 = vpop.f32.mrb[0].mxu0
      %v3354 = vadd.f32 %v3066, %v3353
      %v3355 = vpop.f32.mrb[0].mxu0
      %3356 = vmatprep.mubr.bf16.mxu0 %v2966
      %3357 = vmatmul.mubr.bf16.gmra.mrb[0].mxu0 %v2965
      %v3358 = vpop.f32.mrb[0].mxu0
      %v3359 = vadd.f32 %v3066, %v3358
      %v3360 = vpop.f32.mrb[0].mxu0
      %v3361 = vpop.f32.mrb[0].mxu0
      %v3362 = vadd.f32 %v3066, %v3361
      %v3363 = vpop.f32.mrb[0].mxu0
      %3364 = vmatprep.mubr.bf16.mxu0 %v2970
      %3365 = vmatmul.mubr.bf16.gmra.mrb[0].mxu0 %v2969
      %v3366 = vpop.f32.mrb[0].mxu0
      %v3367 = vadd.f32 %v3066, %v3366
      %v3368 = vpop.f32.mrb[0].mxu0
      %v3369 = vpop.f32.mrb[0].mxu0
      %v3370 = vadd.f32 %v3066, %v3369
      %v3371 = vpop.f32.mrb[0].mxu0
      %3372 = vmatprep.mubr.bf16.mxu0 %v2974
      %3373 = vmatmul.mubr.bf16.gmra.mrb[0].mxu0 %v2973
      %v3374 = vpop.f32.mrb[0].mxu0
      %v3375 = vadd.f32 %v3066, %v3374
      %v3376 = vpop.f32.mrb[0].mxu0
      %v3377 = vpop.f32.mrb[0].mxu0
      %v3378 = vadd.f32 %v3066, %v3377
      %v3379 = vpop.f32.mrb[0].mxu0
      %3380 = vmatprep.mubr.bf16.mxu0 %v2978
      %3381 = vmatmul.mubr.bf16.gmra.mrb[0].mxu0 %v2977
      %v3382 = vpop.f32.mrb[0].mxu0
      %v3383 = vadd.f32 %v3066, %v3382
      %v3384 = vpop.f32.mrb[0].mxu0
      %v3385 = vpop.f32.mrb[0].mxu0
      %v3386 = vadd.f32 %v3066, %v3385
      %v3387 = vpop.f32.mrb[0].mxu0
      %3388 = vmatprep.mubr.bf16.mxu0 %v2982
      %3389 = vmatmul.mubr.bf16.gmra.mrb[0].mxu0 %v2981
      %v3390 = vpop.f32.mrb[0].mxu0
      %v3391 = vadd.f32 %v3066, %v3390
      %v3392 = vpop.f32.mrb[0].mxu0
      %v3393 = vpop.f32.mrb[0].mxu0
      %v3394 = vadd.f32 %v3066, %v3393
      %v3395 = vpop.f32.mrb[0].mxu0
      %3396 = vmatprep.mubr.bf16.mxu0 %v2986
      %3397 = vmatmul.mubr.bf16.gmra.mrb[0].mxu0 %v2985
      %v3398 = vpop.f32.mrb[0].mxu0
      %v3399 = vadd.f32 %v3066, %v3398
      %v3400 = vpop.f32.mrb[0].mxu0
      %v3401 = vpop.f32.mrb[0].mxu0
      %v3402 = vadd.f32 %v3066, %v3401
      %v3403 = vpop.f32.mrb[0].mxu0
      %3404 = vmatprep.mubr.bf16.mxu0 %v2990
      %3405 = vmatmul.mubr.bf16.gmra.mrb[0].mxu0 %v2989
      %v3406 = vpop.f32.mrb[0].mxu0
      %v3407 = vadd.f32 %v3066, %v3406
      %v3408 = vpop.f32.mrb[0].mxu0
      %v3409 = vpop.f32.mrb[0].mxu0
      %v3410 = vadd.f32 %v3066, %v3409
      %v3411 = vpop.f32.mrb[0].mxu0
      %3412 = vmatprep.mubr.bf16.mxu0 %v2994
      %3413 = vmatmul.mubr.bf16.gmra.mrb[0].mxu0 %v2993
      %v3414 = vpop.f32.mrb[0].mxu0
      %v3415 = vadd.f32 %v3066, %v3414
      %v3416 = vpop.f32.mrb[0].mxu0
      %v3417 = vpop.f32.mrb[0].mxu0
      %v3418 = vadd.f32 %v3066, %v3417
      %v3419 = vpop.f32.mrb[0].mxu0
      %3420 = vdwg.mxu0
      %3421 = vmatprep.subr.bf16.mxu0 0
      %3422 = vmatpush1.bf16.msra.mxu0 %v3212
      %3423 = vmatprep.subr.bf16.mxu0 0
      %3424 = vmatpush1.bf16.msra.mxu0 %v3213
      %3425 = vmatprep.subr.bf16.mxu0 0
      %3426 = vmatpush1.bf16.msra.mxu0 %v3214
      %3427 = vmatprep.subr.bf16.mxu0 0
      %3428 = vmatpush1.bf16.msra.mxu0 %v3215
      %3429 = vmatprep.subr.bf16.mxu0 0
      %3430 = vmatpush1.bf16.msra.mxu0 %v3216
      %3431 = vmatprep.subr.bf16.mxu0 0
      %3432 = vmatpush1.bf16.msra.mxu0 %v3217
      %3433 = vmatprep.subr.bf16.mxu0 0
      %3434 = vmatpush1.bf16.msra.mxu0 %v3218
      %3435 = vmatprep.subr.bf16.mxu0 0
      %3436 = vmatpush1.bf16.msra.mxu0 %v3219
      %3437 = vmatprep.subr.bf16.mxu0 0
      %3438 = vmatpush1.bf16.msra.mxu0 %v3220
      %3439 = vmatprep.subr.bf16.mxu0 0
      %3440 = vmatpush1.bf16.msra.mxu0 %v3221
      %3441 = vmatprep.subr.bf16.mxu0 0
      %3442 = vmatpush1.bf16.msra.mxu0 %v3222
      %3443 = vmatprep.subr.bf16.mxu0 0
      %3444 = vmatpush1.bf16.msra.mxu0 %v3223
      %3445 = vmatprep.subr.bf16.mxu0 0
      %3446 = vmatpush1.bf16.msra.mxu0 %v3224
      %3447 = vmatprep.subr.bf16.mxu0 0
      %3448 = vmatpush1.bf16.msra.mxu0 %v3225
      %3449 = vmatprep.subr.bf16.mxu0 0
      %3450 = vmatpush1.bf16.msra.mxu0 %v3226
      %3451 = vmatprep.subr.bf16.mxu0 0
      %3452 = vmatpush1.bf16.msra.mxu0 %v3227
      %3453 = vmatprep.mubr.bf16.mxu0 %v2936
      %3454 = vmatmul.mubr.bf16.gmra.mrb[0].mxu0 %v2935
      %v3455 = vpop.f32.mrb[0].mxu0
      %v3456 = vadd.f32 %v3295, %v3455
      %v3457 = vpop.f32.mrb[0].mxu0
      %v3458 = vpop.f32.mrb[0].mxu0
      %v3459 = vadd.f32 %v3298, %v3458
      %v3460 = vpop.f32.mrb[0].mxu0
      %3461 = vmatprep.mubr.bf16.mxu0 %v2940
      %3462 = vmatmul.mubr.bf16.gmra.mrb[0].mxu0 %v2939
      %v3463 = vpop.f32.mrb[0].mxu0
      %v3464 = vadd.f32 %v3303, %v3463
      %v3465 = vpop.f32.mrb[0].mxu0
      %v3466 = vpop.f32.mrb[0].mxu0
      %v3467 = vadd.f32 %v3306, %v3466
      %v3468 = vpop.f32.mrb[0].mxu0
      %3469 = vmatprep.mubr.bf16.mxu0 %v2944
      %3470 = vmatmul.mubr.bf16.gmra.mrb[0].mxu0 %v2943
      %v3471 = vpop.f32.mrb[0].mxu0
      %v3472 = vadd.f32 %v3311, %v3471
      %v3473 = vpop.f32.mrb[0].mxu0
      %v3474 = vpop.f32.mrb[0].mxu0
      %v3475 = vadd.f32 %v3314, %v3474
      %v3476 = vpop.f32.mrb[0].mxu0
      %3477 = vmatprep.mubr.bf16.mxu0 %v2948
      %3478 = vmatmul.mubr.bf16.gmra.mrb[0].mxu0 %v2947
      %v3479 = vpop.f32.mrb[0].mxu0
      %v3480 = vadd.f32 %v3319, %v3479
      %v3481 = vpop.f32.mrb[0].mxu0
      %v3482 = vpop.f32.mrb[0].mxu0
      %v3483 = vadd.f32 %v3322, %v3482
      %v3484 = vpop.f32.mrb[0].mxu0
      %3485 = vmatprep.mubr.bf16.mxu0 %v2952
      %3486 = vmatmul.mubr.bf16.gmra.mrb[0].mxu0 %v2951
      %v3487 = vpop.f32.mrb[0].mxu0
      %v3488 = vadd.f32 %v3327, %v3487
      %v3489 = vpop.f32.mrb[0].mxu0
      %v3490 = vpop.f32.mrb[0].mxu0
      %v3491 = vadd.f32 %v3330, %v3490
      %v3492 = vpop.f32.mrb[0].mxu0
      %3493 = vmatprep.mubr.bf16.mxu0 %v2956
      %3494 = vmatmul.mubr.bf16.gmra.mrb[0].mxu0 %v2955
      %v3495 = vpop.f32.mrb[0].mxu0
      %v3496 = vadd.f32 %v3335, %v3495
      %v3497 = vpop.f32.mrb[0].mxu0
      %v3498 = vpop.f32.mrb[0].mxu0
      %v3499 = vadd.f32 %v3338, %v3498
      %v3500 = vpop.f32.mrb[0].mxu0
      %3501 = vmatprep.mubr.bf16.mxu0 %v2960
      %3502 = vmatmul.mubr.bf16.gmra.mrb[0].mxu0 %v2959
      %v3503 = vpop.f32.mrb[0].mxu0
      %v3504 = vadd.f32 %v3343, %v3503
      %v3505 = vpop.f32.mrb[0].mxu0
      %v3506 = vpop.f32.mrb[0].mxu0
      %v3507 = vadd.f32 %v3346, %v3506
      %v3508 = vpop.f32.mrb[0].mxu0
      %3509 = vmatprep.mubr.bf16.mxu0 %v2964
      %3510 = vmatmul.mubr.bf16.gmra.mrb[0].mxu0 %v2963
      %v3511 = vpop.f32.mrb[0].mxu0
      %v3512 = vadd.f32 %v3351, %v3511
      %v3513 = vpop.f32.mrb[0].mxu0
      %v3514 = vpop.f32.mrb[0].mxu0
      %v3515 = vadd.f32 %v3354, %v3514
      %v3516 = vpop.f32.mrb[0].mxu0
      %3517 = vmatprep.mubr.bf16.mxu0 %v2968
      %3518 = vmatmul.mubr.bf16.gmra.mrb[0].mxu0 %v2967
      %v3519 = vpop.f32.mrb[0].mxu0
      %v3520 = vadd.f32 %v3359, %v3519
      %v3521 = vpop.f32.mrb[0].mxu0
      %v3522 = vpop.f32.mrb[0].mxu0
      %v3523 = vadd.f32 %v3362, %v3522
      %v3524 = vpop.f32.mrb[0].mxu0
      %3525 = vmatprep.mubr.bf16.mxu0 %v2972
      %3526 = vmatmul.mubr.bf16.gmra.mrb[0].mxu0 %v2971
      %v3527 = vpop.f32.mrb[0].mxu0
      %v3528 = vadd.f32 %v3367, %v3527
      %v3529 = vpop.f32.mrb[0].mxu0
      %v3530 = vpop.f32.mrb[0].mxu0
      %v3531 = vadd.f32 %v3370, %v3530
      %v3532 = vpop.f32.mrb[0].mxu0
      %3533 = vmatprep.mubr.bf16.mxu0 %v2976
      %3534 = vmatmul.mubr.bf16.gmra.mrb[0].mxu0 %v2975
      %v3535 = vpop.f32.mrb[0].mxu0
      %v3536 = vadd.f32 %v3375, %v3535
      %v3537 = vpop.f32.mrb[0].mxu0
      %v3538 = vpop.f32.mrb[0].mxu0
      %v3539 = vadd.f32 %v3378, %v3538
      %v3540 = vpop.f32.mrb[0].mxu0
      %3541 = vmatprep.mubr.bf16.mxu0 %v2980
      %3542 = vmatmul.mubr.bf16.gmra.mrb[0].mxu0 %v2979
      %v3543 = vpop.f32.mrb[0].mxu0
      %v3544 = vadd.f32 %v3383, %v3543
      %v3545 = vpop.f32.mrb[0].mxu0
      %v3546 = vpop.f32.mrb[0].mxu0
      %v3547 = vadd.f32 %v3386, %v3546
      %v3548 = vpop.f32.mrb[0].mxu0
      %3549 = vmatprep.mubr.bf16.mxu0 %v2984
      %3550 = vmatmul.mubr.bf16.gmra.mrb[0].mxu0 %v2983
      %v3551 = vpop.f32.mrb[0].mxu0
      %v3552 = vadd.f32 %v3391, %v3551
      %v3553 = vpop.f32.mrb[0].mxu0
      %v3554 = vpop.f32.mrb[0].mxu0
      %v3555 = vadd.f32 %v3394, %v3554
      %v3556 = vpop.f32.mrb[0].mxu0
      %3557 = vmatprep.mubr.bf16.mxu0 %v2988
      %3558 = vmatmul.mubr.bf16.gmra.mrb[0].mxu0 %v2987
      %v3559 = vpop.f32.mrb[0].mxu0
      %v3560 = vadd.f32 %v3399, %v3559
      %v3561 = vpop.f32.mrb[0].mxu0
      %v3562 = vpop.f32.mrb[0].mxu0
      %v3563 = vadd.f32 %v3402, %v3562
      %v3564 = vpop.f32.mrb[0].mxu0
      %3565 = vmatprep.mubr.bf16.mxu0 %v2992
      %3566 = vmatmul.mubr.bf16.gmra.mrb[0].mxu0 %v2991
      %v3567 = vpop.f32.mrb[0].mxu0
      %v3568 = vadd.f32 %v3407, %v3567
      %v3569 = vpop.f32.mrb[0].mxu0
      %v3570 = vpop.f32.mrb[0].mxu0
      %v3571 = vadd.f32 %v3410, %v3570
      %v3572 = vpop.f32.mrb[0].mxu0
      %3573 = vmatprep.mubr.bf16.mxu0 %v2996
      %3574 = vmatmul.mubr.bf16.gmra.mrb[0].mxu0 %v2995
      %v3575 = vpop.f32.mrb[0].mxu0
      %v3576 = vadd.f32 %v3415, %v3575
      %v3577 = vpop.f32.mrb[0].mxu0
      %v3578 = vpop.f32.mrb[0].mxu0
      %v3579 = vadd.f32 %v3418, %v3578
      %v3580 = vpop.f32.mrb[0].mxu0
      %3581 = vdwg.mxu0
      %v3582 = vmax.f32 %v3456, 0.0
      %v3583 = vmax.f32 %v3459, 0.0
      %v3584 = vmax.f32 %v3464, 0.0
      %v3585 = vmax.f32 %v3467, 0.0
      %v3586 = vmax.f32 %v3472, 0.0
      %v3587 = vmax.f32 %v3475, 0.0
      %v3588 = vmax.f32 %v3480, 0.0
      %v3589 = vmax.f32 %v3483, 0.0
      %v3590 = vmax.f32 %v3488, 0.0
      %v3591 = vmax.f32 %v3491, 0.0
      %v3592 = vmax.f32 %v3496, 0.0
      %v3593 = vmax.f32 %v3499, 0.0
      %v3594 = vmax.f32 %v3504, 0.0
      %v3595 = vmax.f32 %v3507, 0.0
      %v3596 = vmax.f32 %v3512, 0.0
      %v3597 = vmax.f32 %v3515, 0.0
      %v3598 = vmax.f32 %v3520, 0.0
      %v3599 = vmax.f32 %v3523, 0.0
      %v3600 = vmax.f32 %v3528, 0.0
      %v3601 = vmax.f32 %v3531, 0.0
      %v3602 = vmax.f32 %v3536, 0.0
      %v3603 = vmax.f32 %v3539, 0.0
      %v3604 = vmax.f32 %v3544, 0.0
      %v3605 = vmax.f32 %v3547, 0.0
      %v3606 = vmax.f32 %v3552, 0.0
      %v3607 = vmax.f32 %v3555, 0.0
      %v3608 = vmax.f32 %v3560, 0.0
      %v3609 = vmax.f32 %v3563, 0.0
      %v3610 = vmax.f32 %v3568, 0.0
      %v3611 = vmax.f32 %v3571, 0.0
      %v3612 = vmax.f32 %v3576, 0.0
      %v3613 = vmax.f32 %v3579, 0.0
      %v3614 = vpack.c.bf16 %v3583, %v3582
      %v3615 = vpack.c.bf16 %v3585, %v3584
      %v3616 = vpack.c.bf16 %v3587, %v3586
      %v3617 = vpack.c.bf16 %v3589, %v3588
      %v3618 = vpack.c.bf16 %v3591, %v3590
      %v3619 = vpack.c.bf16 %v3593, %v3592
      %v3620 = vpack.c.bf16 %v3595, %v3594
      %v3621 = vpack.c.bf16 %v3597, %v3596
      %v3622 = vpack.c.bf16 %v3599, %v3598
      %v3623 = vpack.c.bf16 %v3601, %v3600
      %v3624 = vpack.c.bf16 %v3603, %v3602
      %v3625 = vpack.c.bf16 %v3605, %v3604
      %v3626 = vpack.c.bf16 %v3607, %v3606
      %v3627 = vpack.c.bf16 %v3609, %v3608
      %v3628 = vpack.c.bf16 %v3611, %v3610
      %v3629 = vpack.c.bf16 %v3613, %v3612
      %v3630 = vld [vmem:[%s7] sm:$0x1]
      %v3631 = vld [vmem:[#allocation2] sm:$0x1]
      %3633 = vset.pattern.permute.xlu0 0
      %3634 = vperm.xlu0 %3633, %v3631
      %v3635 = vpop.permute.xlu0 %3634
      %v3637 = vlaneseq
      %v3638 = vshrl.u32 %v3637, 7
      %v3639 = vsub.s32 0, %v3638
      %v3640 = vrot.slane %v3635, %v3639
      %3641 = vmatprep.subr.bf16.mxu0 0
      %3642 = vmatpush1.bf16.xpose.msra.mxu0 %v3614
      %3643 = vmatprep.subr.bf16.mxu0 0
      %3644 = vmatpush1.bf16.xpose.msra.mxu0 %v3615
      %3645 = vmatprep.subr.bf16.mxu0 0
      %3646 = vmatpush1.bf16.xpose.msra.mxu0 %v3616
      %3647 = vmatprep.subr.bf16.mxu0 0
      %3648 = vmatpush1.bf16.xpose.msra.mxu0 %v3617
      %3649 = vmatprep.subr.bf16.mxu0 0
      %3650 = vmatpush1.bf16.xpose.msra.mxu0 %v3618
      %3651 = vmatprep.subr.bf16.mxu0 0
      %3652 = vmatpush1.bf16.xpose.msra.mxu0 %v3619
      %3653 = vmatprep.subr.bf16.mxu0 0
      %3654 = vmatpush1.bf16.xpose.msra.mxu0 %v3620
      %3655 = vmatprep.subr.bf16.mxu0 0
      %3656 = vmatpush1.bf16.xpose.msra.mxu0 %v3621
      %3657 = vmatprep.subr.bf16.mxu0 0
      %3658 = vmatpush1.bf16.xpose.msra.mxu0 %v3622
      %3659 = vmatprep.subr.bf16.mxu0 0
      %3660 = vmatpush1.bf16.xpose.msra.mxu0 %v3623
      %3661 = vmatprep.subr.bf16.mxu0 0
      %3662 = vmatpush1.bf16.xpose.msra.mxu0 %v3624
      %3663 = vmatprep.subr.bf16.mxu0 0
      %3664 = vmatpush1.bf16.xpose.msra.mxu0 %v3625
      %3665 = vmatprep.subr.bf16.mxu0 0
      %3666 = vmatpush1.bf16.xpose.msra.mxu0 %v3626
      %3667 = vmatprep.subr.bf16.mxu0 0
      %3668 = vmatpush1.bf16.xpose.msra.mxu0 %v3627
      %3669 = vmatprep.subr.bf16.mxu0 0
      %3670 = vmatpush1.bf16.xpose.msra.mxu0 %v3628
      %3671 = vmatprep.subr.bf16.mxu0 0
      %3672 = vmatpush1.bf16.xpose.msra.mxu0 %v3629
      %3673 = vmatprep.mubr.bf16.mxu0 0
      %3674 = vmatmul.mubr.bf16.gmra.mrb[0].mxu0 %v3630
      %v3675 = vpop.f32.mrb[0].mxu0
      %v3676 = vadd.f32 %v3640, %v3675
      %v3677 = vpop.f32.mrb[0].mxu0
      %v3678 = vadd.f32 %v3640, %v3677
      %v3679 = vpop.f32.mrb[0].mxu0
      %v3680 = vpop.f32.mrb[0].mxu0
      %3681 = vdwg.mxu0
      %v3684 = vcombine.low %v3676, %v3678
      %v3686 = vunpack.c.l.s4 1966171168
      %v3687 = vunpack.c.0.s8 %v3686
      %v3688 = vlaneseq
      %v3689 = vshrl.u32 %v3688, 7
      %v3690 = vsub.s32 %v3687, %v3689
      %v3691 = vrot.slane %v3684, %v3690
      %v3693 = vunpack.c.l.s4 1966171168
      %v3694 = vunpack.c.0.s8 %v3693
      %v3695 = vlaneseq
      %v3696 = vshrl.u32 %v3695, 7
      %v3697 = vsub.s32 %v3694, %v3696
      %v3698 = vrot.slane %v3691, %v3697
      %v3700 = vlaneseq
      %vm3701 = vcmp.ge.s32.totalorder %v3700, 0
      %vm3702 = vcmp.lt.s32.totalorder %v3700, 256
      %vm3703 = vmand %vm3701, %vm3702
      %3704 = vst.msk [vmem:[%s334] sm:$0x3] %vm3703, %v3698
      %s3705 = smul.u32 2, %s22
      %p3706 = scmp.lt.s32.totalorder %s3705, 3
      %s3707 = scalar_select %p3706, %s3705, 3
      %s3708 = scalar_lea.vmem %s9, %s3707
      // Predicated region
      $region57: #{_lambda_.1} parent=55 // pred_check
        %p3709 = pneg %p234
      $region58: #{_lambda_.1} parent=55 // pred_check_branch
        %3711 = sbr.rel (%p3709) target = $region60
      $region59: #{_lambda_.1} parent=55 // pred_region
        %s3712 = smul.u32 2, %s22
      $region60: #{_lambda_.1} parent=55 // pred_fallthru
        _
    $region56: #{_lambda_.1} parent=5 // pred_fallthru
      _
    %p3713 = scmp.le.s32.totalorder 2, %s17
    // Predicated region
    $region61: #{_lambda_.1} parent=5 // pred_check
      %p3714 = pneg %p3713
    $region62: #{_lambda_.1} parent=5 // pred_check_branch
      %3716 = sbr.rel (%p3714) target = $region64
    $region63: #{_lambda_.1} parent=5 // pred_region
      %s3717 = ssub.s32 %s17, 2
      // Predicated region
      $region65: #{_lambda_.1} parent=63 // pred_check
        %p3718 = pneg %p240
      $region66: #{_lambda_.1} parent=63 // pred_check_branch
        %3720 = sbr.rel (%p3718) target = $region68
      $region67: #{_lambda_.1} parent=63 // pred_region
        %s3721 = smul.u32 2, %s23
        %p3722 = scmp.lt.s32.totalorder %s3721, 3
        %s3723 = scalar_select %p3722, %s3721, 3
        %s3724 = scalar_lea.vmem %s9, %s3723
      $region68: #{_lambda_.1} parent=63 // pred_fallthru
        _
    $region64: #{_lambda_.1} parent=5 // pred_fallthru
      _
  $region6: #{_lambda_.1} parent=0 // loop_footer
    %s21 = sadd.s32 1, %s17
  $region7: #{_lambda_.1} parent=0 // loop_footer_branch
    %16 = sbr.rel target = $region3
  $region8: #{_lambda_.1} parent=0 // loop_exit
    _

</llo_original>
